<compile_context>
chip_gen: v6e
topology: v6e:2x2x1
jax: 0.10.0
libtpu: 0.0.40
codegen_flags: <defaults>
</compile_context>

<pallas_src>
import functools

import numpy as np

import jax
import jax.numpy as jnp
from jax.experimental import pallas as pl
from jax.experimental.pallas import tpu as pltpu


TILE = 8  # samples per grid step (leading block dim; grid axis is "parallel")


# ----------------------------- fused kernel ------------------------------


def _lenet_fused_kernel(x_ref, g1_ref, b1_ref, g2_ref, b2_ref,
                        w1_ref, c1_ref, w2_ref, c2_ref, w3_ref, c3_ref,
                        o_ref):
    f32 = jnp.float32
    tb = x_ref.shape[0]

    def mm(a, b):
        return jnp.dot(a, b, preferred_element_type=f32)

    def pick_cols(a, parity):
        # (R, M) -> (R, M//2), keeping columns 2k+parity (exact 0/1 matmul).
        m = a.shape[1]
        r = jax.lax.broadcasted_iota(jnp.int32, (m, m // 2), 0)
        c = jax.lax.broadcasted_iota(jnp.int32, (m, m // 2), 1)
        return mm(a, (r == 2 * c + parity).astype(f32))

    def pick_rows(a, stride, offset):
        # (R, C) -> (R//stride, C), keeping rows stride*k+offset.
        n_in = a.shape[0]
        n_out = n_in // stride
        r = jax.lax.broadcasted_iota(jnp.int32, (n_out, n_in), 0)
        c = jax.lax.broadcasted_iota(jnp.int32, (n_out, n_in), 1)
        return mm((c == stride * r + offset).astype(f32), a)

    # ---- conv1 (1->6, 5x5, valid): rows = n*24 + ho, cols = c*24 + wo ----
    acc1 = jnp.zeros((tb * 24, 6 * 24), f32)
    for i in range(5):
        rows = x_ref[:, i:i + 24, :].reshape(tb * 24, 28)
        acc1 = acc1 + mm(rows, g1_ref[i])

    # ---- maxpool 2x2 + bias + ReLU: rows = n*12 + ph, cols = c*12 + pw ----
    mw1 = jnp.maximum(pick_cols(acc1, 0), pick_cols(acc1, 1))      # (tb*24, 72)
    p1 = jnp.maximum(pick_rows(mw1, 2, 0), pick_rows(mw1, 2, 1))   # (tb*12, 72)
    p1 = jnp.maximum(p1 + b1_ref[...], 0.0)

    # ---- conv2 (6->16, 5x5, valid): rows = n*8 + ho, cols = co*8 + wo ----
    ro = jax.lax.broadcasted_iota(jnp.int32, (tb * 8, tb * 12), 0)
    co = jax.lax.broadcasted_iota(jnp.int32, (tb * 8, tb * 12), 1)
    base = ro + 4 * (ro >> 3)   # (n*8+ho) -> (n*12+ho), avoids vector div/mod
    acc2 = jnp.zeros((tb * 8, 16 * 8), f32)
    for i in range(5):
        gathered = mm((co == base + i).astype(f32), p1)            # (tb*8, 72)
        acc2 = acc2 + mm(gathered, g2_ref[i])

    # ---- maxpool 2x2 + bias + ReLU: rows = n*4 + ph, cols = co*4 + pw ----
    mw2 = jnp.maximum(pick_cols(acc2, 0), pick_cols(acc2, 1))      # (tb*8, 64)
    p2 = jnp.maximum(pick_rows(mw2, 2, 0), pick_rows(mw2, 2, 1))   # (tb*4, 64)
    p2 = jnp.maximum(p2 + b2_ref[...], 0.0)

    # ---- flatten: feat[n, ph*64 + co*4 + pw]  (NCHW order folded into fc1) ----
    feat = jnp.concatenate([pick_rows(p2, 4, ph) for ph in range(4)],
                           axis=1)                                  # (tb, 256)

    # ---- classifier + softmax(dim=1) ----
    h = jnp.maximum(mm(feat, w1_ref[...]) + c1_ref[...], 0.0)
    h = jnp.maximum(mm(h, w2_ref[...]) + c2_ref[...], 0.0)
    logits = mm(h, w3_ref[...]) + c3_ref[...]
    m = jnp.max(logits, axis=-1, keepdims=True)
    e = jnp.exp(logits - m)
    o_ref[...] = e / jnp.sum(e, axis=-1, keepdims=True)


# ----------------------------- wrapper ------------------------------


def _flatten_permutation():
    # feat column index ph*64 + co*4 + pw  ->  PyTorch flatten index co*16 + ph*4 + pw
    perm = np.empty((256,), dtype=np.int32)
    for k in range(256):
        ph, rem = divmod(k, 64)
        c, pw = divmod(rem, 4)
        perm[k] = c * 16 + ph * 4 + pw
    return perm


_FC1_PERM = _flatten_permutation()


def _build_kernel_operands(params):
    """Trace-time (tiny) weight transforms: banded conv matrices, bias rows,
    and the flatten-order permutation of fc1's rows."""
    f32 = jnp.float32
    w1 = params["conv1_w"].astype(f32)        # (6, 1, 5, 5)
    w2 = params["conv2_w"].astype(f32)        # (16, 6, 5, 5)

    bands1 = jnp.stack([jnp.eye(28, 24, k=-j, dtype=f32) for j in range(5)])  # (5,28,24)
    bands2 = jnp.stack([jnp.eye(12, 8, k=-j, dtype=f32) for j in range(5)])   # (5,12,8)

    # g1[i, wi, c*24 + wo] = W1[c, 0, i, wi - wo]
    g1 = jnp.einsum("jxw,cij->ixcw", bands1, w1[:, 0]).reshape(5, 28, 6 * 24)
    # g2[i, ci*12 + wi, co*8 + wo] = W2[co, ci, i, wi - wo]
    g2 = jnp.einsum("jxw,ocij->icxow", bands2, w2).reshape(5, 6 * 12, 16 * 8)

    b1r = jnp.repeat(params["conv1_b"].astype(f32), 12)[None, :]   # (1, 72)
    b2r = jnp.repeat(params["conv2_b"].astype(f32), 4)[None, :]    # (1, 64)

    wfc1 = params["fc1_w"].astype(f32)[_FC1_PERM, :]               # (256, 120)
    cfc1 = params["fc1_b"].astype(f32)[None, :]                    # (1, 120)
    wfc2 = params["fc2_w"].astype(f32)                             # (120, 84)
    cfc2 = params["fc2_b"].astype(f32)[None, :]                    # (1, 84)
    wfc3 = params["fc3_w"].astype(f32)                             # (84, n)
    cfc3 = params["fc3_b"].astype(f32)[None, :]                    # (1, n)
    return g1, b1r, g2, b2r, wfc1, cfc1, wfc2, cfc2, wfc3, cfc3


@jax.jit
def mnist_forward(params, x):
    """x: (N, 1, 28, 28) float32 (NCHW). Returns softmax probabilities (N, n)."""
    n = x.shape[0]
    n_classes = params["fc3_w"].shape[1]
    x3 = x.astype(jnp.float32).reshape(n, 28, 28)
    n_pad = ((n + TILE - 1) // TILE) * TILE
    if n_pad != n:
        x3 = jnp.pad(x3, ((0, n_pad - n), (0, 0), (0, 0)))

    g1, b1r, g2, b2r, w1, c1, w2, c2, w3, c3 = _build_kernel_operands(params)

    full = lambda arr: pl.BlockSpec(arr.shape, lambda i, _nd=arr.ndim: (0,) * _nd)
    out = pl.pallas_call(
        _lenet_fused_kernel,
        grid=(n_pad // TILE,),
        in_specs=[
            pl.BlockSpec((TILE, 28, 28), lambda i: (i, 0, 0)),   # x tile
            full(g1), full(b1r), full(g2), full(b2r),
            full(w1), full(c1), full(w2), full(c2), full(w3), full(c3),
        ],
        out_specs=pl.BlockSpec((TILE, n_classes), lambda i: (i, 0)),
        out_shape=jax.ShapeDtypeStruct((n_pad, n_classes), jnp.float32),
        compiler_params=pltpu.CompilerParams(dimension_semantics=("parallel",)),
    )(x3, g1, b1r, g2, b2r, w1, c1, w2, c2, w3, c3)
    return out[:n]


# ----------------------------- params & reference ------------------------------


def init_params(key, n=10, size=16 * 4 * 4):
    """Deterministic parameter init (PyTorch-default-style uniform bounds)."""
    keys = jax.random.split(key, 10)

    def u(k, shape, fan_in):
        bound = 1.0 / jnp.sqrt(jnp.float32(fan_in))
        return jax.random.uniform(k, shape, jnp.float32, -bound, bound)

    return {
        "conv1_w": u(keys[0], (6, 1, 5, 5), 1 * 5 * 5),
        "conv1_b": u(keys[1], (6,), 1 * 5 * 5),
        "conv2_w": u(keys[2], (16, 6, 5, 5), 6 * 5 * 5),
        "conv2_b": u(keys[3], (16,), 6 * 5 * 5),
        # Linear weights stored as (in, out) for x @ W; bias (out,).
        "fc1_w": u(keys[4], (size, 120), size),
        "fc1_b": u(keys[5], (120,), size),
        "fc2_w": u(keys[6], (120, 84), 120),
        "fc2_b": u(keys[7], (84,), 120),
        "fc3_w": u(keys[8], (84, n), 84),
        "fc3_b": u(keys[9], (n,), 84),
    }


def reference_forward(params, x):
    """Pure-JAX (XLA) reference mirroring the PyTorch module."""
    dn = ("NCHW", "OIHW", "NCHW")
    h = jax.lax.conv_general_dilated(x, params["conv1_w"], (1, 1), "VALID",
                                     dimension_numbers=dn)
    h = h + params["conv1_b"][None, :, None, None]
    h = jax.lax.reduce_window(h, -jnp.inf, jax.lax.max, (1, 1, 2, 2), (1, 1, 2, 2), "VALID")
    h = jnp.maximum(h, 0.0)
    h = jax.lax.conv_general_dilated(h, params["conv2_w"], (1, 1), "VALID",
                                     dimension_numbers=dn)
    h = h + params["conv2_b"][None, :, None, None]
    h = jax.lax.reduce_window(h, -jnp.inf, jax.lax.max, (1, 1, 2, 2), (1, 1, 2, 2), "VALID")
    h = jnp.maximum(h, 0.0)
    f = h.reshape(h.shape[0], -1)
    f = jnp.maximum(f @ params["fc1_w"] + params["fc1_b"], 0.0)
    f = jnp.maximum(f @ params["fc2_w"] + params["fc2_b"], 0.0)
    logits = f @ params["fc3_w"] + params["fc3_b"]
    return jax.nn.softmax(logits, axis=1)


# ----------------------------- demo ------------------------------


if __name__ == "__main__":
    key = jax.random.PRNGKey(0)
    k_params, k_x = jax.random.split(key)

    batch = 12  # exercises padding (->16) and a 2-step "parallel" batch grid
    x = jax.random.normal(k_x, (batch, 1, 28, 28), dtype=jnp.float32)
    params = init_params(k_params, n=10, size=16 * 4 * 4)

    out = jax.block_until_ready(mnist_forward(params, x))

    assert out.shape == (batch, 10), out.shape
    assert bool(jnp.all(jnp.isfinite(out)))
    row_sums = jnp.sum(out, axis=1)
    assert bool(jnp.all(jnp.abs(row_sums - 1.0) < 1e-4)), row_sums

    ref = reference_forward(params, x)
    max_err = float(jnp.max(jnp.abs(out - ref)))
    assert max_err < 2e-3, f"max |pallas - reference| = {max_err}"

    print("KERNEL_OK")
</pallas_src>

<mosaic_0001>
module attributes {stable_mosaic.version = 11 : i64} {
  func.func @_lenet_fused_kernel(%arg0: i32, %arg1: memref<8x28x28xf32, #tpu.memory_space<vmem>>, %arg2: memref<5x28x144xf32, #tpu.memory_space<vmem>>, %arg3: memref<1x72xf32, #tpu.memory_space<vmem>>, %arg4: memref<5x72x128xf32, #tpu.memory_space<vmem>>, %arg5: memref<1x64xf32, #tpu.memory_space<vmem>>, %arg6: memref<256x120xf32, #tpu.memory_space<vmem>>, %arg7: memref<1x120xf32, #tpu.memory_space<vmem>>, %arg8: memref<120x84xf32, #tpu.memory_space<vmem>>, %arg9: memref<1x84xf32, #tpu.memory_space<vmem>>, %arg10: memref<84x10xf32, #tpu.memory_space<vmem>>, %arg11: memref<1x10xf32, #tpu.memory_space<vmem>>, %arg12: memref<8x10xf32, #tpu.memory_space<vmem>>) attributes {dimension_semantics = [#tpu.dimension_semantics<parallel>], iteration_bounds = array<i64: 2>, scalar_prefetch = 0 : i64, scratch_operands = 0 : i64, tpu.core_type = #tpu.core_type<tc>, window_params = [{transform_indices = @transform_0, window_bounds = array<i64: 8, 28, 28>}, {pipeline_mode = #tpu.pipeline_mode<synchronous>, transform_indices = @transform_1, window_bounds = array<i64: 5, 28, 144>}, {pipeline_mode = #tpu.pipeline_mode<synchronous>, transform_indices = @transform_2, window_bounds = array<i64: 1, 72>}, {pipeline_mode = #tpu.pipeline_mode<synchronous>, transform_indices = @transform_3, window_bounds = array<i64: 5, 72, 128>}, {pipeline_mode = #tpu.pipeline_mode<synchronous>, transform_indices = @transform_4, window_bounds = array<i64: 1, 64>}, {pipeline_mode = #tpu.pipeline_mode<synchronous>, transform_indices = @transform_5, window_bounds = array<i64: 256, 120>}, {pipeline_mode = #tpu.pipeline_mode<synchronous>, transform_indices = @transform_6, window_bounds = array<i64: 1, 120>}, {pipeline_mode = #tpu.pipeline_mode<synchronous>, transform_indices = @transform_7, window_bounds = array<i64: 120, 84>}, {pipeline_mode = #tpu.pipeline_mode<synchronous>, transform_indices = @transform_8, window_bounds = array<i64: 1, 84>}, {pipeline_mode = #tpu.pipeline_mode<synchronous>, transform_indices = @transform_9, window_bounds = array<i64: 84, 10>}, {pipeline_mode = #tpu.pipeline_mode<synchronous>, transform_indices = @transform_10, window_bounds = array<i64: 1, 10>}, {transform_indices = @transform_11, window_bounds = array<i64: 8, 10>}]} {
    %cst = arith.constant 0.000000e+00 : f32
    %0 = vector.broadcast %cst : f32 to vector<192x144xf32>
    %c0 = arith.constant 0 : index
    %c0_0 = arith.constant 0 : index
    %c0_1 = arith.constant 0 : index
    %1 = vector.load %arg1[%c0, %c0_0, %c0_1] : memref<8x28x28xf32, #tpu.memory_space<vmem>>, vector<8x24x28xf32>
    %2 = vector.shape_cast %1 : vector<8x24x28xf32> to vector<192x28xf32>
    %c0_2 = arith.constant 0 : index
    %c0_3 = arith.constant 0 : index
    %c0_4 = arith.constant 0 : index
    %3 = vector.load %arg2[%c0_2, %c0_3, %c0_4] : memref<5x28x144xf32, #tpu.memory_space<vmem>>, vector<1x28x144xf32>
    %4 = vector.shape_cast %3 : vector<1x28x144xf32> to vector<28x144xf32>
    %cst_5 = arith.constant dense<0.000000e+00> : vector<192x144xf32>
    %5 = tpu.matmul %2, %4, %cst_5 {dimension_numbers = #tpu.dot_dimension_numbers<[1], [0], [0], [1], [0, 0, 1, 1], [], []>} : vector<192x28xf32>, vector<28x144xf32>, vector<192x144xf32> -> vector<192x144xf32>
    %6 = arith.addf %0, %5 : vector<192x144xf32>
    %c0_6 = arith.constant 0 : index
    %c1 = arith.constant 1 : index
    %c0_7 = arith.constant 0 : index
    %7 = vector.load %arg1[%c0_6, %c1, %c0_7] : memref<8x28x28xf32, #tpu.memory_space<vmem>>, vector<8x24x28xf32>
    %8 = vector.shape_cast %7 : vector<8x24x28xf32> to vector<192x28xf32>
    %c1_8 = arith.constant 1 : index
    %c0_9 = arith.constant 0 : index
    %c0_10 = arith.constant 0 : index
    %9 = vector.load %arg2[%c1_8, %c0_9, %c0_10] : memref<5x28x144xf32, #tpu.memory_space<vmem>>, vector<1x28x144xf32>
    %10 = vector.shape_cast %9 : vector<1x28x144xf32> to vector<28x144xf32>
    %cst_11 = arith.constant dense<0.000000e+00> : vector<192x144xf32>
    %11 = tpu.matmul %8, %10, %cst_11 {dimension_numbers = #tpu.dot_dimension_numbers<[1], [0], [0], [1], [0, 0, 1, 1], [], []>} : vector<192x28xf32>, vector<28x144xf32>, vector<192x144xf32> -> vector<192x144xf32>
    %12 = arith.addf %6, %11 : vector<192x144xf32>
    %c0_12 = arith.constant 0 : index
    %c2 = arith.constant 2 : index
    %c0_13 = arith.constant 0 : index
    %13 = vector.load %arg1[%c0_12, %c2, %c0_13] : memref<8x28x28xf32, #tpu.memory_space<vmem>>, vector<8x24x28xf32>
    %14 = vector.shape_cast %13 : vector<8x24x28xf32> to vector<192x28xf32>
    %c2_14 = arith.constant 2 : index
    %c0_15 = arith.constant 0 : index
    %c0_16 = arith.constant 0 : index
    %15 = vector.load %arg2[%c2_14, %c0_15, %c0_16] : memref<5x28x144xf32, #tpu.memory_space<vmem>>, vector<1x28x144xf32>
    %16 = vector.shape_cast %15 : vector<1x28x144xf32> to vector<28x144xf32>
    %cst_17 = arith.constant dense<0.000000e+00> : vector<192x144xf32>
    %17 = tpu.matmul %14, %16, %cst_17 {dimension_numbers = #tpu.dot_dimension_numbers<[1], [0], [0], [1], [0, 0, 1, 1], [], []>} : vector<192x28xf32>, vector<28x144xf32>, vector<192x144xf32> -> vector<192x144xf32>
    %18 = arith.addf %12, %17 : vector<192x144xf32>
    %c0_18 = arith.constant 0 : index
    %c3 = arith.constant 3 : index
    %c0_19 = arith.constant 0 : index
    %19 = vector.load %arg1[%c0_18, %c3, %c0_19] : memref<8x28x28xf32, #tpu.memory_space<vmem>>, vector<8x24x28xf32>
    %20 = vector.shape_cast %19 : vector<8x24x28xf32> to vector<192x28xf32>
    %c3_20 = arith.constant 3 : index
    %c0_21 = arith.constant 0 : index
    %c0_22 = arith.constant 0 : index
    %21 = vector.load %arg2[%c3_20, %c0_21, %c0_22] : memref<5x28x144xf32, #tpu.memory_space<vmem>>, vector<1x28x144xf32>
    %22 = vector.shape_cast %21 : vector<1x28x144xf32> to vector<28x144xf32>
    %cst_23 = arith.constant dense<0.000000e+00> : vector<192x144xf32>
    %23 = tpu.matmul %20, %22, %cst_23 {dimension_numbers = #tpu.dot_dimension_numbers<[1], [0], [0], [1], [0, 0, 1, 1], [], []>} : vector<192x28xf32>, vector<28x144xf32>, vector<192x144xf32> -> vector<192x144xf32>
    %24 = arith.addf %18, %23 : vector<192x144xf32>
    %c0_24 = arith.constant 0 : index
    %c4 = arith.constant 4 : index
    %c0_25 = arith.constant 0 : index
    %25 = vector.load %arg1[%c0_24, %c4, %c0_25] : memref<8x28x28xf32, #tpu.memory_space<vmem>>, vector<8x24x28xf32>
    %26 = vector.shape_cast %25 : vector<8x24x28xf32> to vector<192x28xf32>
    %c4_26 = arith.constant 4 : index
    %c0_27 = arith.constant 0 : index
    %c0_28 = arith.constant 0 : index
    %27 = vector.load %arg2[%c4_26, %c0_27, %c0_28] : memref<5x28x144xf32, #tpu.memory_space<vmem>>, vector<1x28x144xf32>
    %28 = vector.shape_cast %27 : vector<1x28x144xf32> to vector<28x144xf32>
    %cst_29 = arith.constant dense<0.000000e+00> : vector<192x144xf32>
    %29 = tpu.matmul %26, %28, %cst_29 {dimension_numbers = #tpu.dot_dimension_numbers<[1], [0], [0], [1], [0, 0, 1, 1], [], []>} : vector<192x28xf32>, vector<28x144xf32>, vector<192x144xf32> -> vector<192x144xf32>
    %30 = arith.addf %24, %29 : vector<192x144xf32>
    %31 = tpu.iota {dimensions = array<i32: 0>} : vector<144x72xi32>
    %32 = tpu.iota {dimensions = array<i32: 1>} : vector<144x72xi32>
    %c2_i32 = arith.constant 2 : i32
    %33 = vector.broadcast %c2_i32 : i32 to vector<144x72xi32>
    %34 = arith.muli %33, %32 : vector<144x72xi32>
    %c0_i32 = arith.constant 0 : i32
    %35 = vector.broadcast %c0_i32 : i32 to vector<144x72xi32>
    %36 = arith.addi %34, %35 : vector<144x72xi32>
    %37 = arith.cmpi eq, %31, %36 : vector<144x72xi32>
    %38 = arith.extui %37 : vector<144x72xi1> to vector<144x72xi32>
    %39 = arith.sitofp %38 : vector<144x72xi32> to vector<144x72xf32>
    %cst_30 = arith.constant dense<0.000000e+00> : vector<192x72xf32>
    %40 = tpu.matmul %30, %39, %cst_30 {dimension_numbers = #tpu.dot_dimension_numbers<[1], [0], [0], [1], [0, 0, 1, 1], [], []>} : vector<192x144xf32>, vector<144x72xf32>, vector<192x72xf32> -> vector<192x72xf32>
    %41 = tpu.iota {dimensions = array<i32: 0>} : vector<144x72xi32>
    %42 = tpu.iota {dimensions = array<i32: 1>} : vector<144x72xi32>
    %c2_i32_31 = arith.constant 2 : i32
    %43 = vector.broadcast %c2_i32_31 : i32 to vector<144x72xi32>
    %44 = arith.muli %43, %42 : vector<144x72xi32>
    %c1_i32 = arith.constant 1 : i32
    %45 = vector.broadcast %c1_i32 : i32 to vector<144x72xi32>
    %46 = arith.addi %44, %45 : vector<144x72xi32>
    %47 = arith.cmpi eq, %41, %46 : vector<144x72xi32>
    %48 = arith.extui %47 : vector<144x72xi1> to vector<144x72xi32>
    %49 = arith.sitofp %48 : vector<144x72xi32> to vector<144x72xf32>
    %cst_32 = arith.constant dense<0.000000e+00> : vector<192x72xf32>
    %50 = tpu.matmul %30, %49, %cst_32 {dimension_numbers = #tpu.dot_dimension_numbers<[1], [0], [0], [1], [0, 0, 1, 1], [], []>} : vector<192x144xf32>, vector<144x72xf32>, vector<192x72xf32> -> vector<192x72xf32>
    %51 = arith.maximumf %40, %50 : vector<192x72xf32>
    %52 = tpu.iota {dimensions = array<i32: 0>} : vector<96x192xi32>
    %53 = tpu.iota {dimensions = array<i32: 1>} : vector<96x192xi32>
    %c2_i32_33 = arith.constant 2 : i32
    %54 = vector.broadcast %c2_i32_33 : i32 to vector<96x192xi32>
    %55 = arith.muli %54, %52 : vector<96x192xi32>
    %c0_i32_34 = arith.constant 0 : i32
    %56 = vector.broadcast %c0_i32_34 : i32 to vector<96x192xi32>
    %57 = arith.addi %55, %56 : vector<96x192xi32>
    %58 = arith.cmpi eq, %53, %57 : vector<96x192xi32>
    %59 = arith.extui %58 : vector<96x192xi1> to vector<96x192xi32>
    %60 = arith.sitofp %59 : vector<96x192xi32> to vector<96x192xf32>
    %cst_35 = arith.constant dense<0.000000e+00> : vector<96x72xf32>
    %61 = tpu.matmul %60, %51, %cst_35 {dimension_numbers = #tpu.dot_dimension_numbers<[1], [0], [0], [1], [0, 0, 1, 1], [], []>} : vector<96x192xf32>, vector<192x72xf32>, vector<96x72xf32> -> vector<96x72xf32>
    %62 = tpu.iota {dimensions = array<i32: 0>} : vector<96x192xi32>
    %63 = tpu.iota {dimensions = array<i32: 1>} : vector<96x192xi32>
    %c2_i32_36 = arith.constant 2 : i32
    %64 = vector.broadcast %c2_i32_36 : i32 to vector<96x192xi32>
    %65 = arith.muli %64, %62 : vector<96x192xi32>
    %c1_i32_37 = arith.constant 1 : i32
    %66 = vector.broadcast %c1_i32_37 : i32 to vector<96x192xi32>
    %67 = arith.addi %65, %66 : vector<96x192xi32>
    %68 = arith.cmpi eq, %63, %67 : vector<96x192xi32>
    %69 = arith.extui %68 : vector<96x192xi1> to vector<96x192xi32>
    %70 = arith.sitofp %69 : vector<96x192xi32> to vector<96x192xf32>
    %cst_38 = arith.constant dense<0.000000e+00> : vector<96x72xf32>
    %71 = tpu.matmul %70, %51, %cst_38 {dimension_numbers = #tpu.dot_dimension_numbers<[1], [0], [0], [1], [0, 0, 1, 1], [], []>} : vector<96x192xf32>, vector<192x72xf32>, vector<96x72xf32> -> vector<96x72xf32>
    %72 = arith.maximumf %61, %71 : vector<96x72xf32>
    %c0_39 = arith.constant 0 : index
    %c0_40 = arith.constant 0 : index
    %73 = vector.load %arg3[%c0_39, %c0_40] : memref<1x72xf32, #tpu.memory_space<vmem>>, vector<1x72xf32>
    %74 = vector.broadcast %73 : vector<1x72xf32> to vector<96x72xf32>
    %75 = arith.addf %72, %74 : vector<96x72xf32>
    %cst_41 = arith.constant 0.000000e+00 : f32
    %76 = vector.broadcast %cst_41 : f32 to vector<96x72xf32>
    %77 = arith.maximumf %75, %76 : vector<96x72xf32>
    %78 = tpu.iota {dimensions = array<i32: 0>} : vector<64x96xi32>
    %79 = tpu.iota {dimensions = array<i32: 1>} : vector<64x96xi32>
    %c3_i32 = arith.constant 3 : i32
    %80 = vector.broadcast %c3_i32 : i32 to vector<64x96xi32>
    %81 = arith.shrsi %78, %80 : vector<64x96xi32>
    %c4_i32 = arith.constant 4 : i32
    %82 = vector.broadcast %c4_i32 : i32 to vector<64x96xi32>
    %83 = arith.muli %82, %81 : vector<64x96xi32>
    %84 = arith.addi %78, %83 : vector<64x96xi32>
    %cst_42 = arith.constant 0.000000e+00 : f32
    %85 = vector.broadcast %cst_42 : f32 to vector<64x128xf32>
    %c0_i32_43 = arith.constant 0 : i32
    %86 = vector.broadcast %c0_i32_43 : i32 to vector<64x96xi32>
    %87 = arith.addi %84, %86 : vector<64x96xi32>
    %88 = arith.cmpi eq, %79, %87 : vector<64x96xi32>
    %89 = arith.extui %88 : vector<64x96xi1> to vector<64x96xi32>
    %90 = arith.sitofp %89 : vector<64x96xi32> to vector<64x96xf32>
    %cst_44 = arith.constant dense<0.000000e+00> : vector<64x72xf32>
    %91 = tpu.matmul %90, %77, %cst_44 {dimension_numbers = #tpu.dot_dimension_numbers<[1], [0], [0], [1], [0, 0, 1, 1], [], []>} : vector<64x96xf32>, vector<96x72xf32>, vector<64x72xf32> -> vector<64x72xf32>
    %c0_45 = arith.constant 0 : index
    %c0_46 = arith.constant 0 : index
    %c0_47 = arith.constant 0 : index
    %92 = vector.load %arg4[%c0_45, %c0_46, %c0_47] : memref<5x72x128xf32, #tpu.memory_space<vmem>>, vector<1x72x128xf32>
    %93 = vector.shape_cast %92 : vector<1x72x128xf32> to vector<72x128xf32>
    %cst_48 = arith.constant dense<0.000000e+00> : vector<64x128xf32>
    %94 = tpu.matmul %91, %93, %cst_48 {dimension_numbers = #tpu.dot_dimension_numbers<[1], [0], [0], [1], [0, 0, 1, 1], [], []>} : vector<64x72xf32>, vector<72x128xf32>, vector<64x128xf32> -> vector<64x128xf32>
    %95 = arith.addf %85, %94 : vector<64x128xf32>
    %c1_i32_49 = arith.constant 1 : i32
    %96 = vector.broadcast %c1_i32_49 : i32 to vector<64x96xi32>
    %97 = arith.addi %84, %96 : vector<64x96xi32>
    %98 = arith.cmpi eq, %79, %97 : vector<64x96xi32>
    %99 = arith.extui %98 : vector<64x96xi1> to vector<64x96xi32>
    %100 = arith.sitofp %99 : vector<64x96xi32> to vector<64x96xf32>
    %cst_50 = arith.constant dense<0.000000e+00> : vector<64x72xf32>
    %101 = tpu.matmul %100, %77, %cst_50 {dimension_numbers = #tpu.dot_dimension_numbers<[1], [0], [0], [1], [0, 0, 1, 1], [], []>} : vector<64x96xf32>, vector<96x72xf32>, vector<64x72xf32> -> vector<64x72xf32>
    %c1_51 = arith.constant 1 : index
    %c0_52 = arith.constant 0 : index
    %c0_53 = arith.constant 0 : index
    %102 = vector.load %arg4[%c1_51, %c0_52, %c0_53] : memref<5x72x128xf32, #tpu.memory_space<vmem>>, vector<1x72x128xf32>
    %103 = vector.shape_cast %102 : vector<1x72x128xf32> to vector<72x128xf32>
    %cst_54 = arith.constant dense<0.000000e+00> : vector<64x128xf32>
    %104 = tpu.matmul %101, %103, %cst_54 {dimension_numbers = #tpu.dot_dimension_numbers<[1], [0], [0], [1], [0, 0, 1, 1], [], []>} : vector<64x72xf32>, vector<72x128xf32>, vector<64x128xf32> -> vector<64x128xf32>
    %105 = arith.addf %95, %104 : vector<64x128xf32>
    %c2_i32_55 = arith.constant 2 : i32
    %106 = vector.broadcast %c2_i32_55 : i32 to vector<64x96xi32>
    %107 = arith.addi %84, %106 : vector<64x96xi32>
    %108 = arith.cmpi eq, %79, %107 : vector<64x96xi32>
    %109 = arith.extui %108 : vector<64x96xi1> to vector<64x96xi32>
    %110 = arith.sitofp %109 : vector<64x96xi32> to vector<64x96xf32>
    %cst_56 = arith.constant dense<0.000000e+00> : vector<64x72xf32>
    %111 = tpu.matmul %110, %77, %cst_56 {dimension_numbers = #tpu.dot_dimension_numbers<[1], [0], [0], [1], [0, 0, 1, 1], [], []>} : vector<64x96xf32>, vector<96x72xf32>, vector<64x72xf32> -> vector<64x72xf32>
    %c2_57 = arith.constant 2 : index
    %c0_58 = arith.constant 0 : index
    %c0_59 = arith.constant 0 : index
    %112 = vector.load %arg4[%c2_57, %c0_58, %c0_59] : memref<5x72x128xf32, #tpu.memory_space<vmem>>, vector<1x72x128xf32>
    %113 = vector.shape_cast %112 : vector<1x72x128xf32> to vector<72x128xf32>
    %cst_60 = arith.constant dense<0.000000e+00> : vector<64x128xf32>
    %114 = tpu.matmul %111, %113, %cst_60 {dimension_numbers = #tpu.dot_dimension_numbers<[1], [0], [0], [1], [0, 0, 1, 1], [], []>} : vector<64x72xf32>, vector<72x128xf32>, vector<64x128xf32> -> vector<64x128xf32>
    %115 = arith.addf %105, %114 : vector<64x128xf32>
    %c3_i32_61 = arith.constant 3 : i32
    %116 = vector.broadcast %c3_i32_61 : i32 to vector<64x96xi32>
    %117 = arith.addi %84, %116 : vector<64x96xi32>
    %118 = arith.cmpi eq, %79, %117 : vector<64x96xi32>
    %119 = arith.extui %118 : vector<64x96xi1> to vector<64x96xi32>
    %120 = arith.sitofp %119 : vector<64x96xi32> to vector<64x96xf32>
    %cst_62 = arith.constant dense<0.000000e+00> : vector<64x72xf32>
    %121 = tpu.matmul %120, %77, %cst_62 {dimension_numbers = #tpu.dot_dimension_numbers<[1], [0], [0], [1], [0, 0, 1, 1], [], []>} : vector<64x96xf32>, vector<96x72xf32>, vector<64x72xf32> -> vector<64x72xf32>
    %c3_63 = arith.constant 3 : index
    %c0_64 = arith.constant 0 : index
    %c0_65 = arith.constant 0 : index
    %122 = vector.load %arg4[%c3_63, %c0_64, %c0_65] : memref<5x72x128xf32, #tpu.memory_space<vmem>>, vector<1x72x128xf32>
    %123 = vector.shape_cast %122 : vector<1x72x128xf32> to vector<72x128xf32>
    %cst_66 = arith.constant dense<0.000000e+00> : vector<64x128xf32>
    %124 = tpu.matmul %121, %123, %cst_66 {dimension_numbers = #tpu.dot_dimension_numbers<[1], [0], [0], [1], [0, 0, 1, 1], [], []>} : vector<64x72xf32>, vector<72x128xf32>, vector<64x128xf32> -> vector<64x128xf32>
    %125 = arith.addf %115, %124 : vector<64x128xf32>
    %c4_i32_67 = arith.constant 4 : i32
    %126 = vector.broadcast %c4_i32_67 : i32 to vector<64x96xi32>
    %127 = arith.addi %84, %126 : vector<64x96xi32>
    %128 = arith.cmpi eq, %79, %127 : vector<64x96xi32>
    %129 = arith.extui %128 : vector<64x96xi1> to vector<64x96xi32>
    %130 = arith.sitofp %129 : vector<64x96xi32> to vector<64x96xf32>
    %cst_68 = arith.constant dense<0.000000e+00> : vector<64x72xf32>
    %131 = tpu.matmul %130, %77, %cst_68 {dimension_numbers = #tpu.dot_dimension_numbers<[1], [0], [0], [1], [0, 0, 1, 1], [], []>} : vector<64x96xf32>, vector<96x72xf32>, vector<64x72xf32> -> vector<64x72xf32>
    %c4_69 = arith.constant 4 : index
    %c0_70 = arith.constant 0 : index
    %c0_71 = arith.constant 0 : index
    %132 = vector.load %arg4[%c4_69, %c0_70, %c0_71] : memref<5x72x128xf32, #tpu.memory_space<vmem>>, vector<1x72x128xf32>
    %133 = vector.shape_cast %132 : vector<1x72x128xf32> to vector<72x128xf32>
    %cst_72 = arith.constant dense<0.000000e+00> : vector<64x128xf32>
    %134 = tpu.matmul %131, %133, %cst_72 {dimension_numbers = #tpu.dot_dimension_numbers<[1], [0], [0], [1], [0, 0, 1, 1], [], []>} : vector<64x72xf32>, vector<72x128xf32>, vector<64x128xf32> -> vector<64x128xf32>
    %135 = arith.addf %125, %134 : vector<64x128xf32>
    %136 = tpu.iota {dimensions = array<i32: 0>} : vector<128x64xi32>
    %137 = tpu.iota {dimensions = array<i32: 1>} : vector<128x64xi32>
    %c2_i32_73 = arith.constant 2 : i32
    %138 = vector.broadcast %c2_i32_73 : i32 to vector<128x64xi32>
    %139 = arith.muli %138, %137 : vector<128x64xi32>
    %c0_i32_74 = arith.constant 0 : i32
    %140 = vector.broadcast %c0_i32_74 : i32 to vector<128x64xi32>
    %141 = arith.addi %139, %140 : vector<128x64xi32>
    %142 = arith.cmpi eq, %136, %141 : vector<128x64xi32>
    %143 = arith.extui %142 : vector<128x64xi1> to vector<128x64xi32>
    %144 = arith.sitofp %143 : vector<128x64xi32> to vector<128x64xf32>
    %cst_75 = arith.constant dense<0.000000e+00> : vector<64x64xf32>
    %145 = tpu.matmul %135, %144, %cst_75 {dimension_numbers = #tpu.dot_dimension_numbers<[1], [0], [0], [1], [0, 0, 1, 1], [], []>} : vector<64x128xf32>, vector<128x64xf32>, vector<64x64xf32> -> vector<64x64xf32>
    %146 = tpu.iota {dimensions = array<i32: 0>} : vector<128x64xi32>
    %147 = tpu.iota {dimensions = array<i32: 1>} : vector<128x64xi32>
    %c2_i32_76 = arith.constant 2 : i32
    %148 = vector.broadcast %c2_i32_76 : i32 to vector<128x64xi32>
    %149 = arith.muli %148, %147 : vector<128x64xi32>
    %c1_i32_77 = arith.constant 1 : i32
    %150 = vector.broadcast %c1_i32_77 : i32 to vector<128x64xi32>
    %151 = arith.addi %149, %150 : vector<128x64xi32>
    %152 = arith.cmpi eq, %146, %151 : vector<128x64xi32>
    %153 = arith.extui %152 : vector<128x64xi1> to vector<128x64xi32>
    %154 = arith.sitofp %153 : vector<128x64xi32> to vector<128x64xf32>
    %cst_78 = arith.constant dense<0.000000e+00> : vector<64x64xf32>
    %155 = tpu.matmul %135, %154, %cst_78 {dimension_numbers = #tpu.dot_dimension_numbers<[1], [0], [0], [1], [0, 0, 1, 1], [], []>} : vector<64x128xf32>, vector<128x64xf32>, vector<64x64xf32> -> vector<64x64xf32>
    %156 = arith.maximumf %145, %155 : vector<64x64xf32>
    %157 = tpu.iota {dimensions = array<i32: 0>} : vector<32x64xi32>
    %158 = tpu.iota {dimensions = array<i32: 1>} : vector<32x64xi32>
    %c2_i32_79 = arith.constant 2 : i32
    %159 = vector.broadcast %c2_i32_79 : i32 to vector<32x64xi32>
    %160 = arith.muli %159, %157 : vector<32x64xi32>
    %c0_i32_80 = arith.constant 0 : i32
    %161 = vector.broadcast %c0_i32_80 : i32 to vector<32x64xi32>
    %162 = arith.addi %160, %161 : vector<32x64xi32>
    %163 = arith.cmpi eq, %158, %162 : vector<32x64xi32>
    %164 = arith.extui %163 : vector<32x64xi1> to vector<32x64xi32>
    %165 = arith.sitofp %164 : vector<32x64xi32> to vector<32x64xf32>
    %cst_81 = arith.constant dense<0.000000e+00> : vector<32x64xf32>
    %166 = tpu.matmul %165, %156, %cst_81 {dimension_numbers = #tpu.dot_dimension_numbers<[1], [0], [0], [1], [0, 0, 1, 1], [], []>} : vector<32x64xf32>, vector<64x64xf32>, vector<32x64xf32> -> vector<32x64xf32>
    %167 = tpu.iota {dimensions = array<i32: 0>} : vector<32x64xi32>
    %168 = tpu.iota {dimensions = array<i32: 1>} : vector<32x64xi32>
    %c2_i32_82 = arith.constant 2 : i32
    %169 = vector.broadcast %c2_i32_82 : i32 to vector<32x64xi32>
    %170 = arith.muli %169, %167 : vector<32x64xi32>
    %c1_i32_83 = arith.constant 1 : i32
    %171 = vector.broadcast %c1_i32_83 : i32 to vector<32x64xi32>
    %172 = arith.addi %170, %171 : vector<32x64xi32>
    %173 = arith.cmpi eq, %168, %172 : vector<32x64xi32>
    %174 = arith.extui %173 : vector<32x64xi1> to vector<32x64xi32>
    %175 = arith.sitofp %174 : vector<32x64xi32> to vector<32x64xf32>
    %cst_84 = arith.constant dense<0.000000e+00> : vector<32x64xf32>
    %176 = tpu.matmul %175, %156, %cst_84 {dimension_numbers = #tpu.dot_dimension_numbers<[1], [0], [0], [1], [0, 0, 1, 1], [], []>} : vector<32x64xf32>, vector<64x64xf32>, vector<32x64xf32> -> vector<32x64xf32>
    %177 = arith.maximumf %166, %176 : vector<32x64xf32>
    %c0_85 = arith.constant 0 : index
    %c0_86 = arith.constant 0 : index
    %178 = vector.load %arg5[%c0_85, %c0_86] : memref<1x64xf32, #tpu.memory_space<vmem>>, vector<1x64xf32>
    %179 = vector.broadcast %178 : vector<1x64xf32> to vector<32x64xf32>
    %180 = arith.addf %177, %179 : vector<32x64xf32>
    %cst_87 = arith.constant 0.000000e+00 : f32
    %181 = vector.broadcast %cst_87 : f32 to vector<32x64xf32>
    %182 = arith.maximumf %180, %181 : vector<32x64xf32>
    %183 = tpu.iota {dimensions = array<i32: 0>} : vector<8x32xi32>
    %184 = tpu.iota {dimensions = array<i32: 1>} : vector<8x32xi32>
    %c4_i32_88 = arith.constant 4 : i32
    %185 = vector.broadcast %c4_i32_88 : i32 to vector<8x32xi32>
    %186 = arith.muli %185, %183 : vector<8x32xi32>
    %c0_i32_89 = arith.constant 0 : i32
    %187 = vector.broadcast %c0_i32_89 : i32 to vector<8x32xi32>
    %188 = arith.addi %186, %187 : vector<8x32xi32>
    %189 = arith.cmpi eq, %184, %188 : vector<8x32xi32>
    %190 = arith.extui %189 : vector<8x32xi1> to vector<8x32xi32>
    %191 = arith.sitofp %190 : vector<8x32xi32> to vector<8x32xf32>
    %cst_90 = arith.constant dense<0.000000e+00> : vector<8x64xf32>
    %192 = tpu.matmul %191, %182, %cst_90 {dimension_numbers = #tpu.dot_dimension_numbers<[1], [0], [0], [1], [0, 0, 1, 1], [], []>} : vector<8x32xf32>, vector<32x64xf32>, vector<8x64xf32> -> vector<8x64xf32>
    %193 = tpu.iota {dimensions = array<i32: 0>} : vector<8x32xi32>
    %194 = tpu.iota {dimensions = array<i32: 1>} : vector<8x32xi32>
    %c4_i32_91 = arith.constant 4 : i32
    %195 = vector.broadcast %c4_i32_91 : i32 to vector<8x32xi32>
    %196 = arith.muli %195, %193 : vector<8x32xi32>
    %c1_i32_92 = arith.constant 1 : i32
    %197 = vector.broadcast %c1_i32_92 : i32 to vector<8x32xi32>
    %198 = arith.addi %196, %197 : vector<8x32xi32>
    %199 = arith.cmpi eq, %194, %198 : vector<8x32xi32>
    %200 = arith.extui %199 : vector<8x32xi1> to vector<8x32xi32>
    %201 = arith.sitofp %200 : vector<8x32xi32> to vector<8x32xf32>
    %cst_93 = arith.constant dense<0.000000e+00> : vector<8x64xf32>
    %202 = tpu.matmul %201, %182, %cst_93 {dimension_numbers = #tpu.dot_dimension_numbers<[1], [0], [0], [1], [0, 0, 1, 1], [], []>} : vector<8x32xf32>, vector<32x64xf32>, vector<8x64xf32> -> vector<8x64xf32>
    %203 = tpu.iota {dimensions = array<i32: 0>} : vector<8x32xi32>
    %204 = tpu.iota {dimensions = array<i32: 1>} : vector<8x32xi32>
    %c4_i32_94 = arith.constant 4 : i32
    %205 = vector.broadcast %c4_i32_94 : i32 to vector<8x32xi32>
    %206 = arith.muli %205, %203 : vector<8x32xi32>
    %c2_i32_95 = arith.constant 2 : i32
    %207 = vector.broadcast %c2_i32_95 : i32 to vector<8x32xi32>
    %208 = arith.addi %206, %207 : vector<8x32xi32>
    %209 = arith.cmpi eq, %204, %208 : vector<8x32xi32>
    %210 = arith.extui %209 : vector<8x32xi1> to vector<8x32xi32>
    %211 = arith.sitofp %210 : vector<8x32xi32> to vector<8x32xf32>
    %cst_96 = arith.constant dense<0.000000e+00> : vector<8x64xf32>
    %212 = tpu.matmul %211, %182, %cst_96 {dimension_numbers = #tpu.dot_dimension_numbers<[1], [0], [0], [1], [0, 0, 1, 1], [], []>} : vector<8x32xf32>, vector<32x64xf32>, vector<8x64xf32> -> vector<8x64xf32>
    %213 = tpu.iota {dimensions = array<i32: 0>} : vector<8x32xi32>
    %214 = tpu.iota {dimensions = array<i32: 1>} : vector<8x32xi32>
    %c4_i32_97 = arith.constant 4 : i32
    %215 = vector.broadcast %c4_i32_97 : i32 to vector<8x32xi32>
    %216 = arith.muli %215, %213 : vector<8x32xi32>
    %c3_i32_98 = arith.constant 3 : i32
    %217 = vector.broadcast %c3_i32_98 : i32 to vector<8x32xi32>
    %218 = arith.addi %216, %217 : vector<8x32xi32>
    %219 = arith.cmpi eq, %214, %218 : vector<8x32xi32>
    %220 = arith.extui %219 : vector<8x32xi1> to vector<8x32xi32>
    %221 = arith.sitofp %220 : vector<8x32xi32> to vector<8x32xf32>
    %cst_99 = arith.constant dense<0.000000e+00> : vector<8x64xf32>
    %222 = tpu.matmul %221, %182, %cst_99 {dimension_numbers = #tpu.dot_dimension_numbers<[1], [0], [0], [1], [0, 0, 1, 1], [], []>} : vector<8x32xf32>, vector<32x64xf32>, vector<8x64xf32> -> vector<8x64xf32>
    %223 = tpu.concatenate %192, %202, %212, %222 in 1 : vector<8x64xf32>, vector<8x64xf32>, vector<8x64xf32>, vector<8x64xf32> -> vector<8x256xf32>
    %c0_100 = arith.constant 0 : index
    %c0_101 = arith.constant 0 : index
    %224 = vector.load %arg6[%c0_100, %c0_101] : memref<256x120xf32, #tpu.memory_space<vmem>>, vector<256x120xf32>
    %cst_102 = arith.constant dense<0.000000e+00> : vector<8x120xf32>
    %225 = tpu.matmul %223, %224, %cst_102 {dimension_numbers = #tpu.dot_dimension_numbers<[1], [0], [0], [1], [0, 0, 1, 1], [], []>} : vector<8x256xf32>, vector<256x120xf32>, vector<8x120xf32> -> vector<8x120xf32>
    %c0_103 = arith.constant 0 : index
    %c0_104 = arith.constant 0 : index
    %226 = vector.load %arg7[%c0_103, %c0_104] : memref<1x120xf32, #tpu.memory_space<vmem>>, vector<1x120xf32>
    %227 = vector.broadcast %226 : vector<1x120xf32> to vector<8x120xf32>
    %228 = arith.addf %225, %227 : vector<8x120xf32>
    %cst_105 = arith.constant 0.000000e+00 : f32
    %229 = vector.broadcast %cst_105 : f32 to vector<8x120xf32>
    %230 = arith.maximumf %228, %229 : vector<8x120xf32>
    %c0_106 = arith.constant 0 : index
    %c0_107 = arith.constant 0 : index
    %231 = vector.load %arg8[%c0_106, %c0_107] : memref<120x84xf32, #tpu.memory_space<vmem>>, vector<120x84xf32>
    %cst_108 = arith.constant dense<0.000000e+00> : vector<8x84xf32>
    %232 = tpu.matmul %230, %231, %cst_108 {dimension_numbers = #tpu.dot_dimension_numbers<[1], [0], [0], [1], [0, 0, 1, 1], [], []>} : vector<8x120xf32>, vector<120x84xf32>, vector<8x84xf32> -> vector<8x84xf32>
    %c0_109 = arith.constant 0 : index
    %c0_110 = arith.constant 0 : index
    %233 = vector.load %arg9[%c0_109, %c0_110] : memref<1x84xf32, #tpu.memory_space<vmem>>, vector<1x84xf32>
    %234 = vector.broadcast %233 : vector<1x84xf32> to vector<8x84xf32>
    %235 = arith.addf %232, %234 : vector<8x84xf32>
    %cst_111 = arith.constant 0.000000e+00 : f32
    %236 = vector.broadcast %cst_111 : f32 to vector<8x84xf32>
    %237 = arith.maximumf %235, %236 : vector<8x84xf32>
    %c0_112 = arith.constant 0 : index
    %c0_113 = arith.constant 0 : index
    %238 = vector.load %arg10[%c0_112, %c0_113] : memref<84x10xf32, #tpu.memory_space<vmem>>, vector<84x10xf32>
    %cst_114 = arith.constant dense<0.000000e+00> : vector<8x10xf32>
    %239 = tpu.matmul %237, %238, %cst_114 {dimension_numbers = #tpu.dot_dimension_numbers<[1], [0], [0], [1], [0, 0, 1, 1], [], []>} : vector<8x84xf32>, vector<84x10xf32>, vector<8x10xf32> -> vector<8x10xf32>
    %c0_115 = arith.constant 0 : index
    %c0_116 = arith.constant 0 : index
    %240 = vector.load %arg11[%c0_115, %c0_116] : memref<1x10xf32, #tpu.memory_space<vmem>>, vector<1x10xf32>
    %241 = vector.broadcast %240 : vector<1x10xf32> to vector<8x10xf32>
    %242 = arith.addf %239, %241 : vector<8x10xf32>
    %cst_117 = arith.constant dense<0xFF800000> : vector<8xf32>
    %243 = vector.multi_reduction <maximumf>, %242, %cst_117 [1] : vector<8x10xf32> to vector<8xf32>
    %244 = vector.shape_cast %243 : vector<8xf32> to vector<8x1xf32>
    %245 = vector.broadcast %244 : vector<8x1xf32> to vector<8x10xf32>
    %246 = arith.subf %242, %245 : vector<8x10xf32>
    %247 = math.exp %246 : vector<8x10xf32>
    %cst_118 = arith.constant dense<0.000000e+00> : vector<8xf32>
    %248 = vector.multi_reduction <add>, %247, %cst_118 [1] : vector<8x10xf32> to vector<8xf32>
    %249 = vector.shape_cast %248 : vector<8xf32> to vector<8x1xf32>
    %250 = vector.broadcast %249 : vector<8x1xf32> to vector<8x10xf32>
    %251 = arith.divf %247, %250 : vector<8x10xf32>
    %c0_119 = arith.constant 0 : index
    %c0_120 = arith.constant 0 : index
    %252 = vector.load %arg12[%c0_119, %c0_120] : memref<8x10xf32, #tpu.memory_space<vmem>>, vector<8x10xf32>
    tpu.vector_store %arg12[%c0_119, %c0_120], %251 {strides = array<i32>} : memref<8x10xf32, #tpu.memory_space<vmem>>, vector<8x10xf32>,
    return
  }
  func.func @transform_0(%arg0: i32) -> (i32, i32, i32) {
    %c0_i32 = arith.constant 0 : i32
    %c0_i32_0 = arith.constant 0 : i32
    %c0_i32_1 = arith.constant 0 : i32
    return %arg0, %c0_i32, %c0_i32_0 : i32, i32, i32
  }
  func.func @transform_1(%arg0: i32) -> (i32, i32, i32) {
    %c0_i32 = arith.constant 0 : i32
    %c0_i32_0 = arith.constant 0 : i32
    %c0_i32_1 = arith.constant 0 : i32
    %c0_i32_2 = arith.constant 0 : i32
    return %c0_i32, %c0_i32_0, %c0_i32_1 : i32, i32, i32
  }
  func.func @transform_2(%arg0: i32) -> (i32, i32) {
    %c0_i32 = arith.constant 0 : i32
    %c0_i32_0 = arith.constant 0 : i32
    %c0_i32_1 = arith.constant 0 : i32
    return %c0_i32, %c0_i32_0 : i32, i32
  }
  func.func @transform_3(%arg0: i32) -> (i32, i32, i32) {
    %c0_i32 = arith.constant 0 : i32
    %c0_i32_0 = arith.constant 0 : i32
    %c0_i32_1 = arith.constant 0 : i32
    %c0_i32_2 = arith.constant 0 : i32
    return %c0_i32, %c0_i32_0, %c0_i32_1 : i32, i32, i32
  }
  func.func @transform_4(%arg0: i32) -> (i32, i32) {
    %c0_i32 = arith.constant 0 : i32
    %c0_i32_0 = arith.constant 0 : i32
    %c0_i32_1 = arith.constant 0 : i32
    return %c0_i32, %c0_i32_0 : i32, i32
  }
  func.func @transform_5(%arg0: i32) -> (i32, i32) {
    %c0_i32 = arith.constant 0 : i32
    %c0_i32_0 = arith.constant 0 : i32
    %c0_i32_1 = arith.constant 0 : i32
    return %c0_i32, %c0_i32_0 : i32, i32
  }
  func.func @transform_6(%arg0: i32) -> (i32, i32) {
    %c0_i32 = arith.constant 0 : i32
    %c0_i32_0 = arith.constant 0 : i32
    %c0_i32_1 = arith.constant 0 : i32
    return %c0_i32, %c0_i32_0 : i32, i32
  }
  func.func @transform_7(%arg0: i32) -> (i32, i32) {
    %c0_i32 = arith.constant 0 : i32
    %c0_i32_0 = arith.constant 0 : i32
    %c0_i32_1 = arith.constant 0 : i32
    return %c0_i32, %c0_i32_0 : i32, i32
  }
  func.func @transform_8(%arg0: i32) -> (i32, i32) {
    %c0_i32 = arith.constant 0 : i32
    %c0_i32_0 = arith.constant 0 : i32
    %c0_i32_1 = arith.constant 0 : i32
    return %c0_i32, %c0_i32_0 : i32, i32
  }
  func.func @transform_9(%arg0: i32) -> (i32, i32) {
    %c0_i32 = arith.constant 0 : i32
    %c0_i32_0 = arith.constant 0 : i32
    %c0_i32_1 = arith.constant 0 : i32
    return %c0_i32, %c0_i32_0 : i32, i32
  }
  func.func @transform_10(%arg0: i32) -> (i32, i32) {
    %c0_i32 = arith.constant 0 : i32
    %c0_i32_0 = arith.constant 0 : i32
    %c0_i32_1 = arith.constant 0 : i32
    return %c0_i32, %c0_i32_0 : i32, i32
  }
  func.func @transform_11(%arg0: i32) -> (i32, i32) {
    %c0_i32 = arith.constant 0 : i32
    %c0_i32_0 = arith.constant 0 : i32
    return %arg0, %c0_i32 : i32, i32
  }
}

</mosaic_0001>

<llo_original>
// kernel: mnist_forward.1
$region0: #{mnist_forward.1}
  #allocation0 [shape = 'u32[]', space=smem, size = 0x4, offset = 0x4, fixed_abs, tag = 'smem constant byte address 0x4 - core index']
  #allocation1 [shape = 'u32[144,128]{1,0:T(1,128)}', space=vmem, size = 0x12000, scoped, tag = 'internal scratch']
  %s0 = inlined_call_operand.vmem [shape: f32[16,28,28], index: 0, kind: input, shape index: {}]
  %s1 = inlined_call_operand.vmem [shape: f32[5,28,144], index: 1, kind: input, shape index: {}]
  %s2 = inlined_call_operand.vmem [shape: f32[1,72], index: 2, kind: input, shape index: {}]
  %s3 = inlined_call_operand.vmem [shape: f32[5,72,128], index: 3, kind: input, shape index: {}]
  %s4 = inlined_call_operand.vmem [shape: f32[1,64], index: 4, kind: input, shape index: {}]
  %s5 = inlined_call_operand.vmem [shape: f32[256,120], index: 5, kind: input, shape index: {}]
  %s6 = inlined_call_operand.vmem [shape: f32[1,120], index: 6, kind: input, shape index: {}]
  %s7 = inlined_call_operand.vmem [shape: f32[120,84], index: 7, kind: input, shape index: {}]
  %s8 = inlined_call_operand.vmem [shape: f32[1,84], index: 8, kind: input, shape index: {}]
  %s9 = inlined_call_operand.vmem [shape: f32[84,10], index: 9, kind: input, shape index: {}]
  %s10 = inlined_call_operand.vmem [shape: f32[1,10], index: 10, kind: input, shape index: {}]
  %s11 = inlined_call_operand.hbm [shape: f32[16,10], index: 11, kind: output, shape index: {}]
  %s12 = sld [smem:[#allocation0]]
  $region77: #{mnist_forward.1} parent=0
    _
  %s14 = ssub.s32 1, %s12
  %s15 = scalar_select 0, %s14, %s12
  $region1: #{mnist_forward.1} parent=0
    #allocation2 [shape = 'u8[8192]{0}', space=vmem, size = 0x2000, scoped, tag = 'output window, operand 0']
    #allocation3 [shape = 's32[2]{0}', space=sflag, size = 0x8, scoped, tag = 'scoped memory for mnist_forward.1']
    %16 = vsyncpa [#allocation3], 0
    %s17 = scalar_lea.sflag [#allocation3], 1
    %18 = vsyncpa %s17, 0
    loop: start=0, step=1, limit=4
    $region2: #{mnist_forward.1} parent=1 // loop_pre_header
      _
    $region3: #{mnist_forward.1} parent=1 // loop_header
      %s20 = sphi 0, %s24
      %p21 = scmp.ge.s32.totalorder %s20, 4
      %s30 = sphi 0, %s32
      %s33 = sphi 0, %s30
      %s34 = sphi 0, %s33
      %s50 = sphi 0, %s34
      %s54 = sphi 0, %s54
      %s56 = sphi 0, %s54
      %s57 = sphi 0, %s56
      %s71 = sphi 0, %s57
      %s75 = sphi 0, %s75
      %s77 = sphi 0, %s75
      %s78 = sphi 0, %s77
      %s92 = sphi 0, %s78
      %s96 = sphi 0, %s96
      %s98 = sphi 0, %s96
      %s99 = sphi 0, %s98
      %s113 = sphi 0, %s99
      %s117 = sphi 0, %s117
      %s119 = sphi 0, %s117
      %s120 = sphi 0, %s119
      %s134 = sphi 0, %s120
      %s138 = sphi 0, %s138
      %s140 = sphi 0, %s138
      %s141 = sphi 0, %s140
      %s155 = sphi 0, %s141
      %s159 = sphi 0, %s159
      %s161 = sphi 0, %s159
      %s162 = sphi 0, %s161
      %s176 = sphi 0, %s162
      %s180 = sphi 0, %s180
      %s182 = sphi 0, %s180
      %s183 = sphi 0, %s182
      %s197 = sphi 0, %s183
      %s201 = sphi 0, %s201
      %s203 = sphi 0, %s201
      %s204 = sphi 0, %s203
      %s218 = sphi 0, %s204
      %s222 = sphi 0, %s222
      %s224 = sphi 0, %s222
      %s225 = sphi 0, %s224
      %s239 = sphi 0, %s225
      %s243 = sphi 0, %s243
      %s245 = sphi 0, %s243
      %s246 = sphi 0, %s245
      %s260 = sphi 0, %s246
      %s266 = sphi 0, %s268
      %s269 = sphi 0, %s266
      %s270 = sphi 0, %s269
      %s286 = sphi 0, %s270
    $region4: #{mnist_forward.1} parent=1 // loop_header_branch
      %23 = sbr.rel (%p21) target = $region8
    $region5: #{mnist_forward.1} parent=1 // loop_body
      %s25 = ssub.s32 %s20, 1
      %s26 = ssub.s32 %s20, 2
      %s27 = sadd.s32 %s20, 1
      %s28 = ssub.s32 %s20, %s27
      %p29 = scmp.eq.s32.totalorder %s28, 0
      %s31 = sadd.s32 %s30, 1
      %s32 = scalar_select %p29, %s30, %s31
      %p35 = pneg %p29
      %p36 = scmp.eq.s32.totalorder %s20, 1
      %p37 = por %p35, %p36
      %p38 = scmp.ne.s32.totalorder %s30, %s33
      %p39 = scmp.eq.s32.totalorder %s20, 0
      %p40 = por %p38, %p39
      %p41 = scmp.ne.s32.totalorder %s30, %s33
      %p42 = scmp.eq.s32.totalorder %s25, 1
      %p43 = por %p41, %p42
      %p44 = scmp.ne.s32.totalorder %s33, %s34
      %p45 = scmp.eq.s32.totalorder %s25, 0
      %p46 = por %p44, %p45
      %p47 = scmp.ne.s32.totalorder %s33, %s34
      %p48 = scmp.eq.s32.totalorder %s26, 1
      %p49 = por %p47, %p48
      %p51 = scmp.ne.s32.totalorder %s34, %s50
      %p52 = scmp.eq.s32.totalorder %s26, 0
      %p53 = por %p51, %p52
      %s55 = sadd.s32 %s54, 1
      %p58 = scmp.eq.s32.totalorder %s20, 1
      %p59 = scmp.ne.s32.totalorder %s54, %s56
      %p60 = scmp.eq.s32.totalorder %s20, 0
      %p61 = por %p59, %p60
      %p62 = scmp.ne.s32.totalorder %s54, %s56
      %p63 = scmp.eq.s32.totalorder %s25, 1
      %p64 = por %p62, %p63
      %p65 = scmp.ne.s32.totalorder %s56, %s57
      %p66 = scmp.eq.s32.totalorder %s25, 0
      %p67 = por %p65, %p66
      %p68 = scmp.ne.s32.totalorder %s56, %s57
      %p69 = scmp.eq.s32.totalorder %s26, 1
      %p70 = por %p68, %p69
      %p72 = scmp.ne.s32.totalorder %s57, %s71
      %p73 = scmp.eq.s32.totalorder %s26, 0
      %p74 = por %p72, %p73
      %s76 = sadd.s32 %s75, 1
      %p79 = scmp.eq.s32.totalorder %s20, 1
      %p80 = scmp.ne.s32.totalorder %s75, %s77
      %p81 = scmp.eq.s32.totalorder %s20, 0
      %p82 = por %p80, %p81
      %p83 = scmp.ne.s32.totalorder %s75, %s77
      %p84 = scmp.eq.s32.totalorder %s25, 1
      %p85 = por %p83, %p84
      %p86 = scmp.ne.s32.totalorder %s77, %s78
      %p87 = scmp.eq.s32.totalorder %s25, 0
      %p88 = por %p86, %p87
      %p89 = scmp.ne.s32.totalorder %s77, %s78
      %p90 = scmp.eq.s32.totalorder %s26, 1
      %p91 = por %p89, %p90
      %p93 = scmp.ne.s32.totalorder %s78, %s92
      %p94 = scmp.eq.s32.totalorder %s26, 0
      %p95 = por %p93, %p94
      %s97 = sadd.s32 %s96, 1
      %p100 = scmp.eq.s32.totalorder %s20, 1
      %p101 = scmp.ne.s32.totalorder %s96, %s98
      %p102 = scmp.eq.s32.totalorder %s20, 0
      %p103 = por %p101, %p102
      %p104 = scmp.ne.s32.totalorder %s96, %s98
      %p105 = scmp.eq.s32.totalorder %s25, 1
      %p106 = por %p104, %p105
      %p107 = scmp.ne.s32.totalorder %s98, %s99
      %p108 = scmp.eq.s32.totalorder %s25, 0
      %p109 = por %p107, %p108
      %p110 = scmp.ne.s32.totalorder %s98, %s99
      %p111 = scmp.eq.s32.totalorder %s26, 1
      %p112 = por %p110, %p111
      %p114 = scmp.ne.s32.totalorder %s99, %s113
      %p115 = scmp.eq.s32.totalorder %s26, 0
      %p116 = por %p114, %p115
      %s118 = sadd.s32 %s117, 1
      %p121 = scmp.eq.s32.totalorder %s20, 1
      %p122 = scmp.ne.s32.totalorder %s117, %s119
      %p123 = scmp.eq.s32.totalorder %s20, 0
      %p124 = por %p122, %p123
      %p125 = scmp.ne.s32.totalorder %s117, %s119
      %p126 = scmp.eq.s32.totalorder %s25, 1
      %p127 = por %p125, %p126
      %p128 = scmp.ne.s32.totalorder %s119, %s120
      %p129 = scmp.eq.s32.totalorder %s25, 0
      %p130 = por %p128, %p129
      %p131 = scmp.ne.s32.totalorder %s119, %s120
      %p132 = scmp.eq.s32.totalorder %s26, 1
      %p133 = por %p131, %p132
      %p135 = scmp.ne.s32.totalorder %s120, %s134
      %p136 = scmp.eq.s32.totalorder %s26, 0
      %p137 = por %p135, %p136
      %s139 = sadd.s32 %s138, 1
      %p142 = scmp.eq.s32.totalorder %s20, 1
      %p143 = scmp.ne.s32.totalorder %s138, %s140
      %p144 = scmp.eq.s32.totalorder %s20, 0
      %p145 = por %p143, %p144
      %p146 = scmp.ne.s32.totalorder %s138, %s140
      %p147 = scmp.eq.s32.totalorder %s25, 1
      %p148 = por %p146, %p147
      %p149 = scmp.ne.s32.totalorder %s140, %s141
      %p150 = scmp.eq.s32.totalorder %s25, 0
      %p151 = por %p149, %p150
      %p152 = scmp.ne.s32.totalorder %s140, %s141
      %p153 = scmp.eq.s32.totalorder %s26, 1
      %p154 = por %p152, %p153
      %p156 = scmp.ne.s32.totalorder %s141, %s155
      %p157 = scmp.eq.s32.totalorder %s26, 0
      %p158 = por %p156, %p157
      %s160 = sadd.s32 %s159, 1
      %p163 = scmp.eq.s32.totalorder %s20, 1
      %p164 = scmp.ne.s32.totalorder %s159, %s161
      %p165 = scmp.eq.s32.totalorder %s20, 0
      %p166 = por %p164, %p165
      %p167 = scmp.ne.s32.totalorder %s159, %s161
      %p168 = scmp.eq.s32.totalorder %s25, 1
      %p169 = por %p167, %p168
      %p170 = scmp.ne.s32.totalorder %s161, %s162
      %p171 = scmp.eq.s32.totalorder %s25, 0
      %p172 = por %p170, %p171
      %p173 = scmp.ne.s32.totalorder %s161, %s162
      %p174 = scmp.eq.s32.totalorder %s26, 1
      %p175 = por %p173, %p174
      %p177 = scmp.ne.s32.totalorder %s162, %s176
      %p178 = scmp.eq.s32.totalorder %s26, 0
      %p179 = por %p177, %p178
      %s181 = sadd.s32 %s180, 1
      %p184 = scmp.eq.s32.totalorder %s20, 1
      %p185 = scmp.ne.s32.totalorder %s180, %s182
      %p186 = scmp.eq.s32.totalorder %s20, 0
      %p187 = por %p185, %p186
      %p188 = scmp.ne.s32.totalorder %s180, %s182
      %p189 = scmp.eq.s32.totalorder %s25, 1
      %p190 = por %p188, %p189
      %p191 = scmp.ne.s32.totalorder %s182, %s183
      %p192 = scmp.eq.s32.totalorder %s25, 0
      %p193 = por %p191, %p192
      %p194 = scmp.ne.s32.totalorder %s182, %s183
      %p195 = scmp.eq.s32.totalorder %s26, 1
      %p196 = por %p194, %p195
      %p198 = scmp.ne.s32.totalorder %s183, %s197
      %p199 = scmp.eq.s32.totalorder %s26, 0
      %p200 = por %p198, %p199
      %s202 = sadd.s32 %s201, 1
      %p205 = scmp.eq.s32.totalorder %s20, 1
      %p206 = scmp.ne.s32.totalorder %s201, %s203
      %p207 = scmp.eq.s32.totalorder %s20, 0
      %p208 = por %p206, %p207
      %p209 = scmp.ne.s32.totalorder %s201, %s203
      %p210 = scmp.eq.s32.totalorder %s25, 1
      %p211 = por %p209, %p210
      %p212 = scmp.ne.s32.totalorder %s203, %s204
      %p213 = scmp.eq.s32.totalorder %s25, 0
      %p214 = por %p212, %p213
      %p215 = scmp.ne.s32.totalorder %s203, %s204
      %p216 = scmp.eq.s32.totalorder %s26, 1
      %p217 = por %p215, %p216
      %p219 = scmp.ne.s32.totalorder %s204, %s218
      %p220 = scmp.eq.s32.totalorder %s26, 0
      %p221 = por %p219, %p220
      %s223 = sadd.s32 %s222, 1
      %p226 = scmp.eq.s32.totalorder %s20, 1
      %p227 = scmp.ne.s32.totalorder %s222, %s224
      %p228 = scmp.eq.s32.totalorder %s20, 0
      %p229 = por %p227, %p228
      %p230 = scmp.ne.s32.totalorder %s222, %s224
      %p231 = scmp.eq.s32.totalorder %s25, 1
      %p232 = por %p230, %p231
      %p233 = scmp.ne.s32.totalorder %s224, %s225
      %p234 = scmp.eq.s32.totalorder %s25, 0
      %p235 = por %p233, %p234
      %p236 = scmp.ne.s32.totalorder %s224, %s225
      %p237 = scmp.eq.s32.totalorder %s26, 1
      %p238 = por %p236, %p237
      %p240 = scmp.ne.s32.totalorder %s225, %s239
      %p241 = scmp.eq.s32.totalorder %s26, 0
      %p242 = por %p240, %p241
      %s244 = sadd.s32 %s243, 1
      %p247 = scmp.eq.s32.totalorder %s20, 1
      %p248 = scmp.ne.s32.totalorder %s243, %s245
      %p249 = scmp.eq.s32.totalorder %s20, 0
      %p250 = por %p248, %p249
      %p251 = scmp.ne.s32.totalorder %s243, %s245
      %p252 = scmp.eq.s32.totalorder %s25, 1
      %p253 = por %p251, %p252
      %p254 = scmp.ne.s32.totalorder %s245, %s246
      %p255 = scmp.eq.s32.totalorder %s25, 0
      %p256 = por %p254, %p255
      %p257 = scmp.ne.s32.totalorder %s245, %s246
      %p258 = scmp.eq.s32.totalorder %s26, 1
      %p259 = por %p257, %p258
      %p261 = scmp.ne.s32.totalorder %s246, %s260
      %p262 = scmp.eq.s32.totalorder %s26, 0
      %p263 = por %p261, %p262
      %s264 = ssub.s32 %s20, %s27
      %p265 = scmp.eq.s32.totalorder %s264, 0
      %s267 = sadd.s32 %s266, 1
      %s268 = scalar_select %p265, %s266, %s267
      %p271 = pneg %p265
      %p272 = scmp.eq.s32.totalorder %s20, 1
      %p273 = por %p271, %p272
      %p274 = scmp.ne.s32.totalorder %s266, %s269
      %p275 = scmp.eq.s32.totalorder %s20, 0
      %p276 = por %p274, %p275
      %p277 = scmp.ne.s32.totalorder %s266, %s269
      %p278 = scmp.eq.s32.totalorder %s25, 1
      %p279 = por %p277, %p278
      %p280 = scmp.ne.s32.totalorder %s269, %s270
      %p281 = scmp.eq.s32.totalorder %s25, 0
      %p282 = por %p280, %p281
      %p283 = scmp.ne.s32.totalorder %s269, %s270
      %p284 = scmp.eq.s32.totalorder %s26, 1
      %p285 = por %p283, %p284
      %p287 = scmp.ne.s32.totalorder %s270, %s286
      %p288 = scmp.eq.s32.totalorder %s26, 0
      %p289 = por %p287, %p288
      %p290 = scmp.le.s32.totalorder 1, %s20
      %p291 = scmp.lt.s32.totalorder %s20, 3
      %p292 = pnand %p290, %p291
      %p293 = pneg %p292
      // Predicated region
      $region9: #{mnist_forward.1} parent=5 // pred_check
        _
      $region10: #{mnist_forward.1} parent=5 // pred_check_branch
        %295 = sbr.rel (%p292) target = $region12
      $region11: #{mnist_forward.1} parent=5 // pred_region
        %s296 = ssub.s32 %s20, 1
        // Predicated region
        $region13: #{mnist_forward.1} parent=11 // pred_check
          %p297 = pneg %p67
        $region14: #{mnist_forward.1} parent=11 // pred_check_branch
          %299 = sbr.rel (%p297) target = $region16
        $region15: #{mnist_forward.1} parent=11 // pred_region
          _
        $region16: #{mnist_forward.1} parent=11 // pred_fallthru
          _
        // Predicated region
        $region17: #{mnist_forward.1} parent=11 // pred_check
          %p300 = pneg %p88
        $region18: #{mnist_forward.1} parent=11 // pred_check_branch
          %302 = sbr.rel (%p300) target = $region20
        $region19: #{mnist_forward.1} parent=11 // pred_region
          _
        $region20: #{mnist_forward.1} parent=11 // pred_fallthru
          _
        // Predicated region
        $region21: #{mnist_forward.1} parent=11 // pred_check
          %p303 = pneg %p109
        $region22: #{mnist_forward.1} parent=11 // pred_check_branch
          %305 = sbr.rel (%p303) target = $region24
        $region23: #{mnist_forward.1} parent=11 // pred_region
          _
        $region24: #{mnist_forward.1} parent=11 // pred_fallthru
          _
        // Predicated region
        $region25: #{mnist_forward.1} parent=11 // pred_check
          %p306 = pneg %p130
        $region26: #{mnist_forward.1} parent=11 // pred_check_branch
          %308 = sbr.rel (%p306) target = $region28
        $region27: #{mnist_forward.1} parent=11 // pred_region
          _
        $region28: #{mnist_forward.1} parent=11 // pred_fallthru
          _
        // Predicated region
        $region29: #{mnist_forward.1} parent=11 // pred_check
          %p309 = pneg %p151
        $region30: #{mnist_forward.1} parent=11 // pred_check_branch
          %311 = sbr.rel (%p309) target = $region32
        $region31: #{mnist_forward.1} parent=11 // pred_region
          _
        $region32: #{mnist_forward.1} parent=11 // pred_fallthru
          _
        // Predicated region
        $region33: #{mnist_forward.1} parent=11 // pred_check
          %p312 = pneg %p172
        $region34: #{mnist_forward.1} parent=11 // pred_check_branch
          %314 = sbr.rel (%p312) target = $region36
        $region35: #{mnist_forward.1} parent=11 // pred_region
          _
        $region36: #{mnist_forward.1} parent=11 // pred_fallthru
          _
        // Predicated region
        $region37: #{mnist_forward.1} parent=11 // pred_check
          %p315 = pneg %p193
        $region38: #{mnist_forward.1} parent=11 // pred_check_branch
          %317 = sbr.rel (%p315) target = $region40
        $region39: #{mnist_forward.1} parent=11 // pred_region
          _
        $region40: #{mnist_forward.1} parent=11 // pred_fallthru
          _
        // Predicated region
        $region41: #{mnist_forward.1} parent=11 // pred_check
          %p318 = pneg %p214
        $region42: #{mnist_forward.1} parent=11 // pred_check_branch
          %320 = sbr.rel (%p318) target = $region44
        $region43: #{mnist_forward.1} parent=11 // pred_region
          _
        $region44: #{mnist_forward.1} parent=11 // pred_fallthru
          _
        // Predicated region
        $region45: #{mnist_forward.1} parent=11 // pred_check
          %p321 = pneg %p235
        $region46: #{mnist_forward.1} parent=11 // pred_check_branch
          %323 = sbr.rel (%p321) target = $region48
        $region47: #{mnist_forward.1} parent=11 // pred_region
          _
        $region48: #{mnist_forward.1} parent=11 // pred_fallthru
          _
        // Predicated region
        $region49: #{mnist_forward.1} parent=11 // pred_check
          %p324 = pneg %p256
        $region50: #{mnist_forward.1} parent=11 // pred_check_branch
          %326 = sbr.rel (%p324) target = $region52
        $region51: #{mnist_forward.1} parent=11 // pred_region
          _
        $region52: #{mnist_forward.1} parent=11 // pred_fallthru
          _
      $region12: #{mnist_forward.1} parent=5 // pred_fallthru
        _
      %p327 = scmp.lt.s32.totalorder %s20, 2
      // Predicated region
      $region53: #{mnist_forward.1} parent=5 // pred_check
        %p328 = pneg %p327
      $region54: #{mnist_forward.1} parent=5 // pred_check_branch
        %330 = sbr.rel (%p328) target = $region56
      $region55: #{mnist_forward.1} parent=5 // pred_region
        // Predicated region
        $region57: #{mnist_forward.1} parent=55 // pred_check
          %p331 = pneg %p40
        $region58: #{mnist_forward.1} parent=55 // pred_check_branch
          %333 = sbr.rel (%p331) target = $region60
        $region59: #{mnist_forward.1} parent=55 // pred_region
          %s334 = smul.u32 8, %s20
          %p335 = scmp.lt.s32.totalorder %s334, 15
          %s336 = scalar_select %p335, %s334, 15
          %s337 = smul.addr %s336, 4
          %s338 = smul.addr %s337, 8
          %s339 = scalar_lea.vmem %s0, %s338
          %s340 = smul.u32 8, %s20
        $region60: #{mnist_forward.1} parent=55 // pred_fallthru
          _
      $region56: #{mnist_forward.1} parent=5 // pred_fallthru
        _
      %p341 = scmp.le.s32.totalorder 1, %s20
      %p342 = scmp.lt.s32.totalorder %s20, 3
      %p343 = pnand %p341, %p342
      %p344 = pneg %p343
      // Predicated region
      $region61: #{mnist_forward.1} parent=5 // pred_check
        _
      $region62: #{mnist_forward.1} parent=5 // pred_check_branch
        %346 = sbr.rel (%p343) target = $region64
      $region63: #{mnist_forward.1} parent=5 // pred_region
        %s347 = ssub.s32 %s20, 1
        %s348 = smul.u32 8, %s25
        %p349 = scmp.lt.s32.totalorder %s348, 15
        %s350 = scalar_select %p349, %s348, 15
        %s351 = smul.addr %s350, 4
        %s352 = smul.addr %s351, 8
        %s353 = scalar_lea.vmem %s0, %s352
        %p354 = pneg %p46
        %p355 = pneg %p43
        %p356 = pneg %p67
        %p357 = pneg %p64
        %p358 = pneg %p88
        %p359 = pneg %p85
        %p360 = pneg %p109
        %p361 = pneg %p106
        %p362 = pneg %p130
        %p363 = pneg %p127
        %p364 = pneg %p151
        %p365 = pneg %p148
        %p366 = pneg %p172
        %p367 = pneg %p169
        %p368 = pneg %p193
        %p369 = pneg %p190
        %p370 = pneg %p214
        %p371 = pneg %p211
        %p372 = pneg %p235
        %p373 = pneg %p232
        %p374 = pneg %p256
        %p375 = pneg %p253
        %p376 = pneg %p282
        %p377 = pneg %p279
        %s378 = sand.u32 %s269, 1
        %s379 = scalar_lea.sflag [#allocation3], %s378
        %s380 = sand.u32 %s269, 1
        %s381 = smul.addr %s380, 8
        %s382 = scalar_lea.vmem [#allocation2], %s381
        %s383 = smul.u32 8, %s25
        %p384 = scmp.lt.s32.totalorder %s383, 15
        %s385 = scalar_select %p384, %s383, 15
        %s386 = smul.addr %s385, 4
        %s387 = smul.addr %s386, 8
        %s388 = scalar_lea.vmem %s0, %s387
        %s389 = smul.u32 8, %s25
        %v390 = vld [vmem:[%s388] sm:$0xff]
        %v391 = vld [vmem:[%s388 + $0x8] sm:$0xff]
        %v392 = vld [vmem:[%s388 + $0x10] sm:$0xff]
        %v393 = vld [vmem:[%s388 + $0x20] sm:$0xff]
        %v394 = vld [vmem:[%s388 + $0x28] sm:$0xff]
        %v395 = vld [vmem:[%s388 + $0x30] sm:$0xff]
        %v396 = vld [vmem:[%s388 + $0x40] sm:$0xff]
        %v397 = vld [vmem:[%s388 + $0x48] sm:$0xff]
        %v398 = vld [vmem:[%s388 + $0x50] sm:$0xff]
        %v399 = vld [vmem:[%s388 + $0x60] sm:$0xff]
        %v400 = vld [vmem:[%s388 + $0x68] sm:$0xff]
        %v401 = vld [vmem:[%s388 + $0x70] sm:$0xff]
        %v402 = vld [vmem:[%s388 + $0x80] sm:$0xff]
        %v403 = vld [vmem:[%s388 + $0x88] sm:$0xff]
        %v404 = vld [vmem:[%s388 + $0x90] sm:$0xff]
        %v405 = vld [vmem:[%s388 + $0xa0] sm:$0xff]
        %v406 = vld [vmem:[%s388 + $0xa8] sm:$0xff]
        %v407 = vld [vmem:[%s388 + $0xb0] sm:$0xff]
        %v408 = vld [vmem:[%s388 + $0xc0] sm:$0xff]
        %v409 = vld [vmem:[%s388 + $0xc8] sm:$0xff]
        %v410 = vld [vmem:[%s388 + $0xd0] sm:$0xff]
        %v411 = vld [vmem:[%s388 + $0xe0] sm:$0xff]
        %v412 = vld [vmem:[%s388 + $0xe8] sm:$0xff]
        %v413 = vld [vmem:[%s388 + $0xf0] sm:$0xff]
        %v414 = vld [vmem:[%s1] sm:$0xff]
        %v415 = vld [vmem:[%s1 + $0x8] sm:$0xff]
        %v416 = vld [vmem:[%s1 + $0x10] sm:$0xff]
        %v417 = vld [vmem:[%s1 + $0x18] sm:$0xff]
        %v418 = vld [vmem:[%s1 + $0x20] sm:$0xff]
        %v419 = vld [vmem:[%s1 + $0x28] sm:$0xff]
        %v420 = vld [vmem:[%s1 + $0x30] sm:$0xf]
        %v421 = vld [vmem:[%s1 + $0x38] sm:$0xf]
        %v422 = vld [vmem:[%s388 + $0x1] sm:$0xff]
        %v423 = vld [vmem:[%s388 + $0x9] sm:$0xff]
        %v424 = vld [vmem:[%s388 + $0x11] sm:$0xff]
        %v425 = vld [vmem:[%s388 + $0x21] sm:$0xff]
        %v426 = vld [vmem:[%s388 + $0x29] sm:$0xff]
        %v427 = vld [vmem:[%s388 + $0x31] sm:$0xff]
        %v428 = vld [vmem:[%s388 + $0x41] sm:$0xff]
        %v429 = vld [vmem:[%s388 + $0x49] sm:$0xff]
        %v430 = vld [vmem:[%s388 + $0x51] sm:$0xff]
        %v431 = vld [vmem:[%s388 + $0x61] sm:$0xff]
        %v432 = vld [vmem:[%s388 + $0x69] sm:$0xff]
        %v433 = vld [vmem:[%s388 + $0x71] sm:$0xff]
        %v434 = vld [vmem:[%s388 + $0x81] sm:$0xff]
        %v435 = vld [vmem:[%s388 + $0x89] sm:$0xff]
        %v436 = vld [vmem:[%s388 + $0x91] sm:$0xff]
        %v437 = vld [vmem:[%s388 + $0xa1] sm:$0xff]
        %v438 = vld [vmem:[%s388 + $0xa9] sm:$0xff]
        %v439 = vld [vmem:[%s388 + $0xb1] sm:$0xff]
        %v440 = vld [vmem:[%s388 + $0xc1] sm:$0xff]
        %v441 = vld [vmem:[%s388 + $0xc9] sm:$0xff]
        %v442 = vld [vmem:[%s388 + $0xd1] sm:$0xff]
        %v443 = vld [vmem:[%s388 + $0xe1] sm:$0xff]
        %v444 = vld [vmem:[%s388 + $0xe9] sm:$0xff]
        %v445 = vld [vmem:[%s388 + $0xf1] sm:$0xff]
        %s446 = scalar_lea.vmem %s1, 64
        %v447 = vld [vmem:[%s446] sm:$0xff]
        %v448 = vld [vmem:[%s446 + $0x8] sm:$0xff]
        %v449 = vld [vmem:[%s446 + $0x10] sm:$0xff]
        %v450 = vld [vmem:[%s446 + $0x18] sm:$0xff]
        %v451 = vld [vmem:[%s446 + $0x20] sm:$0xff]
        %v452 = vld [vmem:[%s446 + $0x28] sm:$0xff]
        %v453 = vld [vmem:[%s446 + $0x30] sm:$0xf]
        %v454 = vld [vmem:[%s446 + $0x38] sm:$0xf]
        %vm455 = vcmask 228352
        %v457 = vsel %vm455, %v422, 0
        %v460 = vsel %vm455, %v423, 0
        %v463 = vsel %vm455, %v424, 0
        %v466 = vsel %vm455, %v425, 0
        %v469 = vsel %vm455, %v426, 0
        %v472 = vsel %vm455, %v427, 0
        %v475 = vsel %vm455, %v428, 0
        %v478 = vsel %vm455, %v429, 0
        %v481 = vsel %vm455, %v430, 0
        %v484 = vsel %vm455, %v431, 0
        %v487 = vsel %vm455, %v432, 0
        %v490 = vsel %vm455, %v433, 0
        %v493 = vsel %vm455, %v434, 0
        %v496 = vsel %vm455, %v435, 0
        %v499 = vsel %vm455, %v436, 0
        %v502 = vsel %vm455, %v437, 0
        %v505 = vsel %vm455, %v438, 0
        %v508 = vsel %vm455, %v439, 0
        %v511 = vsel %vm455, %v440, 0
        %v514 = vsel %vm455, %v441, 0
        %v517 = vsel %vm455, %v442, 0
        %v520 = vsel %vm455, %v443, 0
        %v523 = vsel %vm455, %v444, 0
        %v526 = vsel %vm455, %v445, 0
        %vm528 = vcmask 1043456
        %v530 = vsel %vm528, %v453, 0
        %v533 = vsel %vm528, %v454, 0
        %535 = vmatprep.subr.mxu0 0.0
        %536 = vmatpush1.msra.mxu0 0.0
        %537 = vmatprep.subr.mxu0 0.0
        %538 = vmatpush1.msra.mxu0 0.0
        %539 = vmatprep.subr.mxu0 0.0
        %540 = vmatpush1.msra.mxu0 0.0
        %541 = vmatprep.subr.mxu0 0.0
        %542 = vmatpush1.msra.mxu0 0.0
        %543 = vmatprep.subr.mxu0 0.0
        %544 = vmatpush1.msra.mxu0 0.0
        %545 = vmatprep.subr.mxu0 0.0
        %546 = vmatpush1.msra.mxu0 0.0
        %547 = vmatprep.subr.mxu0 0.0
        %548 = vmatpush1.msra.mxu0 0.0
        %549 = vmatprep.subr.mxu0 0.0
        %550 = vmatpush1.msra.mxu0 0.0
        %551 = vmatprep.subr.mxu0 0.0
        %552 = vmatpush1.msra.mxu0 0.0
        %553 = vmatprep.subr.mxu0 0.0
        %554 = vmatpush1.msra.mxu0 0.0
        %555 = vmatprep.subr.mxu0 0.0
        %556 = vmatpush1.msra.mxu0 0.0
        %557 = vmatprep.subr.mxu0 0.0
        %558 = vmatpush1.msra.mxu0 0.0
        %559 = vmatprep.subr.mxu0 %v533
        %560 = vmatpush1.msra.mxu0 %v530
        %561 = vmatprep.subr.mxu0 %v452
        %562 = vmatpush1.msra.mxu0 %v451
        %563 = vmatprep.subr.mxu0 %v450
        %564 = vmatpush1.msra.mxu0 %v449
        %565 = vmatprep.subr.mxu0 %v448
        %566 = vmatpush1.msra.mxu0 %v447
        %567 = vmatprep.subr.mxu0 0.0
        %568 = vmatpush2.msra.mxu0 0.0
        %569 = vmatprep.subr.mxu0 0.0
        %570 = vmatpush2.msra.mxu0 0.0
        %571 = vmatprep.subr.mxu0 0.0
        %572 = vmatpush2.msra.mxu0 0.0
        %573 = vmatprep.subr.mxu0 0.0
        %574 = vmatpush2.msra.mxu0 0.0
        %575 = vmatprep.subr.mxu0 0.0
        %576 = vmatpush2.msra.mxu0 0.0
        %577 = vmatprep.subr.mxu0 0.0
        %578 = vmatpush2.msra.mxu0 0.0
        %579 = vmatprep.subr.mxu0 0.0
        %580 = vmatpush2.msra.mxu0 0.0
        %581 = vmatprep.subr.mxu0 0.0
        %582 = vmatpush2.msra.mxu0 0.0
        %583 = vmatprep.subr.mxu0 0.0
        %584 = vmatpush2.msra.mxu0 0.0
        %585 = vmatprep.subr.mxu0 0.0
        %586 = vmatpush2.msra.mxu0 0.0
        %587 = vmatprep.subr.mxu0 0.0
        %588 = vmatpush2.msra.mxu0 0.0
        %589 = vmatprep.subr.mxu0 0.0
        %590 = vmatpush2.msra.mxu0 0.0
        %591 = vmatprep.subr.mxu0 0.0
        %592 = vmatpush2.msra.mxu0 0.0
        %593 = vmatprep.subr.mxu0 0.0
        %594 = vmatpush2.msra.mxu0 0.0
        %595 = vmatprep.subr.mxu0 0.0
        %596 = vmatpush2.msra.mxu0 0.0
        %597 = vmatprep.subr.mxu0 0.0
        %598 = vmatpush2.msra.mxu0 0.0
        %599 = vmatprep.mubr.f32.mxu0 0.0
        %600 = vmatmul.mubr.f32.gmra.mxu0 %v457
        %v601 = vpop.f32.mrf.mxu0
        %v602 = vadd.f32 0.0, %v601
        %v603 = vpop.f32.mrf.mxu0
        %v604 = vadd.f32 0.0, %v603
        %605 = vmatprep.mubr.f32.mxu0 0.0
        %606 = vmatmul.mubr.f32.gmra.mxu0 %v460
        %v607 = vpop.f32.mrf.mxu0
        %v608 = vadd.f32 0.0, %v607
        %v609 = vpop.f32.mrf.mxu0
        %v610 = vadd.f32 0.0, %v609
        %611 = vmatprep.mubr.f32.mxu0 0.0
        %612 = vmatmul.mubr.f32.gmra.mxu0 %v463
        %v613 = vpop.f32.mrf.mxu0
        %v614 = vadd.f32 0.0, %v613
        %v615 = vpop.f32.mrf.mxu0
        %v616 = vadd.f32 0.0, %v615
        %617 = vmatprep.mubr.f32.mxu0 0.0
        %618 = vmatmul.mubr.f32.gmra.mxu0 %v466
        %v619 = vpop.f32.mrf.mxu0
        %v620 = vadd.f32 0.0, %v619
        %v621 = vpop.f32.mrf.mxu0
        %v622 = vadd.f32 0.0, %v621
        %623 = vmatprep.mubr.f32.mxu0 0.0
        %624 = vmatmul.mubr.f32.gmra.mxu0 %v469
        %v625 = vpop.f32.mrf.mxu0
        %v626 = vadd.f32 0.0, %v625
        %v627 = vpop.f32.mrf.mxu0
        %v628 = vadd.f32 0.0, %v627
        %629 = vmatprep.mubr.f32.mxu0 0.0
        %630 = vmatmul.mubr.f32.gmra.mxu0 %v472
        %v631 = vpop.f32.mrf.mxu0
        %v632 = vadd.f32 0.0, %v631
        %v633 = vpop.f32.mrf.mxu0
        %v634 = vadd.f32 0.0, %v633
        %635 = vmatprep.mubr.f32.mxu0 0.0
        %636 = vmatmul.mubr.f32.gmra.mxu0 %v475
        %v637 = vpop.f32.mrf.mxu0
        %v638 = vadd.f32 0.0, %v637
        %v639 = vpop.f32.mrf.mxu0
        %v640 = vadd.f32 0.0, %v639
        %641 = vmatprep.mubr.f32.mxu0 0.0
        %642 = vmatmul.mubr.f32.gmra.mxu0 %v478
        %v643 = vpop.f32.mrf.mxu0
        %v644 = vadd.f32 0.0, %v643
        %v645 = vpop.f32.mrf.mxu0
        %v646 = vadd.f32 0.0, %v645
        %647 = vmatprep.mubr.f32.mxu0 0.0
        %648 = vmatmul.mubr.f32.gmra.mxu0 %v481
        %v649 = vpop.f32.mrf.mxu0
        %v650 = vadd.f32 0.0, %v649
        %v651 = vpop.f32.mrf.mxu0
        %v652 = vadd.f32 0.0, %v651
        %653 = vmatprep.mubr.f32.mxu0 0.0
        %654 = vmatmul.mubr.f32.gmra.mxu0 %v484
        %v655 = vpop.f32.mrf.mxu0
        %v656 = vadd.f32 0.0, %v655
        %v657 = vpop.f32.mrf.mxu0
        %v658 = vadd.f32 0.0, %v657
        %659 = vmatprep.mubr.f32.mxu0 0.0
        %660 = vmatmul.mubr.f32.gmra.mxu0 %v487
        %v661 = vpop.f32.mrf.mxu0
        %v662 = vadd.f32 0.0, %v661
        %v663 = vpop.f32.mrf.mxu0
        %v664 = vadd.f32 0.0, %v663
        %665 = vmatprep.mubr.f32.mxu0 0.0
        %666 = vmatmul.mubr.f32.gmra.mxu0 %v490
        %v667 = vpop.f32.mrf.mxu0
        %v668 = vadd.f32 0.0, %v667
        %v669 = vpop.f32.mrf.mxu0
        %v670 = vadd.f32 0.0, %v669
        %671 = vmatprep.mubr.f32.mxu0 0.0
        %672 = vmatmul.mubr.f32.gmra.mxu0 %v493
        %v673 = vpop.f32.mrf.mxu0
        %v674 = vadd.f32 0.0, %v673
        %v675 = vpop.f32.mrf.mxu0
        %v676 = vadd.f32 0.0, %v675
        %677 = vmatprep.mubr.f32.mxu0 0.0
        %678 = vmatmul.mubr.f32.gmra.mxu0 %v496
        %v679 = vpop.f32.mrf.mxu0
        %v680 = vadd.f32 0.0, %v679
        %v681 = vpop.f32.mrf.mxu0
        %v682 = vadd.f32 0.0, %v681
        %683 = vmatprep.mubr.f32.mxu0 0.0
        %684 = vmatmul.mubr.f32.gmra.mxu0 %v499
        %v685 = vpop.f32.mrf.mxu0
        %v686 = vadd.f32 0.0, %v685
        %v687 = vpop.f32.mrf.mxu0
        %v688 = vadd.f32 0.0, %v687
        %689 = vmatprep.mubr.f32.mxu0 0.0
        %690 = vmatmul.mubr.f32.gmra.mxu0 %v502
        %v691 = vpop.f32.mrf.mxu0
        %v692 = vadd.f32 0.0, %v691
        %v693 = vpop.f32.mrf.mxu0
        %v694 = vadd.f32 0.0, %v693
        %695 = vmatprep.mubr.f32.mxu0 0.0
        %696 = vmatmul.mubr.f32.gmra.mxu0 %v505
        %v697 = vpop.f32.mrf.mxu0
        %v698 = vadd.f32 0.0, %v697
        %v699 = vpop.f32.mrf.mxu0
        %v700 = vadd.f32 0.0, %v699
        %701 = vmatprep.mubr.f32.mxu0 0.0
        %702 = vmatmul.mubr.f32.gmra.mxu0 %v508
        %v703 = vpop.f32.mrf.mxu0
        %v704 = vadd.f32 0.0, %v703
        %v705 = vpop.f32.mrf.mxu0
        %v706 = vadd.f32 0.0, %v705
        %707 = vmatprep.mubr.f32.mxu0 0.0
        %708 = vmatmul.mubr.f32.gmra.mxu0 %v511
        %v709 = vpop.f32.mrf.mxu0
        %v710 = vadd.f32 0.0, %v709
        %v711 = vpop.f32.mrf.mxu0
        %v712 = vadd.f32 0.0, %v711
        %713 = vmatprep.mubr.f32.mxu0 0.0
        %714 = vmatmul.mubr.f32.gmra.mxu0 %v514
        %v715 = vpop.f32.mrf.mxu0
        %v716 = vadd.f32 0.0, %v715
        %v717 = vpop.f32.mrf.mxu0
        %v718 = vadd.f32 0.0, %v717
        %719 = vmatprep.mubr.f32.mxu0 0.0
        %720 = vmatmul.mubr.f32.gmra.mxu0 %v517
        %v721 = vpop.f32.mrf.mxu0
        %v722 = vadd.f32 0.0, %v721
        %v723 = vpop.f32.mrf.mxu0
        %v724 = vadd.f32 0.0, %v723
        %725 = vmatprep.mubr.f32.mxu0 0.0
        %726 = vmatmul.mubr.f32.gmra.mxu0 %v520
        %v727 = vpop.f32.mrf.mxu0
        %v728 = vadd.f32 0.0, %v727
        %v729 = vpop.f32.mrf.mxu0
        %v730 = vadd.f32 0.0, %v729
        %731 = vmatprep.mubr.f32.mxu0 0.0
        %732 = vmatmul.mubr.f32.gmra.mxu0 %v523
        %v733 = vpop.f32.mrf.mxu0
        %v734 = vadd.f32 0.0, %v733
        %v735 = vpop.f32.mrf.mxu0
        %v736 = vadd.f32 0.0, %v735
        %737 = vmatprep.mubr.f32.mxu0 0.0
        %738 = vmatmul.mubr.f32.gmra.mxu0 %v526
        %v739 = vpop.f32.mrf.mxu0
        %v740 = vadd.f32 0.0, %v739
        %v741 = vpop.f32.mrf.mxu0
        %v742 = vadd.f32 0.0, %v741
        %743 = vdwg.mxu0
        %v745 = vsel %vm455, %v390, 0
        %v748 = vsel %vm455, %v391, 0
        %v751 = vsel %vm455, %v392, 0
        %v754 = vsel %vm455, %v393, 0
        %v757 = vsel %vm455, %v394, 0
        %v760 = vsel %vm455, %v395, 0
        %v763 = vsel %vm455, %v396, 0
        %v766 = vsel %vm455, %v397, 0
        %v769 = vsel %vm455, %v398, 0
        %v772 = vsel %vm455, %v399, 0
        %v775 = vsel %vm455, %v400, 0
        %v778 = vsel %vm455, %v401, 0
        %v781 = vsel %vm455, %v402, 0
        %v784 = vsel %vm455, %v403, 0
        %v787 = vsel %vm455, %v404, 0
        %v790 = vsel %vm455, %v405, 0
        %v793 = vsel %vm455, %v406, 0
        %v796 = vsel %vm455, %v407, 0
        %v799 = vsel %vm455, %v408, 0
        %v802 = vsel %vm455, %v409, 0
        %v805 = vsel %vm455, %v410, 0
        %v808 = vsel %vm455, %v411, 0
        %v811 = vsel %vm455, %v412, 0
        %v814 = vsel %vm455, %v413, 0
        %v817 = vsel %vm528, %v420, 0
        %v820 = vsel %vm528, %v421, 0
        %822 = vmatprep.subr.mxu0 0.0
        %823 = vmatpush1.msra.mxu0 0.0
        %824 = vmatprep.subr.mxu0 0.0
        %825 = vmatpush1.msra.mxu0 0.0
        %826 = vmatprep.subr.mxu0 0.0
        %827 = vmatpush1.msra.mxu0 0.0
        %828 = vmatprep.subr.mxu0 0.0
        %829 = vmatpush1.msra.mxu0 0.0
        %830 = vmatprep.subr.mxu0 0.0
        %831 = vmatpush1.msra.mxu0 0.0
        %832 = vmatprep.subr.mxu0 0.0
        %833 = vmatpush1.msra.mxu0 0.0
        %834 = vmatprep.subr.mxu0 0.0
        %835 = vmatpush1.msra.mxu0 0.0
        %836 = vmatprep.subr.mxu0 0.0
        %837 = vmatpush1.msra.mxu0 0.0
        %838 = vmatprep.subr.mxu0 0.0
        %839 = vmatpush1.msra.mxu0 0.0
        %840 = vmatprep.subr.mxu0 0.0
        %841 = vmatpush1.msra.mxu0 0.0
        %842 = vmatprep.subr.mxu0 0.0
        %843 = vmatpush1.msra.mxu0 0.0
        %844 = vmatprep.subr.mxu0 0.0
        %845 = vmatpush1.msra.mxu0 0.0
        %846 = vmatprep.subr.mxu0 %v820
        %847 = vmatpush1.msra.mxu0 %v817
        %848 = vmatprep.subr.mxu0 %v419
        %849 = vmatpush1.msra.mxu0 %v418
        %850 = vmatprep.subr.mxu0 %v417
        %851 = vmatpush1.msra.mxu0 %v416
        %852 = vmatprep.subr.mxu0 %v415
        %853 = vmatpush1.msra.mxu0 %v414
        %854 = vmatprep.subr.mxu0 0.0
        %855 = vmatpush2.msra.mxu0 0.0
        %856 = vmatprep.subr.mxu0 0.0
        %857 = vmatpush2.msra.mxu0 0.0
        %858 = vmatprep.subr.mxu0 0.0
        %859 = vmatpush2.msra.mxu0 0.0
        %860 = vmatprep.subr.mxu0 0.0
        %861 = vmatpush2.msra.mxu0 0.0
        %862 = vmatprep.subr.mxu0 0.0
        %863 = vmatpush2.msra.mxu0 0.0
        %864 = vmatprep.subr.mxu0 0.0
        %865 = vmatpush2.msra.mxu0 0.0
        %866 = vmatprep.subr.mxu0 0.0
        %867 = vmatpush2.msra.mxu0 0.0
        %868 = vmatprep.subr.mxu0 0.0
        %869 = vmatpush2.msra.mxu0 0.0
        %870 = vmatprep.subr.mxu0 0.0
        %871 = vmatpush2.msra.mxu0 0.0
        %872 = vmatprep.subr.mxu0 0.0
        %873 = vmatpush2.msra.mxu0 0.0
        %874 = vmatprep.subr.mxu0 0.0
        %875 = vmatpush2.msra.mxu0 0.0
        %876 = vmatprep.subr.mxu0 0.0
        %877 = vmatpush2.msra.mxu0 0.0
        %878 = vmatprep.subr.mxu0 0.0
        %879 = vmatpush2.msra.mxu0 0.0
        %880 = vmatprep.subr.mxu0 0.0
        %881 = vmatpush2.msra.mxu0 0.0
        %882 = vmatprep.subr.mxu0 0.0
        %883 = vmatpush2.msra.mxu0 0.0
        %884 = vmatprep.subr.mxu0 0.0
        %885 = vmatpush2.msra.mxu0 0.0
        %886 = vmatprep.mubr.f32.mxu0 0.0
        %887 = vmatmul.mubr.f32.gmra.mxu0 %v745
        %v888 = vpop.f32.mrf.mxu0
        %v889 = vadd.f32 %v602, %v888
        %v890 = vpop.f32.mrf.mxu0
        %v891 = vadd.f32 %v604, %v890
        %892 = vmatprep.mubr.f32.mxu0 0.0
        %893 = vmatmul.mubr.f32.gmra.mxu0 %v748
        %v894 = vpop.f32.mrf.mxu0
        %v895 = vadd.f32 %v608, %v894
        %v896 = vpop.f32.mrf.mxu0
        %v897 = vadd.f32 %v610, %v896
        %898 = vmatprep.mubr.f32.mxu0 0.0
        %899 = vmatmul.mubr.f32.gmra.mxu0 %v751
        %v900 = vpop.f32.mrf.mxu0
        %v901 = vadd.f32 %v614, %v900
        %v902 = vpop.f32.mrf.mxu0
        %v903 = vadd.f32 %v616, %v902
        %904 = vmatprep.mubr.f32.mxu0 0.0
        %905 = vmatmul.mubr.f32.gmra.mxu0 %v754
        %v906 = vpop.f32.mrf.mxu0
        %v907 = vadd.f32 %v620, %v906
        %v908 = vpop.f32.mrf.mxu0
        %v909 = vadd.f32 %v622, %v908
        %910 = vmatprep.mubr.f32.mxu0 0.0
        %911 = vmatmul.mubr.f32.gmra.mxu0 %v757
        %v912 = vpop.f32.mrf.mxu0
        %v913 = vadd.f32 %v626, %v912
        %v914 = vpop.f32.mrf.mxu0
        %v915 = vadd.f32 %v628, %v914
        %916 = vmatprep.mubr.f32.mxu0 0.0
        %917 = vmatmul.mubr.f32.gmra.mxu0 %v760
        %v918 = vpop.f32.mrf.mxu0
        %v919 = vadd.f32 %v632, %v918
        %v920 = vpop.f32.mrf.mxu0
        %v921 = vadd.f32 %v634, %v920
        %922 = vmatprep.mubr.f32.mxu0 0.0
        %923 = vmatmul.mubr.f32.gmra.mxu0 %v763
        %v924 = vpop.f32.mrf.mxu0
        %v925 = vadd.f32 %v638, %v924
        %v926 = vpop.f32.mrf.mxu0
        %v927 = vadd.f32 %v640, %v926
        %928 = vmatprep.mubr.f32.mxu0 0.0
        %929 = vmatmul.mubr.f32.gmra.mxu0 %v766
        %v930 = vpop.f32.mrf.mxu0
        %v931 = vadd.f32 %v644, %v930
        %v932 = vpop.f32.mrf.mxu0
        %v933 = vadd.f32 %v646, %v932
        %934 = vmatprep.mubr.f32.mxu0 0.0
        %935 = vmatmul.mubr.f32.gmra.mxu0 %v769
        %v936 = vpop.f32.mrf.mxu0
        %v937 = vadd.f32 %v650, %v936
        %v938 = vpop.f32.mrf.mxu0
        %v939 = vadd.f32 %v652, %v938
        %940 = vmatprep.mubr.f32.mxu0 0.0
        %941 = vmatmul.mubr.f32.gmra.mxu0 %v772
        %v942 = vpop.f32.mrf.mxu0
        %v943 = vadd.f32 %v656, %v942
        %v944 = vpop.f32.mrf.mxu0
        %v945 = vadd.f32 %v658, %v944
        %946 = vmatprep.mubr.f32.mxu0 0.0
        %947 = vmatmul.mubr.f32.gmra.mxu0 %v775
        %v948 = vpop.f32.mrf.mxu0
        %v949 = vadd.f32 %v662, %v948
        %v950 = vpop.f32.mrf.mxu0
        %v951 = vadd.f32 %v664, %v950
        %952 = vmatprep.mubr.f32.mxu0 0.0
        %953 = vmatmul.mubr.f32.gmra.mxu0 %v778
        %v954 = vpop.f32.mrf.mxu0
        %v955 = vadd.f32 %v668, %v954
        %v956 = vpop.f32.mrf.mxu0
        %v957 = vadd.f32 %v670, %v956
        %958 = vmatprep.mubr.f32.mxu0 0.0
        %959 = vmatmul.mubr.f32.gmra.mxu0 %v781
        %v960 = vpop.f32.mrf.mxu0
        %v961 = vadd.f32 %v674, %v960
        %v962 = vpop.f32.mrf.mxu0
        %v963 = vadd.f32 %v676, %v962
        %964 = vmatprep.mubr.f32.mxu0 0.0
        %965 = vmatmul.mubr.f32.gmra.mxu0 %v784
        %v966 = vpop.f32.mrf.mxu0
        %v967 = vadd.f32 %v680, %v966
        %v968 = vpop.f32.mrf.mxu0
        %v969 = vadd.f32 %v682, %v968
        %970 = vmatprep.mubr.f32.mxu0 0.0
        %971 = vmatmul.mubr.f32.gmra.mxu0 %v787
        %v972 = vpop.f32.mrf.mxu0
        %v973 = vadd.f32 %v686, %v972
        %v974 = vpop.f32.mrf.mxu0
        %v975 = vadd.f32 %v688, %v974
        %976 = vmatprep.mubr.f32.mxu0 0.0
        %977 = vmatmul.mubr.f32.gmra.mxu0 %v790
        %v978 = vpop.f32.mrf.mxu0
        %v979 = vadd.f32 %v692, %v978
        %v980 = vpop.f32.mrf.mxu0
        %v981 = vadd.f32 %v694, %v980
        %982 = vmatprep.mubr.f32.mxu0 0.0
        %983 = vmatmul.mubr.f32.gmra.mxu0 %v793
        %v984 = vpop.f32.mrf.mxu0
        %v985 = vadd.f32 %v698, %v984
        %v986 = vpop.f32.mrf.mxu0
        %v987 = vadd.f32 %v700, %v986
        %988 = vmatprep.mubr.f32.mxu0 0.0
        %989 = vmatmul.mubr.f32.gmra.mxu0 %v796
        %v990 = vpop.f32.mrf.mxu0
        %v991 = vadd.f32 %v704, %v990
        %v992 = vpop.f32.mrf.mxu0
        %v993 = vadd.f32 %v706, %v992
        %994 = vmatprep.mubr.f32.mxu0 0.0
        %995 = vmatmul.mubr.f32.gmra.mxu0 %v799
        %v996 = vpop.f32.mrf.mxu0
        %v997 = vadd.f32 %v710, %v996
        %v998 = vpop.f32.mrf.mxu0
        %v999 = vadd.f32 %v712, %v998
        %1000 = vmatprep.mubr.f32.mxu0 0.0
        %1001 = vmatmul.mubr.f32.gmra.mxu0 %v802
        %v1002 = vpop.f32.mrf.mxu0
        %v1003 = vadd.f32 %v716, %v1002
        %v1004 = vpop.f32.mrf.mxu0
        %v1005 = vadd.f32 %v718, %v1004
        %1006 = vmatprep.mubr.f32.mxu0 0.0
        %1007 = vmatmul.mubr.f32.gmra.mxu0 %v805
        %v1008 = vpop.f32.mrf.mxu0
        %v1009 = vadd.f32 %v722, %v1008
        %v1010 = vpop.f32.mrf.mxu0
        %v1011 = vadd.f32 %v724, %v1010
        %1012 = vmatprep.mubr.f32.mxu0 0.0
        %1013 = vmatmul.mubr.f32.gmra.mxu0 %v808
        %v1014 = vpop.f32.mrf.mxu0
        %v1015 = vadd.f32 %v728, %v1014
        %v1016 = vpop.f32.mrf.mxu0
        %v1017 = vadd.f32 %v730, %v1016
        %1018 = vmatprep.mubr.f32.mxu0 0.0
        %1019 = vmatmul.mubr.f32.gmra.mxu0 %v811
        %v1020 = vpop.f32.mrf.mxu0
        %v1021 = vadd.f32 %v734, %v1020
        %v1022 = vpop.f32.mrf.mxu0
        %v1023 = vadd.f32 %v736, %v1022
        %1024 = vmatprep.mubr.f32.mxu0 0.0
        %1025 = vmatmul.mubr.f32.gmra.mxu0 %v814
        %v1026 = vpop.f32.mrf.mxu0
        %v1027 = vadd.f32 %v740, %v1026
        %v1028 = vpop.f32.mrf.mxu0
        %v1029 = vadd.f32 %v742, %v1028
        %1030 = vdwg.mxu0
        %v1031 = vld [vmem:[%s388 + $0x2] sm:$0xff]
        %v1032 = vld [vmem:[%s388 + $0xa] sm:$0xff]
        %v1033 = vld [vmem:[%s388 + $0x12] sm:$0xff]
        %v1034 = vld [vmem:[%s388 + $0x22] sm:$0xff]
        %v1035 = vld [vmem:[%s388 + $0x2a] sm:$0xff]
        %v1036 = vld [vmem:[%s388 + $0x32] sm:$0xff]
        %v1037 = vld [vmem:[%s388 + $0x42] sm:$0xff]
        %v1038 = vld [vmem:[%s388 + $0x4a] sm:$0xff]
        %v1039 = vld [vmem:[%s388 + $0x52] sm:$0xff]
        %v1040 = vld [vmem:[%s388 + $0x62] sm:$0xff]
        %v1041 = vld [vmem:[%s388 + $0x6a] sm:$0xff]
        %v1042 = vld [vmem:[%s388 + $0x72] sm:$0xff]
        %v1043 = vld [vmem:[%s388 + $0x82] sm:$0xff]
        %v1044 = vld [vmem:[%s388 + $0x8a] sm:$0xff]
        %v1045 = vld [vmem:[%s388 + $0x92] sm:$0xff]
        %v1046 = vld [vmem:[%s388 + $0xa2] sm:$0xff]
        %v1047 = vld [vmem:[%s388 + $0xaa] sm:$0xff]
        %v1048 = vld [vmem:[%s388 + $0xb2] sm:$0xff]
        %v1049 = vld [vmem:[%s388 + $0xc2] sm:$0xff]
        %v1050 = vld [vmem:[%s388 + $0xca] sm:$0xff]
        %v1051 = vld [vmem:[%s388 + $0xd2] sm:$0xff]
        %v1052 = vld [vmem:[%s388 + $0xe2] sm:$0xff]
        %v1053 = vld [vmem:[%s388 + $0xea] sm:$0xff]
        %v1054 = vld [vmem:[%s388 + $0xf2] sm:$0xff]
        %s1055 = scalar_lea.vmem %s1, 128
        %v1056 = vld [vmem:[%s1055] sm:$0xff]
        %v1057 = vld [vmem:[%s1055 + $0x8] sm:$0xff]
        %v1058 = vld [vmem:[%s1055 + $0x10] sm:$0xff]
        %v1059 = vld [vmem:[%s1055 + $0x18] sm:$0xff]
        %v1060 = vld [vmem:[%s1055 + $0x20] sm:$0xff]
        %v1061 = vld [vmem:[%s1055 + $0x28] sm:$0xff]
        %v1062 = vld [vmem:[%s1055 + $0x30] sm:$0xf]
        %v1063 = vld [vmem:[%s1055 + $0x38] sm:$0xf]
        %v1065 = vsel %vm455, %v1031, 0
        %v1068 = vsel %vm455, %v1032, 0
        %v1071 = vsel %vm455, %v1033, 0
        %v1074 = vsel %vm455, %v1034, 0
        %v1077 = vsel %vm455, %v1035, 0
        %v1080 = vsel %vm455, %v1036, 0
        %v1083 = vsel %vm455, %v1037, 0
        %v1086 = vsel %vm455, %v1038, 0
        %v1089 = vsel %vm455, %v1039, 0
        %v1092 = vsel %vm455, %v1040, 0
        %v1095 = vsel %vm455, %v1041, 0
        %v1098 = vsel %vm455, %v1042, 0
        %v1101 = vsel %vm455, %v1043, 0
        %v1104 = vsel %vm455, %v1044, 0
        %v1107 = vsel %vm455, %v1045, 0
        %v1110 = vsel %vm455, %v1046, 0
        %v1113 = vsel %vm455, %v1047, 0
        %v1116 = vsel %vm455, %v1048, 0
        %v1119 = vsel %vm455, %v1049, 0
        %v1122 = vsel %vm455, %v1050, 0
        %v1125 = vsel %vm455, %v1051, 0
        %v1128 = vsel %vm455, %v1052, 0
        %v1131 = vsel %vm455, %v1053, 0
        %v1134 = vsel %vm455, %v1054, 0
        %v1137 = vsel %vm528, %v1062, 0
        %v1140 = vsel %vm528, %v1063, 0
        %1142 = vmatprep.subr.mxu0 0.0
        %1143 = vmatpush1.msra.mxu0 0.0
        %1144 = vmatprep.subr.mxu0 0.0
        %1145 = vmatpush1.msra.mxu0 0.0
        %1146 = vmatprep.subr.mxu0 0.0
        %1147 = vmatpush1.msra.mxu0 0.0
        %1148 = vmatprep.subr.mxu0 0.0
        %1149 = vmatpush1.msra.mxu0 0.0
        %1150 = vmatprep.subr.mxu0 0.0
        %1151 = vmatpush1.msra.mxu0 0.0
        %1152 = vmatprep.subr.mxu0 0.0
        %1153 = vmatpush1.msra.mxu0 0.0
        %1154 = vmatprep.subr.mxu0 0.0
        %1155 = vmatpush1.msra.mxu0 0.0
        %1156 = vmatprep.subr.mxu0 0.0
        %1157 = vmatpush1.msra.mxu0 0.0
        %1158 = vmatprep.subr.mxu0 0.0
        %1159 = vmatpush1.msra.mxu0 0.0
        %1160 = vmatprep.subr.mxu0 0.0
        %1161 = vmatpush1.msra.mxu0 0.0
        %1162 = vmatprep.subr.mxu0 0.0
        %1163 = vmatpush1.msra.mxu0 0.0
        %1164 = vmatprep.subr.mxu0 0.0
        %1165 = vmatpush1.msra.mxu0 0.0
        %1166 = vmatprep.subr.mxu0 %v1140
        %1167 = vmatpush1.msra.mxu0 %v1137
        %1168 = vmatprep.subr.mxu0 %v1061
        %1169 = vmatpush1.msra.mxu0 %v1060
        %1170 = vmatprep.subr.mxu0 %v1059
        %1171 = vmatpush1.msra.mxu0 %v1058
        %1172 = vmatprep.subr.mxu0 %v1057
        %1173 = vmatpush1.msra.mxu0 %v1056
        %1174 = vmatprep.subr.mxu0 0.0
        %1175 = vmatpush2.msra.mxu0 0.0
        %1176 = vmatprep.subr.mxu0 0.0
        %1177 = vmatpush2.msra.mxu0 0.0
        %1178 = vmatprep.subr.mxu0 0.0
        %1179 = vmatpush2.msra.mxu0 0.0
        %1180 = vmatprep.subr.mxu0 0.0
        %1181 = vmatpush2.msra.mxu0 0.0
        %1182 = vmatprep.subr.mxu0 0.0
        %1183 = vmatpush2.msra.mxu0 0.0
        %1184 = vmatprep.subr.mxu0 0.0
        %1185 = vmatpush2.msra.mxu0 0.0
        %1186 = vmatprep.subr.mxu0 0.0
        %1187 = vmatpush2.msra.mxu0 0.0
        %1188 = vmatprep.subr.mxu0 0.0
        %1189 = vmatpush2.msra.mxu0 0.0
        %1190 = vmatprep.subr.mxu0 0.0
        %1191 = vmatpush2.msra.mxu0 0.0
        %1192 = vmatprep.subr.mxu0 0.0
        %1193 = vmatpush2.msra.mxu0 0.0
        %1194 = vmatprep.subr.mxu0 0.0
        %1195 = vmatpush2.msra.mxu0 0.0
        %1196 = vmatprep.subr.mxu0 0.0
        %1197 = vmatpush2.msra.mxu0 0.0
        %1198 = vmatprep.subr.mxu0 0.0
        %1199 = vmatpush2.msra.mxu0 0.0
        %1200 = vmatprep.subr.mxu0 0.0
        %1201 = vmatpush2.msra.mxu0 0.0
        %1202 = vmatprep.subr.mxu0 0.0
        %1203 = vmatpush2.msra.mxu0 0.0
        %1204 = vmatprep.subr.mxu0 0.0
        %1205 = vmatpush2.msra.mxu0 0.0
        %1206 = vmatprep.mubr.f32.mxu0 0.0
        %1207 = vmatmul.mubr.f32.gmra.mxu0 %v1065
        %v1208 = vpop.f32.mrf.mxu0
        %v1209 = vadd.f32 0.0, %v1208
        %v1210 = vpop.f32.mrf.mxu0
        %v1211 = vadd.f32 0.0, %v1210
        %1212 = vmatprep.mubr.f32.mxu0 0.0
        %1213 = vmatmul.mubr.f32.gmra.mxu0 %v1068
        %v1214 = vpop.f32.mrf.mxu0
        %v1215 = vadd.f32 0.0, %v1214
        %v1216 = vpop.f32.mrf.mxu0
        %v1217 = vadd.f32 0.0, %v1216
        %1218 = vmatprep.mubr.f32.mxu0 0.0
        %1219 = vmatmul.mubr.f32.gmra.mxu0 %v1071
        %v1220 = vpop.f32.mrf.mxu0
        %v1221 = vadd.f32 0.0, %v1220
        %v1222 = vpop.f32.mrf.mxu0
        %v1223 = vadd.f32 0.0, %v1222
        %1224 = vmatprep.mubr.f32.mxu0 0.0
        %1225 = vmatmul.mubr.f32.gmra.mxu0 %v1074
        %v1226 = vpop.f32.mrf.mxu0
        %v1227 = vadd.f32 0.0, %v1226
        %v1228 = vpop.f32.mrf.mxu0
        %v1229 = vadd.f32 0.0, %v1228
        %1230 = vmatprep.mubr.f32.mxu0 0.0
        %1231 = vmatmul.mubr.f32.gmra.mxu0 %v1077
        %v1232 = vpop.f32.mrf.mxu0
        %v1233 = vadd.f32 0.0, %v1232
        %v1234 = vpop.f32.mrf.mxu0
        %v1235 = vadd.f32 0.0, %v1234
        %1236 = vmatprep.mubr.f32.mxu0 0.0
        %1237 = vmatmul.mubr.f32.gmra.mxu0 %v1080
        %v1238 = vpop.f32.mrf.mxu0
        %v1239 = vadd.f32 0.0, %v1238
        %v1240 = vpop.f32.mrf.mxu0
        %v1241 = vadd.f32 0.0, %v1240
        %1242 = vmatprep.mubr.f32.mxu0 0.0
        %1243 = vmatmul.mubr.f32.gmra.mxu0 %v1083
        %v1244 = vpop.f32.mrf.mxu0
        %v1245 = vadd.f32 0.0, %v1244
        %v1246 = vpop.f32.mrf.mxu0
        %v1247 = vadd.f32 0.0, %v1246
        %1248 = vmatprep.mubr.f32.mxu0 0.0
        %1249 = vmatmul.mubr.f32.gmra.mxu0 %v1086
        %v1250 = vpop.f32.mrf.mxu0
        %v1251 = vadd.f32 0.0, %v1250
        %v1252 = vpop.f32.mrf.mxu0
        %v1253 = vadd.f32 0.0, %v1252
        %1254 = vmatprep.mubr.f32.mxu0 0.0
        %1255 = vmatmul.mubr.f32.gmra.mxu0 %v1089
        %v1256 = vpop.f32.mrf.mxu0
        %v1257 = vadd.f32 0.0, %v1256
        %v1258 = vpop.f32.mrf.mxu0
        %v1259 = vadd.f32 0.0, %v1258
        %1260 = vmatprep.mubr.f32.mxu0 0.0
        %1261 = vmatmul.mubr.f32.gmra.mxu0 %v1092
        %v1262 = vpop.f32.mrf.mxu0
        %v1263 = vadd.f32 0.0, %v1262
        %v1264 = vpop.f32.mrf.mxu0
        %v1265 = vadd.f32 0.0, %v1264
        %1266 = vmatprep.mubr.f32.mxu0 0.0
        %1267 = vmatmul.mubr.f32.gmra.mxu0 %v1095
        %v1268 = vpop.f32.mrf.mxu0
        %v1269 = vadd.f32 0.0, %v1268
        %v1270 = vpop.f32.mrf.mxu0
        %v1271 = vadd.f32 0.0, %v1270
        %1272 = vmatprep.mubr.f32.mxu0 0.0
        %1273 = vmatmul.mubr.f32.gmra.mxu0 %v1098
        %v1274 = vpop.f32.mrf.mxu0
        %v1275 = vadd.f32 0.0, %v1274
        %v1276 = vpop.f32.mrf.mxu0
        %v1277 = vadd.f32 0.0, %v1276
        %1278 = vmatprep.mubr.f32.mxu0 0.0
        %1279 = vmatmul.mubr.f32.gmra.mxu0 %v1101
        %v1280 = vpop.f32.mrf.mxu0
        %v1281 = vadd.f32 0.0, %v1280
        %v1282 = vpop.f32.mrf.mxu0
        %v1283 = vadd.f32 0.0, %v1282
        %1284 = vmatprep.mubr.f32.mxu0 0.0
        %1285 = vmatmul.mubr.f32.gmra.mxu0 %v1104
        %v1286 = vpop.f32.mrf.mxu0
        %v1287 = vadd.f32 0.0, %v1286
        %v1288 = vpop.f32.mrf.mxu0
        %v1289 = vadd.f32 0.0, %v1288
        %1290 = vmatprep.mubr.f32.mxu0 0.0
        %1291 = vmatmul.mubr.f32.gmra.mxu0 %v1107
        %v1292 = vpop.f32.mrf.mxu0
        %v1293 = vadd.f32 0.0, %v1292
        %v1294 = vpop.f32.mrf.mxu0
        %v1295 = vadd.f32 0.0, %v1294
        %1296 = vmatprep.mubr.f32.mxu0 0.0
        %1297 = vmatmul.mubr.f32.gmra.mxu0 %v1110
        %v1298 = vpop.f32.mrf.mxu0
        %v1299 = vadd.f32 0.0, %v1298
        %v1300 = vpop.f32.mrf.mxu0
        %v1301 = vadd.f32 0.0, %v1300
        %1302 = vmatprep.mubr.f32.mxu0 0.0
        %1303 = vmatmul.mubr.f32.gmra.mxu0 %v1113
        %v1304 = vpop.f32.mrf.mxu0
        %v1305 = vadd.f32 0.0, %v1304
        %v1306 = vpop.f32.mrf.mxu0
        %v1307 = vadd.f32 0.0, %v1306
        %1308 = vmatprep.mubr.f32.mxu0 0.0
        %1309 = vmatmul.mubr.f32.gmra.mxu0 %v1116
        %v1310 = vpop.f32.mrf.mxu0
        %v1311 = vadd.f32 0.0, %v1310
        %v1312 = vpop.f32.mrf.mxu0
        %v1313 = vadd.f32 0.0, %v1312
        %1314 = vmatprep.mubr.f32.mxu0 0.0
        %1315 = vmatmul.mubr.f32.gmra.mxu0 %v1119
        %v1316 = vpop.f32.mrf.mxu0
        %v1317 = vadd.f32 0.0, %v1316
        %v1318 = vpop.f32.mrf.mxu0
        %v1319 = vadd.f32 0.0, %v1318
        %1320 = vmatprep.mubr.f32.mxu0 0.0
        %1321 = vmatmul.mubr.f32.gmra.mxu0 %v1122
        %v1322 = vpop.f32.mrf.mxu0
        %v1323 = vadd.f32 0.0, %v1322
        %v1324 = vpop.f32.mrf.mxu0
        %v1325 = vadd.f32 0.0, %v1324
        %1326 = vmatprep.mubr.f32.mxu0 0.0
        %1327 = vmatmul.mubr.f32.gmra.mxu0 %v1125
        %v1328 = vpop.f32.mrf.mxu0
        %v1329 = vadd.f32 0.0, %v1328
        %v1330 = vpop.f32.mrf.mxu0
        %v1331 = vadd.f32 0.0, %v1330
        %1332 = vmatprep.mubr.f32.mxu0 0.0
        %1333 = vmatmul.mubr.f32.gmra.mxu0 %v1128
        %v1334 = vpop.f32.mrf.mxu0
        %v1335 = vadd.f32 0.0, %v1334
        %v1336 = vpop.f32.mrf.mxu0
        %v1337 = vadd.f32 0.0, %v1336
        %1338 = vmatprep.mubr.f32.mxu0 0.0
        %1339 = vmatmul.mubr.f32.gmra.mxu0 %v1131
        %v1340 = vpop.f32.mrf.mxu0
        %v1341 = vadd.f32 0.0, %v1340
        %v1342 = vpop.f32.mrf.mxu0
        %v1343 = vadd.f32 0.0, %v1342
        %1344 = vmatprep.mubr.f32.mxu0 0.0
        %1345 = vmatmul.mubr.f32.gmra.mxu0 %v1134
        %v1346 = vpop.f32.mrf.mxu0
        %v1347 = vadd.f32 0.0, %v1346
        %v1348 = vpop.f32.mrf.mxu0
        %v1349 = vadd.f32 0.0, %v1348
        %1350 = vdwg.mxu0
        %v1351 = vadd.f32 %v889, %v1209
        %v1352 = vadd.f32 %v891, %v1211
        %v1353 = vadd.f32 %v895, %v1215
        %v1354 = vadd.f32 %v897, %v1217
        %v1355 = vadd.f32 %v901, %v1221
        %v1356 = vadd.f32 %v903, %v1223
        %v1357 = vadd.f32 %v907, %v1227
        %v1358 = vadd.f32 %v909, %v1229
        %v1359 = vadd.f32 %v913, %v1233
        %v1360 = vadd.f32 %v915, %v1235
        %v1361 = vadd.f32 %v919, %v1239
        %v1362 = vadd.f32 %v921, %v1241
        %v1363 = vadd.f32 %v925, %v1245
        %v1364 = vadd.f32 %v927, %v1247
        %v1365 = vadd.f32 %v931, %v1251
        %v1366 = vadd.f32 %v933, %v1253
        %v1367 = vadd.f32 %v937, %v1257
        %v1368 = vadd.f32 %v939, %v1259
        %v1369 = vadd.f32 %v943, %v1263
        %v1370 = vadd.f32 %v945, %v1265
        %v1371 = vadd.f32 %v949, %v1269
        %v1372 = vadd.f32 %v951, %v1271
        %v1373 = vadd.f32 %v955, %v1275
        %v1374 = vadd.f32 %v957, %v1277
        %v1375 = vadd.f32 %v961, %v1281
        %v1376 = vadd.f32 %v963, %v1283
        %v1377 = vadd.f32 %v967, %v1287
        %v1378 = vadd.f32 %v969, %v1289
        %v1379 = vadd.f32 %v973, %v1293
        %v1380 = vadd.f32 %v975, %v1295
        %v1381 = vadd.f32 %v979, %v1299
        %v1382 = vadd.f32 %v981, %v1301
        %v1383 = vadd.f32 %v985, %v1305
        %v1384 = vadd.f32 %v987, %v1307
        %v1385 = vadd.f32 %v991, %v1311
        %v1386 = vadd.f32 %v993, %v1313
        %v1387 = vadd.f32 %v997, %v1317
        %v1388 = vadd.f32 %v999, %v1319
        %v1389 = vadd.f32 %v1003, %v1323
        %v1390 = vadd.f32 %v1005, %v1325
        %v1391 = vadd.f32 %v1009, %v1329
        %v1392 = vadd.f32 %v1011, %v1331
        %v1393 = vadd.f32 %v1015, %v1335
        %v1394 = vadd.f32 %v1017, %v1337
        %v1395 = vadd.f32 %v1021, %v1341
        %v1396 = vadd.f32 %v1023, %v1343
        %v1397 = vadd.f32 %v1027, %v1347
        %v1398 = vadd.f32 %v1029, %v1349
        %v1399 = vld [vmem:[%s388 + $0x3] sm:$0xff]
        %v1400 = vld [vmem:[%s388 + $0xb] sm:$0xff]
        %v1401 = vld [vmem:[%s388 + $0x13] sm:$0xff]
        %v1402 = vld [vmem:[%s388 + $0x23] sm:$0xff]
        %v1403 = vld [vmem:[%s388 + $0x2b] sm:$0xff]
        %v1404 = vld [vmem:[%s388 + $0x33] sm:$0xff]
        %v1405 = vld [vmem:[%s388 + $0x43] sm:$0xff]
        %v1406 = vld [vmem:[%s388 + $0x4b] sm:$0xff]
        %v1407 = vld [vmem:[%s388 + $0x53] sm:$0xff]
        %v1408 = vld [vmem:[%s388 + $0x63] sm:$0xff]
        %v1409 = vld [vmem:[%s388 + $0x6b] sm:$0xff]
        %v1410 = vld [vmem:[%s388 + $0x73] sm:$0xff]
        %v1411 = vld [vmem:[%s388 + $0x83] sm:$0xff]
        %v1412 = vld [vmem:[%s388 + $0x8b] sm:$0xff]
        %v1413 = vld [vmem:[%s388 + $0x93] sm:$0xff]
        %v1414 = vld [vmem:[%s388 + $0xa3] sm:$0xff]
        %v1415 = vld [vmem:[%s388 + $0xab] sm:$0xff]
        %v1416 = vld [vmem:[%s388 + $0xb3] sm:$0xff]
        %v1417 = vld [vmem:[%s388 + $0xc3] sm:$0xff]
        %v1418 = vld [vmem:[%s388 + $0xcb] sm:$0xff]
        %v1419 = vld [vmem:[%s388 + $0xd3] sm:$0xff]
        %v1420 = vld [vmem:[%s388 + $0xe3] sm:$0xff]
        %v1421 = vld [vmem:[%s388 + $0xeb] sm:$0xff]
        %v1422 = vld [vmem:[%s388 + $0xf3] sm:$0xff]
        %s1423 = scalar_lea.vmem %s1, 192
        %v1424 = vld [vmem:[%s1423] sm:$0xff]
        %v1425 = vld [vmem:[%s1423 + $0x8] sm:$0xff]
        %v1426 = vld [vmem:[%s1423 + $0x10] sm:$0xff]
        %v1427 = vld [vmem:[%s1423 + $0x18] sm:$0xff]
        %v1428 = vld [vmem:[%s1423 + $0x20] sm:$0xff]
        %v1429 = vld [vmem:[%s1423 + $0x28] sm:$0xff]
        %v1430 = vld [vmem:[%s1423 + $0x30] sm:$0xf]
        %v1431 = vld [vmem:[%s1423 + $0x38] sm:$0xf]
        %v1433 = vsel %vm455, %v1399, 0
        %v1436 = vsel %vm455, %v1400, 0
        %v1439 = vsel %vm455, %v1401, 0
        %v1442 = vsel %vm455, %v1402, 0
        %v1445 = vsel %vm455, %v1403, 0
        %v1448 = vsel %vm455, %v1404, 0
        %v1451 = vsel %vm455, %v1405, 0
        %v1454 = vsel %vm455, %v1406, 0
        %v1457 = vsel %vm455, %v1407, 0
        %v1460 = vsel %vm455, %v1408, 0
        %v1463 = vsel %vm455, %v1409, 0
        %v1466 = vsel %vm455, %v1410, 0
        %v1469 = vsel %vm455, %v1411, 0
        %v1472 = vsel %vm455, %v1412, 0
        %v1475 = vsel %vm455, %v1413, 0
        %v1478 = vsel %vm455, %v1414, 0
        %v1481 = vsel %vm455, %v1415, 0
        %v1484 = vsel %vm455, %v1416, 0
        %v1487 = vsel %vm455, %v1417, 0
        %v1490 = vsel %vm455, %v1418, 0
        %v1493 = vsel %vm455, %v1419, 0
        %v1496 = vsel %vm455, %v1420, 0
        %v1499 = vsel %vm455, %v1421, 0
        %v1502 = vsel %vm455, %v1422, 0
        %v1505 = vsel %vm528, %v1430, 0
        %v1508 = vsel %vm528, %v1431, 0
        %1510 = vmatprep.subr.mxu0 0.0
        %1511 = vmatpush1.msra.mxu0 0.0
        %1512 = vmatprep.subr.mxu0 0.0
        %1513 = vmatpush1.msra.mxu0 0.0
        %1514 = vmatprep.subr.mxu0 0.0
        %1515 = vmatpush1.msra.mxu0 0.0
        %1516 = vmatprep.subr.mxu0 0.0
        %1517 = vmatpush1.msra.mxu0 0.0
        %1518 = vmatprep.subr.mxu0 0.0
        %1519 = vmatpush1.msra.mxu0 0.0
        %1520 = vmatprep.subr.mxu0 0.0
        %1521 = vmatpush1.msra.mxu0 0.0
        %1522 = vmatprep.subr.mxu0 0.0
        %1523 = vmatpush1.msra.mxu0 0.0
        %1524 = vmatprep.subr.mxu0 0.0
        %1525 = vmatpush1.msra.mxu0 0.0
        %1526 = vmatprep.subr.mxu0 0.0
        %1527 = vmatpush1.msra.mxu0 0.0
        %1528 = vmatprep.subr.mxu0 0.0
        %1529 = vmatpush1.msra.mxu0 0.0
        %1530 = vmatprep.subr.mxu0 0.0
        %1531 = vmatpush1.msra.mxu0 0.0
        %1532 = vmatprep.subr.mxu0 0.0
        %1533 = vmatpush1.msra.mxu0 0.0
        %1534 = vmatprep.subr.mxu0 %v1508
        %1535 = vmatpush1.msra.mxu0 %v1505
        %1536 = vmatprep.subr.mxu0 %v1429
        %1537 = vmatpush1.msra.mxu0 %v1428
        %1538 = vmatprep.subr.mxu0 %v1427
        %1539 = vmatpush1.msra.mxu0 %v1426
        %1540 = vmatprep.subr.mxu0 %v1425
        %1541 = vmatpush1.msra.mxu0 %v1424
        %1542 = vmatprep.subr.mxu0 0.0
        %1543 = vmatpush2.msra.mxu0 0.0
        %1544 = vmatprep.subr.mxu0 0.0
        %1545 = vmatpush2.msra.mxu0 0.0
        %1546 = vmatprep.subr.mxu0 0.0
        %1547 = vmatpush2.msra.mxu0 0.0
        %1548 = vmatprep.subr.mxu0 0.0
        %1549 = vmatpush2.msra.mxu0 0.0
        %1550 = vmatprep.subr.mxu0 0.0
        %1551 = vmatpush2.msra.mxu0 0.0
        %1552 = vmatprep.subr.mxu0 0.0
        %1553 = vmatpush2.msra.mxu0 0.0
        %1554 = vmatprep.subr.mxu0 0.0
        %1555 = vmatpush2.msra.mxu0 0.0
        %1556 = vmatprep.subr.mxu0 0.0
        %1557 = vmatpush2.msra.mxu0 0.0
        %1558 = vmatprep.subr.mxu0 0.0
        %1559 = vmatpush2.msra.mxu0 0.0
        %1560 = vmatprep.subr.mxu0 0.0
        %1561 = vmatpush2.msra.mxu0 0.0
        %1562 = vmatprep.subr.mxu0 0.0
        %1563 = vmatpush2.msra.mxu0 0.0
        %1564 = vmatprep.subr.mxu0 0.0
        %1565 = vmatpush2.msra.mxu0 0.0
        %1566 = vmatprep.subr.mxu0 0.0
        %1567 = vmatpush2.msra.mxu0 0.0
        %1568 = vmatprep.subr.mxu0 0.0
        %1569 = vmatpush2.msra.mxu0 0.0
        %1570 = vmatprep.subr.mxu0 0.0
        %1571 = vmatpush2.msra.mxu0 0.0
        %1572 = vmatprep.subr.mxu0 0.0
        %1573 = vmatpush2.msra.mxu0 0.0
        %1574 = vmatprep.mubr.f32.mxu0 0.0
        %1575 = vmatmul.mubr.f32.gmra.mxu0 %v1433
        %v1576 = vpop.f32.mrf.mxu0
        %v1577 = vadd.f32 0.0, %v1576
        %v1578 = vpop.f32.mrf.mxu0
        %v1579 = vadd.f32 0.0, %v1578
        %1580 = vmatprep.mubr.f32.mxu0 0.0
        %1581 = vmatmul.mubr.f32.gmra.mxu0 %v1436
        %v1582 = vpop.f32.mrf.mxu0
        %v1583 = vadd.f32 0.0, %v1582
        %v1584 = vpop.f32.mrf.mxu0
        %v1585 = vadd.f32 0.0, %v1584
        %1586 = vmatprep.mubr.f32.mxu0 0.0
        %1587 = vmatmul.mubr.f32.gmra.mxu0 %v1439
        %v1588 = vpop.f32.mrf.mxu0
        %v1589 = vadd.f32 0.0, %v1588
        %v1590 = vpop.f32.mrf.mxu0
        %v1591 = vadd.f32 0.0, %v1590
        %1592 = vmatprep.mubr.f32.mxu0 0.0
        %1593 = vmatmul.mubr.f32.gmra.mxu0 %v1442
        %v1594 = vpop.f32.mrf.mxu0
        %v1595 = vadd.f32 0.0, %v1594
        %v1596 = vpop.f32.mrf.mxu0
        %v1597 = vadd.f32 0.0, %v1596
        %1598 = vmatprep.mubr.f32.mxu0 0.0
        %1599 = vmatmul.mubr.f32.gmra.mxu0 %v1445
        %v1600 = vpop.f32.mrf.mxu0
        %v1601 = vadd.f32 0.0, %v1600
        %v1602 = vpop.f32.mrf.mxu0
        %v1603 = vadd.f32 0.0, %v1602
        %1604 = vmatprep.mubr.f32.mxu0 0.0
        %1605 = vmatmul.mubr.f32.gmra.mxu0 %v1448
        %v1606 = vpop.f32.mrf.mxu0
        %v1607 = vadd.f32 0.0, %v1606
        %v1608 = vpop.f32.mrf.mxu0
        %v1609 = vadd.f32 0.0, %v1608
        %1610 = vmatprep.mubr.f32.mxu0 0.0
        %1611 = vmatmul.mubr.f32.gmra.mxu0 %v1451
        %v1612 = vpop.f32.mrf.mxu0
        %v1613 = vadd.f32 0.0, %v1612
        %v1614 = vpop.f32.mrf.mxu0
        %v1615 = vadd.f32 0.0, %v1614
        %1616 = vmatprep.mubr.f32.mxu0 0.0
        %1617 = vmatmul.mubr.f32.gmra.mxu0 %v1454
        %v1618 = vpop.f32.mrf.mxu0
        %v1619 = vadd.f32 0.0, %v1618
        %v1620 = vpop.f32.mrf.mxu0
        %v1621 = vadd.f32 0.0, %v1620
        %1622 = vmatprep.mubr.f32.mxu0 0.0
        %1623 = vmatmul.mubr.f32.gmra.mxu0 %v1457
        %v1624 = vpop.f32.mrf.mxu0
        %v1625 = vadd.f32 0.0, %v1624
        %v1626 = vpop.f32.mrf.mxu0
        %v1627 = vadd.f32 0.0, %v1626
        %1628 = vmatprep.mubr.f32.mxu0 0.0
        %1629 = vmatmul.mubr.f32.gmra.mxu0 %v1460
        %v1630 = vpop.f32.mrf.mxu0
        %v1631 = vadd.f32 0.0, %v1630
        %v1632 = vpop.f32.mrf.mxu0
        %v1633 = vadd.f32 0.0, %v1632
        %1634 = vmatprep.mubr.f32.mxu0 0.0
        %1635 = vmatmul.mubr.f32.gmra.mxu0 %v1463
        %v1636 = vpop.f32.mrf.mxu0
        %v1637 = vadd.f32 0.0, %v1636
        %v1638 = vpop.f32.mrf.mxu0
        %v1639 = vadd.f32 0.0, %v1638
        %1640 = vmatprep.mubr.f32.mxu0 0.0
        %1641 = vmatmul.mubr.f32.gmra.mxu0 %v1466
        %v1642 = vpop.f32.mrf.mxu0
        %v1643 = vadd.f32 0.0, %v1642
        %v1644 = vpop.f32.mrf.mxu0
        %v1645 = vadd.f32 0.0, %v1644
        %1646 = vmatprep.mubr.f32.mxu0 0.0
        %1647 = vmatmul.mubr.f32.gmra.mxu0 %v1469
        %v1648 = vpop.f32.mrf.mxu0
        %v1649 = vadd.f32 0.0, %v1648
        %v1650 = vpop.f32.mrf.mxu0
        %v1651 = vadd.f32 0.0, %v1650
        %1652 = vmatprep.mubr.f32.mxu0 0.0
        %1653 = vmatmul.mubr.f32.gmra.mxu0 %v1472
        %v1654 = vpop.f32.mrf.mxu0
        %v1655 = vadd.f32 0.0, %v1654
        %v1656 = vpop.f32.mrf.mxu0
        %v1657 = vadd.f32 0.0, %v1656
        %1658 = vmatprep.mubr.f32.mxu0 0.0
        %1659 = vmatmul.mubr.f32.gmra.mxu0 %v1475
        %v1660 = vpop.f32.mrf.mxu0
        %v1661 = vadd.f32 0.0, %v1660
        %v1662 = vpop.f32.mrf.mxu0
        %v1663 = vadd.f32 0.0, %v1662
        %1664 = vmatprep.mubr.f32.mxu0 0.0
        %1665 = vmatmul.mubr.f32.gmra.mxu0 %v1478
        %v1666 = vpop.f32.mrf.mxu0
        %v1667 = vadd.f32 0.0, %v1666
        %v1668 = vpop.f32.mrf.mxu0
        %v1669 = vadd.f32 0.0, %v1668
        %1670 = vmatprep.mubr.f32.mxu0 0.0
        %1671 = vmatmul.mubr.f32.gmra.mxu0 %v1481
        %v1672 = vpop.f32.mrf.mxu0
        %v1673 = vadd.f32 0.0, %v1672
        %v1674 = vpop.f32.mrf.mxu0
        %v1675 = vadd.f32 0.0, %v1674
        %1676 = vmatprep.mubr.f32.mxu0 0.0
        %1677 = vmatmul.mubr.f32.gmra.mxu0 %v1484
        %v1678 = vpop.f32.mrf.mxu0
        %v1679 = vadd.f32 0.0, %v1678
        %v1680 = vpop.f32.mrf.mxu0
        %v1681 = vadd.f32 0.0, %v1680
        %1682 = vmatprep.mubr.f32.mxu0 0.0
        %1683 = vmatmul.mubr.f32.gmra.mxu0 %v1487
        %v1684 = vpop.f32.mrf.mxu0
        %v1685 = vadd.f32 0.0, %v1684
        %v1686 = vpop.f32.mrf.mxu0
        %v1687 = vadd.f32 0.0, %v1686
        %1688 = vmatprep.mubr.f32.mxu0 0.0
        %1689 = vmatmul.mubr.f32.gmra.mxu0 %v1490
        %v1690 = vpop.f32.mrf.mxu0
        %v1691 = vadd.f32 0.0, %v1690
        %v1692 = vpop.f32.mrf.mxu0
        %v1693 = vadd.f32 0.0, %v1692
        %1694 = vmatprep.mubr.f32.mxu0 0.0
        %1695 = vmatmul.mubr.f32.gmra.mxu0 %v1493
        %v1696 = vpop.f32.mrf.mxu0
        %v1697 = vadd.f32 0.0, %v1696
        %v1698 = vpop.f32.mrf.mxu0
        %v1699 = vadd.f32 0.0, %v1698
        %1700 = vmatprep.mubr.f32.mxu0 0.0
        %1701 = vmatmul.mubr.f32.gmra.mxu0 %v1496
        %v1702 = vpop.f32.mrf.mxu0
        %v1703 = vadd.f32 0.0, %v1702
        %v1704 = vpop.f32.mrf.mxu0
        %v1705 = vadd.f32 0.0, %v1704
        %1706 = vmatprep.mubr.f32.mxu0 0.0
        %1707 = vmatmul.mubr.f32.gmra.mxu0 %v1499
        %v1708 = vpop.f32.mrf.mxu0
        %v1709 = vadd.f32 0.0, %v1708
        %v1710 = vpop.f32.mrf.mxu0
        %v1711 = vadd.f32 0.0, %v1710
        %1712 = vmatprep.mubr.f32.mxu0 0.0
        %1713 = vmatmul.mubr.f32.gmra.mxu0 %v1502
        %v1714 = vpop.f32.mrf.mxu0
        %v1715 = vadd.f32 0.0, %v1714
        %v1716 = vpop.f32.mrf.mxu0
        %v1717 = vadd.f32 0.0, %v1716
        %1718 = vdwg.mxu0
        %v1719 = vadd.f32 %v1351, %v1577
        %v1720 = vadd.f32 %v1352, %v1579
        %v1721 = vadd.f32 %v1353, %v1583
        %v1722 = vadd.f32 %v1354, %v1585
        %v1723 = vadd.f32 %v1355, %v1589
        %v1724 = vadd.f32 %v1356, %v1591
        %v1725 = vadd.f32 %v1357, %v1595
        %v1726 = vadd.f32 %v1358, %v1597
        %v1727 = vadd.f32 %v1359, %v1601
        %v1728 = vadd.f32 %v1360, %v1603
        %v1729 = vadd.f32 %v1361, %v1607
        %v1730 = vadd.f32 %v1362, %v1609
        %v1731 = vadd.f32 %v1363, %v1613
        %v1732 = vadd.f32 %v1364, %v1615
        %v1733 = vadd.f32 %v1365, %v1619
        %v1734 = vadd.f32 %v1366, %v1621
        %v1735 = vadd.f32 %v1367, %v1625
        %v1736 = vadd.f32 %v1368, %v1627
        %v1737 = vadd.f32 %v1369, %v1631
        %v1738 = vadd.f32 %v1370, %v1633
        %v1739 = vadd.f32 %v1371, %v1637
        %v1740 = vadd.f32 %v1372, %v1639
        %v1741 = vadd.f32 %v1373, %v1643
        %v1742 = vadd.f32 %v1374, %v1645
        %v1743 = vadd.f32 %v1375, %v1649
        %v1744 = vadd.f32 %v1376, %v1651
        %v1745 = vadd.f32 %v1377, %v1655
        %v1746 = vadd.f32 %v1378, %v1657
        %v1747 = vadd.f32 %v1379, %v1661
        %v1748 = vadd.f32 %v1380, %v1663
        %v1749 = vadd.f32 %v1381, %v1667
        %v1750 = vadd.f32 %v1382, %v1669
        %v1751 = vadd.f32 %v1383, %v1673
        %v1752 = vadd.f32 %v1384, %v1675
        %v1753 = vadd.f32 %v1385, %v1679
        %v1754 = vadd.f32 %v1386, %v1681
        %v1755 = vadd.f32 %v1387, %v1685
        %v1756 = vadd.f32 %v1388, %v1687
        %v1757 = vadd.f32 %v1389, %v1691
        %v1758 = vadd.f32 %v1390, %v1693
        %v1759 = vadd.f32 %v1391, %v1697
        %v1760 = vadd.f32 %v1392, %v1699
        %v1761 = vadd.f32 %v1393, %v1703
        %v1762 = vadd.f32 %v1394, %v1705
        %v1763 = vadd.f32 %v1395, %v1709
        %v1764 = vadd.f32 %v1396, %v1711
        %v1765 = vadd.f32 %v1397, %v1715
        %v1766 = vadd.f32 %v1398, %v1717
        %v1767 = vld [vmem:[%s388 + $0x4] sm:$0xff]
        %v1768 = vld [vmem:[%s388 + $0xc] sm:$0xff]
        %v1769 = vld [vmem:[%s388 + $0x14] sm:$0xff]
        %v1770 = vld [vmem:[%s388 + $0x24] sm:$0xff]
        %v1771 = vld [vmem:[%s388 + $0x2c] sm:$0xff]
        %v1772 = vld [vmem:[%s388 + $0x34] sm:$0xff]
        %v1773 = vld [vmem:[%s388 + $0x44] sm:$0xff]
        %v1774 = vld [vmem:[%s388 + $0x4c] sm:$0xff]
        %v1775 = vld [vmem:[%s388 + $0x54] sm:$0xff]
        %v1776 = vld [vmem:[%s388 + $0x64] sm:$0xff]
        %v1777 = vld [vmem:[%s388 + $0x6c] sm:$0xff]
        %v1778 = vld [vmem:[%s388 + $0x74] sm:$0xff]
        %v1779 = vld [vmem:[%s388 + $0x84] sm:$0xff]
        %v1780 = vld [vmem:[%s388 + $0x8c] sm:$0xff]
        %v1781 = vld [vmem:[%s388 + $0x94] sm:$0xff]
        %v1782 = vld [vmem:[%s388 + $0xa4] sm:$0xff]
        %v1783 = vld [vmem:[%s388 + $0xac] sm:$0xff]
        %v1784 = vld [vmem:[%s388 + $0xb4] sm:$0xff]
        %v1785 = vld [vmem:[%s388 + $0xc4] sm:$0xff]
        %v1786 = vld [vmem:[%s388 + $0xcc] sm:$0xff]
        %v1787 = vld [vmem:[%s388 + $0xd4] sm:$0xff]
        %v1788 = vld [vmem:[%s388 + $0xe4] sm:$0xff]
        %v1789 = vld [vmem:[%s388 + $0xec] sm:$0xff]
        %v1790 = vld [vmem:[%s388 + $0xf4] sm:$0xff]
        %s1791 = scalar_lea.vmem %s1, 256
        %v1792 = vld [vmem:[%s1791] sm:$0xff]
        %v1793 = vld [vmem:[%s1791 + $0x8] sm:$0xff]
        %v1794 = vld [vmem:[%s1791 + $0x10] sm:$0xff]
        %v1795 = vld [vmem:[%s1791 + $0x18] sm:$0xff]
        %v1796 = vld [vmem:[%s1791 + $0x20] sm:$0xff]
        %v1797 = vld [vmem:[%s1791 + $0x28] sm:$0xff]
        %v1798 = vld [vmem:[%s1791 + $0x30] sm:$0xf]
        %v1799 = vld [vmem:[%s1791 + $0x38] sm:$0xf]
        %v1801 = vsel %vm455, %v1767, 0
        %v1804 = vsel %vm455, %v1768, 0
        %v1807 = vsel %vm455, %v1769, 0
        %v1810 = vsel %vm455, %v1770, 0
        %v1813 = vsel %vm455, %v1771, 0
        %v1816 = vsel %vm455, %v1772, 0
        %v1819 = vsel %vm455, %v1773, 0
        %v1822 = vsel %vm455, %v1774, 0
        %v1825 = vsel %vm455, %v1775, 0
        %v1828 = vsel %vm455, %v1776, 0
        %v1831 = vsel %vm455, %v1777, 0
        %v1834 = vsel %vm455, %v1778, 0
        %v1837 = vsel %vm455, %v1779, 0
        %v1840 = vsel %vm455, %v1780, 0
        %v1843 = vsel %vm455, %v1781, 0
        %v1846 = vsel %vm455, %v1782, 0
        %v1849 = vsel %vm455, %v1783, 0
        %v1852 = vsel %vm455, %v1784, 0
        %v1855 = vsel %vm455, %v1785, 0
        %v1858 = vsel %vm455, %v1786, 0
        %v1861 = vsel %vm455, %v1787, 0
        %v1864 = vsel %vm455, %v1788, 0
        %v1867 = vsel %vm455, %v1789, 0
        %v1870 = vsel %vm455, %v1790, 0
        %v1873 = vsel %vm528, %v1798, 0
        %v1876 = vsel %vm528, %v1799, 0
        %1878 = vmatprep.subr.mxu0 0.0
        %1879 = vmatpush1.msra.mxu0 0.0
        %1880 = vmatprep.subr.mxu0 0.0
        %1881 = vmatpush1.msra.mxu0 0.0
        %1882 = vmatprep.subr.mxu0 0.0
        %1883 = vmatpush1.msra.mxu0 0.0
        %1884 = vmatprep.subr.mxu0 0.0
        %1885 = vmatpush1.msra.mxu0 0.0
        %1886 = vmatprep.subr.mxu0 0.0
        %1887 = vmatpush1.msra.mxu0 0.0
        %1888 = vmatprep.subr.mxu0 0.0
        %1889 = vmatpush1.msra.mxu0 0.0
        %1890 = vmatprep.subr.mxu0 0.0
        %1891 = vmatpush1.msra.mxu0 0.0
        %1892 = vmatprep.subr.mxu0 0.0
        %1893 = vmatpush1.msra.mxu0 0.0
        %1894 = vmatprep.subr.mxu0 0.0
        %1895 = vmatpush1.msra.mxu0 0.0
        %1896 = vmatprep.subr.mxu0 0.0
        %1897 = vmatpush1.msra.mxu0 0.0
        %1898 = vmatprep.subr.mxu0 0.0
        %1899 = vmatpush1.msra.mxu0 0.0
        %1900 = vmatprep.subr.mxu0 0.0
        %1901 = vmatpush1.msra.mxu0 0.0
        %1902 = vmatprep.subr.mxu0 %v1876
        %1903 = vmatpush1.msra.mxu0 %v1873
        %1904 = vmatprep.subr.mxu0 %v1797
        %1905 = vmatpush1.msra.mxu0 %v1796
        %1906 = vmatprep.subr.mxu0 %v1795
        %1907 = vmatpush1.msra.mxu0 %v1794
        %1908 = vmatprep.subr.mxu0 %v1793
        %1909 = vmatpush1.msra.mxu0 %v1792
        %1910 = vmatprep.subr.mxu0 0.0
        %1911 = vmatpush2.msra.mxu0 0.0
        %1912 = vmatprep.subr.mxu0 0.0
        %1913 = vmatpush2.msra.mxu0 0.0
        %1914 = vmatprep.subr.mxu0 0.0
        %1915 = vmatpush2.msra.mxu0 0.0
        %1916 = vmatprep.subr.mxu0 0.0
        %1917 = vmatpush2.msra.mxu0 0.0
        %1918 = vmatprep.subr.mxu0 0.0
        %1919 = vmatpush2.msra.mxu0 0.0
        %1920 = vmatprep.subr.mxu0 0.0
        %1921 = vmatpush2.msra.mxu0 0.0
        %1922 = vmatprep.subr.mxu0 0.0
        %1923 = vmatpush2.msra.mxu0 0.0
        %1924 = vmatprep.subr.mxu0 0.0
        %1925 = vmatpush2.msra.mxu0 0.0
        %1926 = vmatprep.subr.mxu0 0.0
        %1927 = vmatpush2.msra.mxu0 0.0
        %1928 = vmatprep.subr.mxu0 0.0
        %1929 = vmatpush2.msra.mxu0 0.0
        %1930 = vmatprep.subr.mxu0 0.0
        %1931 = vmatpush2.msra.mxu0 0.0
        %1932 = vmatprep.subr.mxu0 0.0
        %1933 = vmatpush2.msra.mxu0 0.0
        %1934 = vmatprep.subr.mxu0 0.0
        %1935 = vmatpush2.msra.mxu0 0.0
        %1936 = vmatprep.subr.mxu0 0.0
        %1937 = vmatpush2.msra.mxu0 0.0
        %1938 = vmatprep.subr.mxu0 0.0
        %1939 = vmatpush2.msra.mxu0 0.0
        %1940 = vmatprep.subr.mxu0 0.0
        %1941 = vmatpush2.msra.mxu0 0.0
        %1942 = vmatprep.mubr.f32.mxu0 0.0
        %1943 = vmatmul.mubr.f32.gmra.mxu0 %v1801
        %v1944 = vpop.f32.mrf.mxu0
        %v1945 = vadd.f32 0.0, %v1944
        %v1946 = vpop.f32.mrf.mxu0
        %v1947 = vadd.f32 0.0, %v1946
        %1948 = vmatprep.mubr.f32.mxu0 0.0
        %1949 = vmatmul.mubr.f32.gmra.mxu0 %v1804
        %v1950 = vpop.f32.mrf.mxu0
        %v1951 = vadd.f32 0.0, %v1950
        %v1952 = vpop.f32.mrf.mxu0
        %v1953 = vadd.f32 0.0, %v1952
        %1954 = vmatprep.mubr.f32.mxu0 0.0
        %1955 = vmatmul.mubr.f32.gmra.mxu0 %v1807
        %v1956 = vpop.f32.mrf.mxu0
        %v1957 = vadd.f32 0.0, %v1956
        %v1958 = vpop.f32.mrf.mxu0
        %v1959 = vadd.f32 0.0, %v1958
        %1960 = vmatprep.mubr.f32.mxu0 0.0
        %1961 = vmatmul.mubr.f32.gmra.mxu0 %v1810
        %v1962 = vpop.f32.mrf.mxu0
        %v1963 = vadd.f32 0.0, %v1962
        %v1964 = vpop.f32.mrf.mxu0
        %v1965 = vadd.f32 0.0, %v1964
        %1966 = vmatprep.mubr.f32.mxu0 0.0
        %1967 = vmatmul.mubr.f32.gmra.mxu0 %v1813
        %v1968 = vpop.f32.mrf.mxu0
        %v1969 = vadd.f32 0.0, %v1968
        %v1970 = vpop.f32.mrf.mxu0
        %v1971 = vadd.f32 0.0, %v1970
        %1972 = vmatprep.mubr.f32.mxu0 0.0
        %1973 = vmatmul.mubr.f32.gmra.mxu0 %v1816
        %v1974 = vpop.f32.mrf.mxu0
        %v1975 = vadd.f32 0.0, %v1974
        %v1976 = vpop.f32.mrf.mxu0
        %v1977 = vadd.f32 0.0, %v1976
        %1978 = vmatprep.mubr.f32.mxu0 0.0
        %1979 = vmatmul.mubr.f32.gmra.mxu0 %v1819
        %v1980 = vpop.f32.mrf.mxu0
        %v1981 = vadd.f32 0.0, %v1980
        %v1982 = vpop.f32.mrf.mxu0
        %v1983 = vadd.f32 0.0, %v1982
        %1984 = vmatprep.mubr.f32.mxu0 0.0
        %1985 = vmatmul.mubr.f32.gmra.mxu0 %v1822
        %v1986 = vpop.f32.mrf.mxu0
        %v1987 = vadd.f32 0.0, %v1986
        %v1988 = vpop.f32.mrf.mxu0
        %v1989 = vadd.f32 0.0, %v1988
        %1990 = vmatprep.mubr.f32.mxu0 0.0
        %1991 = vmatmul.mubr.f32.gmra.mxu0 %v1825
        %v1992 = vpop.f32.mrf.mxu0
        %v1993 = vadd.f32 0.0, %v1992
        %v1994 = vpop.f32.mrf.mxu0
        %v1995 = vadd.f32 0.0, %v1994
        %1996 = vmatprep.mubr.f32.mxu0 0.0
        %1997 = vmatmul.mubr.f32.gmra.mxu0 %v1828
        %v1998 = vpop.f32.mrf.mxu0
        %v1999 = vadd.f32 0.0, %v1998
        %v2000 = vpop.f32.mrf.mxu0
        %v2001 = vadd.f32 0.0, %v2000
        %2002 = vmatprep.mubr.f32.mxu0 0.0
        %2003 = vmatmul.mubr.f32.gmra.mxu0 %v1831
        %v2004 = vpop.f32.mrf.mxu0
        %v2005 = vadd.f32 0.0, %v2004
        %v2006 = vpop.f32.mrf.mxu0
        %v2007 = vadd.f32 0.0, %v2006
        %2008 = vmatprep.mubr.f32.mxu0 0.0
        %2009 = vmatmul.mubr.f32.gmra.mxu0 %v1834
        %v2010 = vpop.f32.mrf.mxu0
        %v2011 = vadd.f32 0.0, %v2010
        %v2012 = vpop.f32.mrf.mxu0
        %v2013 = vadd.f32 0.0, %v2012
        %2014 = vmatprep.mubr.f32.mxu0 0.0
        %2015 = vmatmul.mubr.f32.gmra.mxu0 %v1837
        %v2016 = vpop.f32.mrf.mxu0
        %v2017 = vadd.f32 0.0, %v2016
        %v2018 = vpop.f32.mrf.mxu0
        %v2019 = vadd.f32 0.0, %v2018
        %2020 = vmatprep.mubr.f32.mxu0 0.0
        %2021 = vmatmul.mubr.f32.gmra.mxu0 %v1840
        %v2022 = vpop.f32.mrf.mxu0
        %v2023 = vadd.f32 0.0, %v2022
        %v2024 = vpop.f32.mrf.mxu0
        %v2025 = vadd.f32 0.0, %v2024
        %2026 = vmatprep.mubr.f32.mxu0 0.0
        %2027 = vmatmul.mubr.f32.gmra.mxu0 %v1843
        %v2028 = vpop.f32.mrf.mxu0
        %v2029 = vadd.f32 0.0, %v2028
        %v2030 = vpop.f32.mrf.mxu0
        %v2031 = vadd.f32 0.0, %v2030
        %2032 = vmatprep.mubr.f32.mxu0 0.0
        %2033 = vmatmul.mubr.f32.gmra.mxu0 %v1846
        %v2034 = vpop.f32.mrf.mxu0
        %v2035 = vadd.f32 0.0, %v2034
        %v2036 = vpop.f32.mrf.mxu0
        %v2037 = vadd.f32 0.0, %v2036
        %2038 = vmatprep.mubr.f32.mxu0 0.0
        %2039 = vmatmul.mubr.f32.gmra.mxu0 %v1849
        %v2040 = vpop.f32.mrf.mxu0
        %v2041 = vadd.f32 0.0, %v2040
        %v2042 = vpop.f32.mrf.mxu0
        %v2043 = vadd.f32 0.0, %v2042
        %2044 = vmatprep.mubr.f32.mxu0 0.0
        %2045 = vmatmul.mubr.f32.gmra.mxu0 %v1852
        %v2046 = vpop.f32.mrf.mxu0
        %v2047 = vadd.f32 0.0, %v2046
        %v2048 = vpop.f32.mrf.mxu0
        %v2049 = vadd.f32 0.0, %v2048
        %2050 = vmatprep.mubr.f32.mxu0 0.0
        %2051 = vmatmul.mubr.f32.gmra.mxu0 %v1855
        %v2052 = vpop.f32.mrf.mxu0
        %v2053 = vadd.f32 0.0, %v2052
        %v2054 = vpop.f32.mrf.mxu0
        %v2055 = vadd.f32 0.0, %v2054
        %2056 = vmatprep.mubr.f32.mxu0 0.0
        %2057 = vmatmul.mubr.f32.gmra.mxu0 %v1858
        %v2058 = vpop.f32.mrf.mxu0
        %v2059 = vadd.f32 0.0, %v2058
        %v2060 = vpop.f32.mrf.mxu0
        %v2061 = vadd.f32 0.0, %v2060
        %2062 = vmatprep.mubr.f32.mxu0 0.0
        %2063 = vmatmul.mubr.f32.gmra.mxu0 %v1861
        %v2064 = vpop.f32.mrf.mxu0
        %v2065 = vadd.f32 0.0, %v2064
        %v2066 = vpop.f32.mrf.mxu0
        %v2067 = vadd.f32 0.0, %v2066
        %2068 = vmatprep.mubr.f32.mxu0 0.0
        %2069 = vmatmul.mubr.f32.gmra.mxu0 %v1864
        %v2070 = vpop.f32.mrf.mxu0
        %v2071 = vadd.f32 0.0, %v2070
        %v2072 = vpop.f32.mrf.mxu0
        %v2073 = vadd.f32 0.0, %v2072
        %2074 = vmatprep.mubr.f32.mxu0 0.0
        %2075 = vmatmul.mubr.f32.gmra.mxu0 %v1867
        %v2076 = vpop.f32.mrf.mxu0
        %v2077 = vadd.f32 0.0, %v2076
        %v2078 = vpop.f32.mrf.mxu0
        %v2079 = vadd.f32 0.0, %v2078
        %2080 = vmatprep.mubr.f32.mxu0 0.0
        %2081 = vmatmul.mubr.f32.gmra.mxu0 %v1870
        %v2082 = vpop.f32.mrf.mxu0
        %v2083 = vadd.f32 0.0, %v2082
        %v2084 = vpop.f32.mrf.mxu0
        %v2085 = vadd.f32 0.0, %v2084
        %2086 = vdwg.mxu0
        %v2087 = vadd.f32 %v1719, %v1945
        %v2088 = vadd.f32 %v1720, %v1947
        %v2089 = vadd.f32 %v1721, %v1951
        %v2090 = vadd.f32 %v1722, %v1953
        %v2091 = vadd.f32 %v1723, %v1957
        %v2092 = vadd.f32 %v1724, %v1959
        %v2093 = vadd.f32 %v1725, %v1963
        %v2094 = vadd.f32 %v1726, %v1965
        %v2095 = vadd.f32 %v1727, %v1969
        %v2096 = vadd.f32 %v1728, %v1971
        %v2097 = vadd.f32 %v1729, %v1975
        %v2098 = vadd.f32 %v1730, %v1977
        %v2099 = vadd.f32 %v1731, %v1981
        %v2100 = vadd.f32 %v1732, %v1983
        %v2101 = vadd.f32 %v1733, %v1987
        %v2102 = vadd.f32 %v1734, %v1989
        %v2103 = vadd.f32 %v1735, %v1993
        %v2104 = vadd.f32 %v1736, %v1995
        %v2105 = vadd.f32 %v1737, %v1999
        %v2106 = vadd.f32 %v1738, %v2001
        %v2107 = vadd.f32 %v1739, %v2005
        %v2108 = vadd.f32 %v1740, %v2007
        %v2109 = vadd.f32 %v1741, %v2011
        %v2110 = vadd.f32 %v1742, %v2013
        %v2111 = vadd.f32 %v1743, %v2017
        %v2112 = vadd.f32 %v1744, %v2019
        %v2113 = vadd.f32 %v1745, %v2023
        %v2114 = vadd.f32 %v1746, %v2025
        %v2115 = vadd.f32 %v1747, %v2029
        %v2116 = vadd.f32 %v1748, %v2031
        %v2117 = vadd.f32 %v1749, %v2035
        %v2118 = vadd.f32 %v1750, %v2037
        %v2119 = vadd.f32 %v1751, %v2041
        %v2120 = vadd.f32 %v1752, %v2043
        %v2121 = vadd.f32 %v1753, %v2047
        %v2122 = vadd.f32 %v1754, %v2049
        %v2123 = vadd.f32 %v1755, %v2053
        %v2124 = vadd.f32 %v1756, %v2055
        %v2125 = vadd.f32 %v1757, %v2059
        %v2126 = vadd.f32 %v1758, %v2061
        %v2127 = vadd.f32 %v1759, %v2065
        %v2128 = vadd.f32 %v1760, %v2067
        %v2129 = vadd.f32 %v1761, %v2071
        %v2130 = vadd.f32 %v1762, %v2073
        %v2131 = vadd.f32 %v1763, %v2077
        %v2132 = vadd.f32 %v1764, %v2079
        %v2133 = vadd.f32 %v1765, %v2083
        %v2134 = vadd.f32 %v1766, %v2085
        %v2135 = vlaneseq
        %v2136 = vshrl.u32 %v2135, 7
        %v2137 = vadd.s32 %v2136, 8
        %v2138 = vadd.s32 %v2136, 16
        %v2139 = vadd.s32 %v2136, 24
        %v2140 = vadd.s32 %v2136, 32
        %v2141 = vadd.s32 %v2136, 40
        %v2142 = vadd.s32 %v2136, 48
        %v2143 = vadd.s32 %v2136, 56
        %v2144 = vadd.s32 %v2136, 64
        %v2145 = vadd.s32 %v2136, 72
        %v2146 = vadd.s32 %v2136, 80
        %v2147 = vadd.s32 %v2136, 88
        %v2148 = vadd.s32 %v2136, 96
        %v2149 = vadd.s32 %v2136, 104
        %v2150 = vadd.s32 %v2136, 112
        %v2151 = vadd.s32 %v2136, 120
        %v2152 = vadd.s32 %v2136, 128
        %v2153 = vadd.s32 %v2136, 136
        %v2154 = vlaneseq
        %v2155 = vand.u32 %v2154, 127
        %v2156 = vmul.u32 %v2155, 2
        %vm2157 = vcmp.eq.s32.totalorder %v2136, %v2156
        %vm2158 = vcmp.eq.s32.totalorder %v2137, %v2156
        %vm2159 = vcmp.eq.s32.totalorder %v2138, %v2156
        %vm2160 = vcmp.eq.s32.totalorder %v2139, %v2156
        %vm2161 = vcmp.eq.s32.totalorder %v2140, %v2156
        %vm2162 = vcmp.eq.s32.totalorder %v2141, %v2156
        %vm2163 = vcmp.eq.s32.totalorder %v2142, %v2156
        %vm2164 = vcmp.eq.s32.totalorder %v2143, %v2156
        %vm2165 = vcmp.eq.s32.totalorder %v2144, %v2156
        %vm2166 = vcmp.eq.s32.totalorder %v2145, %v2156
        %vm2167 = vcmp.eq.s32.totalorder %v2146, %v2156
        %vm2168 = vcmp.eq.s32.totalorder %v2147, %v2156
        %vm2169 = vcmp.eq.s32.totalorder %v2148, %v2156
        %vm2170 = vcmp.eq.s32.totalorder %v2149, %v2156
        %vm2171 = vcmp.eq.s32.totalorder %v2150, %v2156
        %vm2172 = vcmp.eq.s32.totalorder %v2151, %v2156
        %vm2173 = vcmp.eq.s32.totalorder %v2152, %v2156
        %vm2174 = vcmp.eq.s32.totalorder %v2153, %v2156
        %v2175 = vsel %vm2157, 1, 0
        %v2176 = vsel %vm2158, 1, 0
        %v2177 = vsel %vm2159, 1, 0
        %v2178 = vsel %vm2160, 1, 0
        %v2179 = vsel %vm2161, 1, 0
        %v2180 = vsel %vm2162, 1, 0
        %v2181 = vsel %vm2163, 1, 0
        %v2182 = vsel %vm2164, 1, 0
        %v2183 = vsel %vm2165, 1, 0
        %v2184 = vsel %vm2166, 1, 0
        %v2185 = vsel %vm2167, 1, 0
        %v2186 = vsel %vm2168, 1, 0
        %v2187 = vsel %vm2169, 1, 0
        %v2188 = vsel %vm2170, 1, 0
        %v2189 = vsel %vm2171, 1, 0
        %v2190 = vsel %vm2172, 1, 0
        %v2191 = vsel %vm2173, 1, 0
        %v2192 = vsel %vm2174, 1, 0
        %v2193 = vcvt.s32.f32 %v2175
        %v2194 = vcvt.s32.f32 %v2176
        %v2195 = vcvt.s32.f32 %v2177
        %v2196 = vcvt.s32.f32 %v2178
        %v2197 = vcvt.s32.f32 %v2179
        %v2198 = vcvt.s32.f32 %v2180
        %v2199 = vcvt.s32.f32 %v2181
        %v2200 = vcvt.s32.f32 %v2182
        %v2201 = vcvt.s32.f32 %v2183
        %v2202 = vcvt.s32.f32 %v2184
        %v2203 = vcvt.s32.f32 %v2185
        %v2204 = vcvt.s32.f32 %v2186
        %v2205 = vcvt.s32.f32 %v2187
        %v2206 = vcvt.s32.f32 %v2188
        %v2207 = vcvt.s32.f32 %v2189
        %v2208 = vcvt.s32.f32 %v2190
        %v2209 = vcvt.s32.f32 %v2191
        %v2210 = vcvt.s32.f32 %v2192
        %vm2211 = vcmask 130048
        %v2213 = vsel %vm2211, %v2088, 0
        %v2216 = vsel %vm2211, %v2090, 0
        %v2219 = vsel %vm2211, %v2092, 0
        %v2222 = vsel %vm2211, %v2094, 0
        %v2225 = vsel %vm2211, %v2096, 0
        %v2228 = vsel %vm2211, %v2098, 0
        %v2231 = vsel %vm2211, %v2100, 0
        %v2234 = vsel %vm2211, %v2102, 0
        %v2237 = vsel %vm2211, %v2104, 0
        %v2240 = vsel %vm2211, %v2106, 0
        %v2243 = vsel %vm2211, %v2108, 0
        %v2246 = vsel %vm2211, %v2110, 0
        %v2249 = vsel %vm2211, %v2112, 0
        %v2252 = vsel %vm2211, %v2114, 0
        %v2255 = vsel %vm2211, %v2116, 0
        %v2258 = vsel %vm2211, %v2118, 0
        %v2261 = vsel %vm2211, %v2120, 0
        %v2264 = vsel %vm2211, %v2122, 0
        %v2267 = vsel %vm2211, %v2124, 0
        %v2270 = vsel %vm2211, %v2126, 0
        %v2273 = vsel %vm2211, %v2128, 0
        %v2276 = vsel %vm2211, %v2130, 0
        %v2279 = vsel %vm2211, %v2132, 0
        %v2282 = vsel %vm2211, %v2134, 0
        %2284 = vmatprep.subr.mxu0 0.0
        %2285 = vmatpush1.msra.mxu0 %v2208
        %2286 = vmatprep.subr.mxu0 0.0
        %2287 = vmatpush1.msra.mxu0 %v2207
        %2288 = vmatprep.subr.mxu0 0.0
        %2289 = vmatpush1.msra.mxu0 %v2206
        %2290 = vmatprep.subr.mxu0 0.0
        %2291 = vmatpush1.msra.mxu0 %v2205
        %2292 = vmatprep.subr.mxu0 0.0
        %2293 = vmatpush1.msra.mxu0 %v2204
        %2294 = vmatprep.subr.mxu0 0.0
        %2295 = vmatpush1.msra.mxu0 %v2203
        %2296 = vmatprep.subr.mxu0 0.0
        %2297 = vmatpush1.msra.mxu0 %v2202
        %2298 = vmatprep.subr.mxu0 0.0
        %2299 = vmatpush1.msra.mxu0 %v2201
        %2300 = vmatprep.subr.mxu0 0.0
        %2301 = vmatpush1.msra.mxu0 %v2200
        %2302 = vmatprep.subr.mxu0 0.0
        %2303 = vmatpush1.msra.mxu0 %v2199
        %2304 = vmatprep.subr.mxu0 0.0
        %2305 = vmatpush1.msra.mxu0 %v2198
        %2306 = vmatprep.subr.mxu0 0.0
        %2307 = vmatpush1.msra.mxu0 %v2197
        %2308 = vmatprep.subr.mxu0 0.0
        %2309 = vmatpush1.msra.mxu0 %v2196
        %2310 = vmatprep.subr.mxu0 0.0
        %2311 = vmatpush1.msra.mxu0 %v2195
        %2312 = vmatprep.subr.mxu0 0.0
        %2313 = vmatpush1.msra.mxu0 %v2194
        %2314 = vmatprep.subr.mxu0 0.0
        %2315 = vmatpush1.msra.mxu0 %v2193
        %2316 = vmatprep.subr.mxu0 0.0
        %2317 = vmatpush2.msra.mxu0 0.0
        %2318 = vmatprep.subr.mxu0 0.0
        %2319 = vmatpush2.msra.mxu0 0.0
        %2320 = vmatprep.subr.mxu0 0.0
        %2321 = vmatpush2.msra.mxu0 0.0
        %2322 = vmatprep.subr.mxu0 0.0
        %2323 = vmatpush2.msra.mxu0 0.0
        %2324 = vmatprep.subr.mxu0 0.0
        %2325 = vmatpush2.msra.mxu0 0.0
        %2326 = vmatprep.subr.mxu0 0.0
        %2327 = vmatpush2.msra.mxu0 0.0
        %2328 = vmatprep.subr.mxu0 0.0
        %2329 = vmatpush2.msra.mxu0 0.0
        %2330 = vmatprep.subr.mxu0 0.0
        %2331 = vmatpush2.msra.mxu0 0.0
        %2332 = vmatprep.subr.mxu0 0.0
        %2333 = vmatpush2.msra.mxu0 0.0
        %2334 = vmatprep.subr.mxu0 0.0
        %2335 = vmatpush2.msra.mxu0 0.0
        %2336 = vmatprep.subr.mxu0 0.0
        %2337 = vmatpush2.msra.mxu0 0.0
        %2338 = vmatprep.subr.mxu0 0.0
        %2339 = vmatpush2.msra.mxu0 0.0
        %2340 = vmatprep.subr.mxu0 0.0
        %2341 = vmatpush2.msra.mxu0 0.0
        %2342 = vmatprep.subr.mxu0 0.0
        %2343 = vmatpush2.msra.mxu0 0.0
        %2344 = vmatprep.subr.mxu0 0.0
        %2345 = vmatpush2.msra.mxu0 %v2210
        %2346 = vmatprep.subr.mxu0 0.0
        %2347 = vmatpush2.msra.mxu0 %v2209
        %2348 = vmatprep.mubr.f32.mxu0 %v2213
        %2349 = vmatmul.mubr.f32.gmra.mxu0 %v2087
        %v2350 = vpop.f32.mrf.mxu0
        %v2351 = vadd.f32 0.0, %v2350
        %v2352 = vpop.f32.mrf.mxu0
        %2353 = vmatprep.mubr.f32.mxu0 %v2216
        %2354 = vmatmul.mubr.f32.gmra.mxu0 %v2089
        %v2355 = vpop.f32.mrf.mxu0
        %v2356 = vadd.f32 0.0, %v2355
        %v2357 = vpop.f32.mrf.mxu0
        %2358 = vmatprep.mubr.f32.mxu0 %v2219
        %2359 = vmatmul.mubr.f32.gmra.mxu0 %v2091
        %v2360 = vpop.f32.mrf.mxu0
        %v2361 = vadd.f32 0.0, %v2360
        %v2362 = vpop.f32.mrf.mxu0
        %2363 = vmatprep.mubr.f32.mxu0 %v2222
        %2364 = vmatmul.mubr.f32.gmra.mxu0 %v2093
        %v2365 = vpop.f32.mrf.mxu0
        %v2366 = vadd.f32 0.0, %v2365
        %v2367 = vpop.f32.mrf.mxu0
        %2368 = vmatprep.mubr.f32.mxu0 %v2225
        %2369 = vmatmul.mubr.f32.gmra.mxu0 %v2095
        %v2370 = vpop.f32.mrf.mxu0
        %v2371 = vadd.f32 0.0, %v2370
        %v2372 = vpop.f32.mrf.mxu0
        %2373 = vmatprep.mubr.f32.mxu0 %v2228
        %2374 = vmatmul.mubr.f32.gmra.mxu0 %v2097
        %v2375 = vpop.f32.mrf.mxu0
        %v2376 = vadd.f32 0.0, %v2375
        %v2377 = vpop.f32.mrf.mxu0
        %2378 = vmatprep.mubr.f32.mxu0 %v2231
        %2379 = vmatmul.mubr.f32.gmra.mxu0 %v2099
        %v2380 = vpop.f32.mrf.mxu0
        %v2381 = vadd.f32 0.0, %v2380
        %v2382 = vpop.f32.mrf.mxu0
        %2383 = vmatprep.mubr.f32.mxu0 %v2234
        %2384 = vmatmul.mubr.f32.gmra.mxu0 %v2101
        %v2385 = vpop.f32.mrf.mxu0
        %v2386 = vadd.f32 0.0, %v2385
        %v2387 = vpop.f32.mrf.mxu0
        %2388 = vmatprep.mubr.f32.mxu0 %v2237
        %2389 = vmatmul.mubr.f32.gmra.mxu0 %v2103
        %v2390 = vpop.f32.mrf.mxu0
        %v2391 = vadd.f32 0.0, %v2390
        %v2392 = vpop.f32.mrf.mxu0
        %2393 = vmatprep.mubr.f32.mxu0 %v2240
        %2394 = vmatmul.mubr.f32.gmra.mxu0 %v2105
        %v2395 = vpop.f32.mrf.mxu0
        %v2396 = vadd.f32 0.0, %v2395
        %v2397 = vpop.f32.mrf.mxu0
        %2398 = vmatprep.mubr.f32.mxu0 %v2243
        %2399 = vmatmul.mubr.f32.gmra.mxu0 %v2107
        %v2400 = vpop.f32.mrf.mxu0
        %v2401 = vadd.f32 0.0, %v2400
        %v2402 = vpop.f32.mrf.mxu0
        %2403 = vmatprep.mubr.f32.mxu0 %v2246
        %2404 = vmatmul.mubr.f32.gmra.mxu0 %v2109
        %v2405 = vpop.f32.mrf.mxu0
        %v2406 = vadd.f32 0.0, %v2405
        %v2407 = vpop.f32.mrf.mxu0
        %2408 = vmatprep.mubr.f32.mxu0 %v2249
        %2409 = vmatmul.mubr.f32.gmra.mxu0 %v2111
        %v2410 = vpop.f32.mrf.mxu0
        %v2411 = vadd.f32 0.0, %v2410
        %v2412 = vpop.f32.mrf.mxu0
        %2413 = vmatprep.mubr.f32.mxu0 %v2252
        %2414 = vmatmul.mubr.f32.gmra.mxu0 %v2113
        %v2415 = vpop.f32.mrf.mxu0
        %v2416 = vadd.f32 0.0, %v2415
        %v2417 = vpop.f32.mrf.mxu0
        %2418 = vmatprep.mubr.f32.mxu0 %v2255
        %2419 = vmatmul.mubr.f32.gmra.mxu0 %v2115
        %v2420 = vpop.f32.mrf.mxu0
        %v2421 = vadd.f32 0.0, %v2420
        %v2422 = vpop.f32.mrf.mxu0
        %2423 = vmatprep.mubr.f32.mxu0 %v2258
        %2424 = vmatmul.mubr.f32.gmra.mxu0 %v2117
        %v2425 = vpop.f32.mrf.mxu0
        %v2426 = vadd.f32 0.0, %v2425
        %v2427 = vpop.f32.mrf.mxu0
        %2428 = vmatprep.mubr.f32.mxu0 %v2261
        %2429 = vmatmul.mubr.f32.gmra.mxu0 %v2119
        %v2430 = vpop.f32.mrf.mxu0
        %v2431 = vadd.f32 0.0, %v2430
        %v2432 = vpop.f32.mrf.mxu0
        %2433 = vmatprep.mubr.f32.mxu0 %v2264
        %2434 = vmatmul.mubr.f32.gmra.mxu0 %v2121
        %v2435 = vpop.f32.mrf.mxu0
        %v2436 = vadd.f32 0.0, %v2435
        %v2437 = vpop.f32.mrf.mxu0
        %2438 = vmatprep.mubr.f32.mxu0 %v2267
        %2439 = vmatmul.mubr.f32.gmra.mxu0 %v2123
        %v2440 = vpop.f32.mrf.mxu0
        %v2441 = vadd.f32 0.0, %v2440
        %v2442 = vpop.f32.mrf.mxu0
        %2443 = vmatprep.mubr.f32.mxu0 %v2270
        %2444 = vmatmul.mubr.f32.gmra.mxu0 %v2125
        %v2445 = vpop.f32.mrf.mxu0
        %v2446 = vadd.f32 0.0, %v2445
        %v2447 = vpop.f32.mrf.mxu0
        %2448 = vmatprep.mubr.f32.mxu0 %v2273
        %2449 = vmatmul.mubr.f32.gmra.mxu0 %v2127
        %v2450 = vpop.f32.mrf.mxu0
        %v2451 = vadd.f32 0.0, %v2450
        %v2452 = vpop.f32.mrf.mxu0
        %2453 = vmatprep.mubr.f32.mxu0 %v2276
        %2454 = vmatmul.mubr.f32.gmra.mxu0 %v2129
        %v2455 = vpop.f32.mrf.mxu0
        %v2456 = vadd.f32 0.0, %v2455
        %v2457 = vpop.f32.mrf.mxu0
        %2458 = vmatprep.mubr.f32.mxu0 %v2279
        %2459 = vmatmul.mubr.f32.gmra.mxu0 %v2131
        %v2460 = vpop.f32.mrf.mxu0
        %v2461 = vadd.f32 0.0, %v2460
        %v2462 = vpop.f32.mrf.mxu0
        %2463 = vmatprep.mubr.f32.mxu0 %v2282
        %2464 = vmatmul.mubr.f32.gmra.mxu0 %v2133
        %v2465 = vpop.f32.mrf.mxu0
        %v2466 = vadd.f32 0.0, %v2465
        %v2467 = vpop.f32.mrf.mxu0
        %2468 = vdwg.mxu0
        %v2469 = vadd.s32 %v2156, 1
        %vm2470 = vcmp.eq.s32.totalorder %v2136, %v2469
        %vm2471 = vcmp.eq.s32.totalorder %v2137, %v2469
        %vm2472 = vcmp.eq.s32.totalorder %v2138, %v2469
        %vm2473 = vcmp.eq.s32.totalorder %v2139, %v2469
        %vm2474 = vcmp.eq.s32.totalorder %v2140, %v2469
        %vm2475 = vcmp.eq.s32.totalorder %v2141, %v2469
        %vm2476 = vcmp.eq.s32.totalorder %v2142, %v2469
        %vm2477 = vcmp.eq.s32.totalorder %v2143, %v2469
        %vm2478 = vcmp.eq.s32.totalorder %v2144, %v2469
        %vm2479 = vcmp.eq.s32.totalorder %v2145, %v2469
        %vm2480 = vcmp.eq.s32.totalorder %v2146, %v2469
        %vm2481 = vcmp.eq.s32.totalorder %v2147, %v2469
        %vm2482 = vcmp.eq.s32.totalorder %v2148, %v2469
        %vm2483 = vcmp.eq.s32.totalorder %v2149, %v2469
        %vm2484 = vcmp.eq.s32.totalorder %v2150, %v2469
        %vm2485 = vcmp.eq.s32.totalorder %v2151, %v2469
        %vm2486 = vcmp.eq.s32.totalorder %v2152, %v2469
        %vm2487 = vcmp.eq.s32.totalorder %v2153, %v2469
        %v2488 = vsel %vm2470, 1, 0
        %v2489 = vsel %vm2471, 1, 0
        %v2490 = vsel %vm2472, 1, 0
        %v2491 = vsel %vm2473, 1, 0
        %v2492 = vsel %vm2474, 1, 0
        %v2493 = vsel %vm2475, 1, 0
        %v2494 = vsel %vm2476, 1, 0
        %v2495 = vsel %vm2477, 1, 0
        %v2496 = vsel %vm2478, 1, 0
        %v2497 = vsel %vm2479, 1, 0
        %v2498 = vsel %vm2480, 1, 0
        %v2499 = vsel %vm2481, 1, 0
        %v2500 = vsel %vm2482, 1, 0
        %v2501 = vsel %vm2483, 1, 0
        %v2502 = vsel %vm2484, 1, 0
        %v2503 = vsel %vm2485, 1, 0
        %v2504 = vsel %vm2486, 1, 0
        %v2505 = vsel %vm2487, 1, 0
        %v2506 = vcvt.s32.f32 %v2488
        %v2507 = vcvt.s32.f32 %v2489
        %v2508 = vcvt.s32.f32 %v2490
        %v2509 = vcvt.s32.f32 %v2491
        %v2510 = vcvt.s32.f32 %v2492
        %v2511 = vcvt.s32.f32 %v2493
        %v2512 = vcvt.s32.f32 %v2494
        %v2513 = vcvt.s32.f32 %v2495
        %v2514 = vcvt.s32.f32 %v2496
        %v2515 = vcvt.s32.f32 %v2497
        %v2516 = vcvt.s32.f32 %v2498
        %v2517 = vcvt.s32.f32 %v2499
        %v2518 = vcvt.s32.f32 %v2500
        %v2519 = vcvt.s32.f32 %v2501
        %v2520 = vcvt.s32.f32 %v2502
        %v2521 = vcvt.s32.f32 %v2503
        %v2522 = vcvt.s32.f32 %v2504
        %v2523 = vcvt.s32.f32 %v2505
        %2524 = vmatprep.subr.mxu0 0.0
        %2525 = vmatpush1.msra.mxu0 %v2521
        %2526 = vmatprep.subr.mxu0 0.0
        %2527 = vmatpush1.msra.mxu0 %v2520
        %2528 = vmatprep.subr.mxu0 0.0
        %2529 = vmatpush1.msra.mxu0 %v2519
        %2530 = vmatprep.subr.mxu0 0.0
        %2531 = vmatpush1.msra.mxu0 %v2518
        %2532 = vmatprep.subr.mxu0 0.0
        %2533 = vmatpush1.msra.mxu0 %v2517
        %2534 = vmatprep.subr.mxu0 0.0
        %2535 = vmatpush1.msra.mxu0 %v2516
        %2536 = vmatprep.subr.mxu0 0.0
        %2537 = vmatpush1.msra.mxu0 %v2515
        %2538 = vmatprep.subr.mxu0 0.0
        %2539 = vmatpush1.msra.mxu0 %v2514
        %2540 = vmatprep.subr.mxu0 0.0
        %2541 = vmatpush1.msra.mxu0 %v2513
        %2542 = vmatprep.subr.mxu0 0.0
        %2543 = vmatpush1.msra.mxu0 %v2512
        %2544 = vmatprep.subr.mxu0 0.0
        %2545 = vmatpush1.msra.mxu0 %v2511
        %2546 = vmatprep.subr.mxu0 0.0
        %2547 = vmatpush1.msra.mxu0 %v2510
        %2548 = vmatprep.subr.mxu0 0.0
        %2549 = vmatpush1.msra.mxu0 %v2509
        %2550 = vmatprep.subr.mxu0 0.0
        %2551 = vmatpush1.msra.mxu0 %v2508
        %2552 = vmatprep.subr.mxu0 0.0
        %2553 = vmatpush1.msra.mxu0 %v2507
        %2554 = vmatprep.subr.mxu0 0.0
        %2555 = vmatpush1.msra.mxu0 %v2506
        %2556 = vmatprep.subr.mxu0 0.0
        %2557 = vmatpush2.msra.mxu0 0.0
        %2558 = vmatprep.subr.mxu0 0.0
        %2559 = vmatpush2.msra.mxu0 0.0
        %2560 = vmatprep.subr.mxu0 0.0
        %2561 = vmatpush2.msra.mxu0 0.0
        %2562 = vmatprep.subr.mxu0 0.0
        %2563 = vmatpush2.msra.mxu0 0.0
        %2564 = vmatprep.subr.mxu0 0.0
        %2565 = vmatpush2.msra.mxu0 0.0
        %2566 = vmatprep.subr.mxu0 0.0
        %2567 = vmatpush2.msra.mxu0 0.0
        %2568 = vmatprep.subr.mxu0 0.0
        %2569 = vmatpush2.msra.mxu0 0.0
        %2570 = vmatprep.subr.mxu0 0.0
        %2571 = vmatpush2.msra.mxu0 0.0
        %2572 = vmatprep.subr.mxu0 0.0
        %2573 = vmatpush2.msra.mxu0 0.0
        %2574 = vmatprep.subr.mxu0 0.0
        %2575 = vmatpush2.msra.mxu0 0.0
        %2576 = vmatprep.subr.mxu0 0.0
        %2577 = vmatpush2.msra.mxu0 0.0
        %2578 = vmatprep.subr.mxu0 0.0
        %2579 = vmatpush2.msra.mxu0 0.0
        %2580 = vmatprep.subr.mxu0 0.0
        %2581 = vmatpush2.msra.mxu0 0.0
        %2582 = vmatprep.subr.mxu0 0.0
        %2583 = vmatpush2.msra.mxu0 0.0
        %2584 = vmatprep.subr.mxu0 0.0
        %2585 = vmatpush2.msra.mxu0 %v2523
        %2586 = vmatprep.subr.mxu0 0.0
        %2587 = vmatpush2.msra.mxu0 %v2522
        %2588 = vmatprep.mubr.f32.mxu0 %v2213
        %2589 = vmatmul.mubr.f32.gmra.mxu0 %v2087
        %v2590 = vpop.f32.mrf.mxu0
        %v2591 = vadd.f32 0.0, %v2590
        %v2592 = vpop.f32.mrf.mxu0
        %2593 = vmatprep.mubr.f32.mxu0 %v2216
        %2594 = vmatmul.mubr.f32.gmra.mxu0 %v2089
        %v2595 = vpop.f32.mrf.mxu0
        %v2596 = vadd.f32 0.0, %v2595
        %v2597 = vpop.f32.mrf.mxu0
        %2598 = vmatprep.mubr.f32.mxu0 %v2219
        %2599 = vmatmul.mubr.f32.gmra.mxu0 %v2091
        %v2600 = vpop.f32.mrf.mxu0
        %v2601 = vadd.f32 0.0, %v2600
        %v2602 = vpop.f32.mrf.mxu0
        %2603 = vmatprep.mubr.f32.mxu0 %v2222
        %2604 = vmatmul.mubr.f32.gmra.mxu0 %v2093
        %v2605 = vpop.f32.mrf.mxu0
        %v2606 = vadd.f32 0.0, %v2605
        %v2607 = vpop.f32.mrf.mxu0
        %2608 = vmatprep.mubr.f32.mxu0 %v2225
        %2609 = vmatmul.mubr.f32.gmra.mxu0 %v2095
        %v2610 = vpop.f32.mrf.mxu0
        %v2611 = vadd.f32 0.0, %v2610
        %v2612 = vpop.f32.mrf.mxu0
        %2613 = vmatprep.mubr.f32.mxu0 %v2228
        %2614 = vmatmul.mubr.f32.gmra.mxu0 %v2097
        %v2615 = vpop.f32.mrf.mxu0
        %v2616 = vadd.f32 0.0, %v2615
        %v2617 = vpop.f32.mrf.mxu0
        %2618 = vmatprep.mubr.f32.mxu0 %v2231
        %2619 = vmatmul.mubr.f32.gmra.mxu0 %v2099
        %v2620 = vpop.f32.mrf.mxu0
        %v2621 = vadd.f32 0.0, %v2620
        %v2622 = vpop.f32.mrf.mxu0
        %2623 = vmatprep.mubr.f32.mxu0 %v2234
        %2624 = vmatmul.mubr.f32.gmra.mxu0 %v2101
        %v2625 = vpop.f32.mrf.mxu0
        %v2626 = vadd.f32 0.0, %v2625
        %v2627 = vpop.f32.mrf.mxu0
        %2628 = vmatprep.mubr.f32.mxu0 %v2237
        %2629 = vmatmul.mubr.f32.gmra.mxu0 %v2103
        %v2630 = vpop.f32.mrf.mxu0
        %v2631 = vadd.f32 0.0, %v2630
        %v2632 = vpop.f32.mrf.mxu0
        %2633 = vmatprep.mubr.f32.mxu0 %v2240
        %2634 = vmatmul.mubr.f32.gmra.mxu0 %v2105
        %v2635 = vpop.f32.mrf.mxu0
        %v2636 = vadd.f32 0.0, %v2635
        %v2637 = vpop.f32.mrf.mxu0
        %2638 = vmatprep.mubr.f32.mxu0 %v2243
        %2639 = vmatmul.mubr.f32.gmra.mxu0 %v2107
        %v2640 = vpop.f32.mrf.mxu0
        %v2641 = vadd.f32 0.0, %v2640
        %v2642 = vpop.f32.mrf.mxu0
        %2643 = vmatprep.mubr.f32.mxu0 %v2246
        %2644 = vmatmul.mubr.f32.gmra.mxu0 %v2109
        %v2645 = vpop.f32.mrf.mxu0
        %v2646 = vadd.f32 0.0, %v2645
        %v2647 = vpop.f32.mrf.mxu0
        %2648 = vmatprep.mubr.f32.mxu0 %v2249
        %2649 = vmatmul.mubr.f32.gmra.mxu0 %v2111
        %v2650 = vpop.f32.mrf.mxu0
        %v2651 = vadd.f32 0.0, %v2650
        %v2652 = vpop.f32.mrf.mxu0
        %2653 = vmatprep.mubr.f32.mxu0 %v2252
        %2654 = vmatmul.mubr.f32.gmra.mxu0 %v2113
        %v2655 = vpop.f32.mrf.mxu0
        %v2656 = vadd.f32 0.0, %v2655
        %v2657 = vpop.f32.mrf.mxu0
        %2658 = vmatprep.mubr.f32.mxu0 %v2255
        %2659 = vmatmul.mubr.f32.gmra.mxu0 %v2115
        %v2660 = vpop.f32.mrf.mxu0
        %v2661 = vadd.f32 0.0, %v2660
        %v2662 = vpop.f32.mrf.mxu0
        %2663 = vmatprep.mubr.f32.mxu0 %v2258
        %2664 = vmatmul.mubr.f32.gmra.mxu0 %v2117
        %v2665 = vpop.f32.mrf.mxu0
        %v2666 = vadd.f32 0.0, %v2665
        %v2667 = vpop.f32.mrf.mxu0
        %2668 = vmatprep.mubr.f32.mxu0 %v2261
        %2669 = vmatmul.mubr.f32.gmra.mxu0 %v2119
        %v2670 = vpop.f32.mrf.mxu0
        %v2671 = vadd.f32 0.0, %v2670
        %v2672 = vpop.f32.mrf.mxu0
        %2673 = vmatprep.mubr.f32.mxu0 %v2264
        %2674 = vmatmul.mubr.f32.gmra.mxu0 %v2121
        %v2675 = vpop.f32.mrf.mxu0
        %v2676 = vadd.f32 0.0, %v2675
        %v2677 = vpop.f32.mrf.mxu0
        %2678 = vmatprep.mubr.f32.mxu0 %v2267
        %2679 = vmatmul.mubr.f32.gmra.mxu0 %v2123
        %v2680 = vpop.f32.mrf.mxu0
        %v2681 = vadd.f32 0.0, %v2680
        %v2682 = vpop.f32.mrf.mxu0
        %2683 = vmatprep.mubr.f32.mxu0 %v2270
        %2684 = vmatmul.mubr.f32.gmra.mxu0 %v2125
        %v2685 = vpop.f32.mrf.mxu0
        %v2686 = vadd.f32 0.0, %v2685
        %v2687 = vpop.f32.mrf.mxu0
        %2688 = vmatprep.mubr.f32.mxu0 %v2273
        %2689 = vmatmul.mubr.f32.gmra.mxu0 %v2127
        %v2690 = vpop.f32.mrf.mxu0
        %v2691 = vadd.f32 0.0, %v2690
        %v2692 = vpop.f32.mrf.mxu0
        %2693 = vmatprep.mubr.f32.mxu0 %v2276
        %2694 = vmatmul.mubr.f32.gmra.mxu0 %v2129
        %v2695 = vpop.f32.mrf.mxu0
        %v2696 = vadd.f32 0.0, %v2695
        %v2697 = vpop.f32.mrf.mxu0
        %2698 = vmatprep.mubr.f32.mxu0 %v2279
        %2699 = vmatmul.mubr.f32.gmra.mxu0 %v2131
        %v2700 = vpop.f32.mrf.mxu0
        %v2701 = vadd.f32 0.0, %v2700
        %v2702 = vpop.f32.mrf.mxu0
        %2703 = vmatprep.mubr.f32.mxu0 %v2282
        %2704 = vmatmul.mubr.f32.gmra.mxu0 %v2133
        %v2705 = vpop.f32.mrf.mxu0
        %v2706 = vadd.f32 0.0, %v2705
        %v2707 = vpop.f32.mrf.mxu0
        %2708 = vdwg.mxu0
        %v2709 = vmax.f32 %v2351, %v2591
        %v2710 = vmax.f32 %v2356, %v2596
        %v2711 = vmax.f32 %v2361, %v2601
        %v2712 = vmax.f32 %v2366, %v2606
        %v2713 = vmax.f32 %v2371, %v2611
        %v2714 = vmax.f32 %v2376, %v2616
        %v2715 = vmax.f32 %v2381, %v2621
        %v2716 = vmax.f32 %v2386, %v2626
        %v2717 = vmax.f32 %v2391, %v2631
        %v2718 = vmax.f32 %v2396, %v2636
        %v2719 = vmax.f32 %v2401, %v2641
        %v2720 = vmax.f32 %v2406, %v2646
        %v2721 = vmax.f32 %v2411, %v2651
        %v2722 = vmax.f32 %v2416, %v2656
        %v2723 = vmax.f32 %v2421, %v2661
        %v2724 = vmax.f32 %v2426, %v2666
        %v2725 = vmax.f32 %v2431, %v2671
        %v2726 = vmax.f32 %v2436, %v2676
        %v2727 = vmax.f32 %v2441, %v2681
        %v2728 = vmax.f32 %v2446, %v2686
        %v2729 = vmax.f32 %v2451, %v2691
        %v2730 = vmax.f32 %v2456, %v2696
        %v2731 = vmax.f32 %v2461, %v2701
        %v2732 = vmax.f32 %v2466, %v2706
        %v2733 = vadd.s32 %v2155, 128
        %v2734 = vmul.u32 %v2136, 2
        %v2735 = vmul.u32 %v2137, 2
        %v2736 = vmul.u32 %v2138, 2
        %v2737 = vmul.u32 %v2139, 2
        %v2738 = vmul.u32 %v2140, 2
        %v2739 = vmul.u32 %v2141, 2
        %v2740 = vmul.u32 %v2142, 2
        %v2741 = vmul.u32 %v2143, 2
        %v2742 = vmul.u32 %v2144, 2
        %v2743 = vmul.u32 %v2145, 2
        %v2744 = vmul.u32 %v2146, 2
        %v2745 = vmul.u32 %v2147, 2
        %vm2746 = vcmp.eq.s32.totalorder %v2155, %v2734
        %vm2747 = vcmp.eq.s32.totalorder %v2733, %v2734
        %vm2748 = vcmp.eq.s32.totalorder %v2155, %v2735
        %vm2749 = vcmp.eq.s32.totalorder %v2733, %v2735
        %vm2750 = vcmp.eq.s32.totalorder %v2155, %v2736
        %vm2751 = vcmp.eq.s32.totalorder %v2733, %v2736
        %vm2752 = vcmp.eq.s32.totalorder %v2155, %v2737
        %vm2753 = vcmp.eq.s32.totalorder %v2733, %v2737
        %vm2754 = vcmp.eq.s32.totalorder %v2155, %v2738
        %vm2755 = vcmp.eq.s32.totalorder %v2733, %v2738
        %vm2756 = vcmp.eq.s32.totalorder %v2155, %v2739
        %vm2757 = vcmp.eq.s32.totalorder %v2733, %v2739
        %vm2758 = vcmp.eq.s32.totalorder %v2155, %v2740
        %vm2759 = vcmp.eq.s32.totalorder %v2733, %v2740
        %vm2760 = vcmp.eq.s32.totalorder %v2155, %v2741
        %vm2761 = vcmp.eq.s32.totalorder %v2733, %v2741
        %vm2762 = vcmp.eq.s32.totalorder %v2155, %v2742
        %vm2763 = vcmp.eq.s32.totalorder %v2733, %v2742
        %vm2764 = vcmp.eq.s32.totalorder %v2155, %v2743
        %vm2765 = vcmp.eq.s32.totalorder %v2733, %v2743
        %vm2766 = vcmp.eq.s32.totalorder %v2155, %v2744
        %vm2767 = vcmp.eq.s32.totalorder %v2733, %v2744
        %vm2768 = vcmp.eq.s32.totalorder %v2155, %v2745
        %vm2769 = vcmp.eq.s32.totalorder %v2733, %v2745
        %v2770 = vsel %vm2746, 1, 0
        %v2771 = vsel %vm2747, 1, 0
        %v2772 = vsel %vm2748, 1, 0
        %v2773 = vsel %vm2749, 1, 0
        %v2774 = vsel %vm2750, 1, 0
        %v2775 = vsel %vm2751, 1, 0
        %v2776 = vsel %vm2752, 1, 0
        %v2777 = vsel %vm2753, 1, 0
        %v2778 = vsel %vm2754, 1, 0
        %v2779 = vsel %vm2755, 1, 0
        %v2780 = vsel %vm2756, 1, 0
        %v2781 = vsel %vm2757, 1, 0
        %v2782 = vsel %vm2758, 1, 0
        %v2783 = vsel %vm2759, 1, 0
        %v2784 = vsel %vm2760, 1, 0
        %v2785 = vsel %vm2761, 1, 0
        %v2786 = vsel %vm2762, 1, 0
        %v2787 = vsel %vm2763, 1, 0
        %v2788 = vsel %vm2764, 1, 0
        %v2789 = vsel %vm2765, 1, 0
        %v2790 = vsel %vm2766, 1, 0
        %v2791 = vsel %vm2767, 1, 0
        %v2792 = vsel %vm2768, 1, 0
        %v2793 = vsel %vm2769, 1, 0
        %v2794 = vcvt.s32.f32 %v2770
        %v2795 = vcvt.s32.f32 %v2771
        %v2796 = vcvt.s32.f32 %v2772
        %v2797 = vcvt.s32.f32 %v2773
        %v2798 = vcvt.s32.f32 %v2774
        %v2799 = vcvt.s32.f32 %v2775
        %v2800 = vcvt.s32.f32 %v2776
        %v2801 = vcvt.s32.f32 %v2777
        %v2802 = vcvt.s32.f32 %v2778
        %v2803 = vcvt.s32.f32 %v2779
        %v2804 = vcvt.s32.f32 %v2780
        %v2805 = vcvt.s32.f32 %v2781
        %v2806 = vcvt.s32.f32 %v2782
        %v2807 = vcvt.s32.f32 %v2783
        %v2808 = vcvt.s32.f32 %v2784
        %v2809 = vcvt.s32.f32 %v2785
        %v2810 = vcvt.s32.f32 %v2786
        %v2811 = vcvt.s32.f32 %v2787
        %v2812 = vcvt.s32.f32 %v2788
        %v2813 = vcvt.s32.f32 %v2789
        %v2814 = vcvt.s32.f32 %v2790
        %v2815 = vcvt.s32.f32 %v2791
        %v2816 = vcvt.s32.f32 %v2792
        %v2817 = vcvt.s32.f32 %v2793
        %vm2818 = vcmask 523264
        %v2820 = vsel %vm2818, %v2795, 0
        %v2823 = vsel %vm2818, %v2797, 0
        %v2826 = vsel %vm2818, %v2799, 0
        %v2829 = vsel %vm2818, %v2801, 0
        %v2832 = vsel %vm2818, %v2803, 0
        %v2835 = vsel %vm2818, %v2805, 0
        %v2838 = vsel %vm2818, %v2807, 0
        %v2841 = vsel %vm2818, %v2809, 0
        %v2844 = vsel %vm2818, %v2811, 0
        %v2847 = vsel %vm2818, %v2813, 0
        %v2850 = vsel %vm2818, %v2815, 0
        %v2853 = vsel %vm2818, %v2817, 0
        %2855 = vmatprep.subr.mxu0 0.0
        %2856 = vmatpush1.msra.mxu0 %v2724
        %2857 = vmatprep.subr.mxu0 0.0
        %2858 = vmatpush1.msra.mxu0 %v2723
        %2859 = vmatprep.subr.mxu0 0.0
        %2860 = vmatpush1.msra.mxu0 %v2722
        %2861 = vmatprep.subr.mxu0 0.0
        %2862 = vmatpush1.msra.mxu0 %v2721
        %2863 = vmatprep.subr.mxu0 0.0
        %2864 = vmatpush1.msra.mxu0 %v2720
        %2865 = vmatprep.subr.mxu0 0.0
        %2866 = vmatpush1.msra.mxu0 %v2719
        %2867 = vmatprep.subr.mxu0 0.0
        %2868 = vmatpush1.msra.mxu0 %v2718
        %2869 = vmatprep.subr.mxu0 0.0
        %2870 = vmatpush1.msra.mxu0 %v2717
        %2871 = vmatprep.subr.mxu0 0.0
        %2872 = vmatpush1.msra.mxu0 %v2716
        %2873 = vmatprep.subr.mxu0 0.0
        %2874 = vmatpush1.msra.mxu0 %v2715
        %2875 = vmatprep.subr.mxu0 0.0
        %2876 = vmatpush1.msra.mxu0 %v2714
        %2877 = vmatprep.subr.mxu0 0.0
        %2878 = vmatpush1.msra.mxu0 %v2713
        %2879 = vmatprep.subr.mxu0 0.0
        %2880 = vmatpush1.msra.mxu0 %v2712
        %2881 = vmatprep.subr.mxu0 0.0
        %2882 = vmatpush1.msra.mxu0 %v2711
        %2883 = vmatprep.subr.mxu0 0.0
        %2884 = vmatpush1.msra.mxu0 %v2710
        %2885 = vmatprep.subr.mxu0 0.0
        %2886 = vmatpush1.msra.mxu0 %v2709
        %2887 = vmatprep.subr.mxu0 0.0
        %2888 = vmatpush2.msra.mxu0 0.0
        %2889 = vmatprep.subr.mxu0 0.0
        %2890 = vmatpush2.msra.mxu0 0.0
        %2891 = vmatprep.subr.mxu0 0.0
        %2892 = vmatpush2.msra.mxu0 0.0
        %2893 = vmatprep.subr.mxu0 0.0
        %2894 = vmatpush2.msra.mxu0 0.0
        %2895 = vmatprep.subr.mxu0 0.0
        %2896 = vmatpush2.msra.mxu0 0.0
        %2897 = vmatprep.subr.mxu0 0.0
        %2898 = vmatpush2.msra.mxu0 0.0
        %2899 = vmatprep.subr.mxu0 0.0
        %2900 = vmatpush2.msra.mxu0 0.0
        %2901 = vmatprep.subr.mxu0 0.0
        %2902 = vmatpush2.msra.mxu0 0.0
        %2903 = vmatprep.subr.mxu0 0.0
        %2904 = vmatpush2.msra.mxu0 %v2732
        %2905 = vmatprep.subr.mxu0 0.0
        %2906 = vmatpush2.msra.mxu0 %v2731
        %2907 = vmatprep.subr.mxu0 0.0
        %2908 = vmatpush2.msra.mxu0 %v2730
        %2909 = vmatprep.subr.mxu0 0.0
        %2910 = vmatpush2.msra.mxu0 %v2729
        %2911 = vmatprep.subr.mxu0 0.0
        %2912 = vmatpush2.msra.mxu0 %v2728
        %2913 = vmatprep.subr.mxu0 0.0
        %2914 = vmatpush2.msra.mxu0 %v2727
        %2915 = vmatprep.subr.mxu0 0.0
        %2916 = vmatpush2.msra.mxu0 %v2726
        %2917 = vmatprep.subr.mxu0 0.0
        %2918 = vmatpush2.msra.mxu0 %v2725
        %2919 = vmatprep.mubr.f32.mxu0 %v2820
        %2920 = vmatmul.mubr.f32.gmra.mxu0 %v2794
        %v2921 = vpop.f32.mrf.mxu0
        %v2922 = vadd.f32 0.0, %v2921
        %v2923 = vpop.f32.mrf.mxu0
        %2924 = vmatprep.mubr.f32.mxu0 %v2823
        %2925 = vmatmul.mubr.f32.gmra.mxu0 %v2796
        %v2926 = vpop.f32.mrf.mxu0
        %v2927 = vadd.f32 0.0, %v2926
        %v2928 = vpop.f32.mrf.mxu0
        %2929 = vmatprep.mubr.f32.mxu0 %v2826
        %2930 = vmatmul.mubr.f32.gmra.mxu0 %v2798
        %v2931 = vpop.f32.mrf.mxu0
        %v2932 = vadd.f32 0.0, %v2931
        %v2933 = vpop.f32.mrf.mxu0
        %2934 = vmatprep.mubr.f32.mxu0 %v2829
        %2935 = vmatmul.mubr.f32.gmra.mxu0 %v2800
        %v2936 = vpop.f32.mrf.mxu0
        %v2937 = vadd.f32 0.0, %v2936
        %v2938 = vpop.f32.mrf.mxu0
        %2939 = vmatprep.mubr.f32.mxu0 %v2832
        %2940 = vmatmul.mubr.f32.gmra.mxu0 %v2802
        %v2941 = vpop.f32.mrf.mxu0
        %v2942 = vadd.f32 0.0, %v2941
        %v2943 = vpop.f32.mrf.mxu0
        %2944 = vmatprep.mubr.f32.mxu0 %v2835
        %2945 = vmatmul.mubr.f32.gmra.mxu0 %v2804
        %v2946 = vpop.f32.mrf.mxu0
        %v2947 = vadd.f32 0.0, %v2946
        %v2948 = vpop.f32.mrf.mxu0
        %2949 = vmatprep.mubr.f32.mxu0 %v2838
        %2950 = vmatmul.mubr.f32.gmra.mxu0 %v2806
        %v2951 = vpop.f32.mrf.mxu0
        %v2952 = vadd.f32 0.0, %v2951
        %v2953 = vpop.f32.mrf.mxu0
        %2954 = vmatprep.mubr.f32.mxu0 %v2841
        %2955 = vmatmul.mubr.f32.gmra.mxu0 %v2808
        %v2956 = vpop.f32.mrf.mxu0
        %v2957 = vadd.f32 0.0, %v2956
        %v2958 = vpop.f32.mrf.mxu0
        %2959 = vmatprep.mubr.f32.mxu0 %v2844
        %2960 = vmatmul.mubr.f32.gmra.mxu0 %v2810
        %v2961 = vpop.f32.mrf.mxu0
        %v2962 = vadd.f32 0.0, %v2961
        %v2963 = vpop.f32.mrf.mxu0
        %2964 = vmatprep.mubr.f32.mxu0 %v2847
        %2965 = vmatmul.mubr.f32.gmra.mxu0 %v2812
        %v2966 = vpop.f32.mrf.mxu0
        %v2967 = vadd.f32 0.0, %v2966
        %v2968 = vpop.f32.mrf.mxu0
        %2969 = vmatprep.mubr.f32.mxu0 %v2850
        %2970 = vmatmul.mubr.f32.gmra.mxu0 %v2814
        %v2971 = vpop.f32.mrf.mxu0
        %v2972 = vadd.f32 0.0, %v2971
        %v2973 = vpop.f32.mrf.mxu0
        %2974 = vmatprep.mubr.f32.mxu0 %v2853
        %2975 = vmatmul.mubr.f32.gmra.mxu0 %v2816
        %v2976 = vpop.f32.mrf.mxu0
        %v2977 = vadd.f32 0.0, %v2976
        %v2978 = vpop.f32.mrf.mxu0
        %2979 = vdwg.mxu0
        %v2980 = vadd.s32 %v2734, 1
        %v2981 = vadd.s32 %v2735, 1
        %v2982 = vadd.s32 %v2736, 1
        %v2983 = vadd.s32 %v2737, 1
        %v2984 = vadd.s32 %v2738, 1
        %v2985 = vadd.s32 %v2739, 1
        %v2986 = vadd.s32 %v2740, 1
        %v2987 = vadd.s32 %v2741, 1
        %v2988 = vadd.s32 %v2742, 1
        %v2989 = vadd.s32 %v2743, 1
        %v2990 = vadd.s32 %v2744, 1
        %v2991 = vadd.s32 %v2745, 1
        %vm2992 = vcmp.eq.s32.totalorder %v2155, %v2980
        %vm2993 = vcmp.eq.s32.totalorder %v2733, %v2980
        %vm2994 = vcmp.eq.s32.totalorder %v2155, %v2981
        %vm2995 = vcmp.eq.s32.totalorder %v2733, %v2981
        %vm2996 = vcmp.eq.s32.totalorder %v2155, %v2982
        %vm2997 = vcmp.eq.s32.totalorder %v2733, %v2982
        %vm2998 = vcmp.eq.s32.totalorder %v2155, %v2983
        %vm2999 = vcmp.eq.s32.totalorder %v2733, %v2983
        %vm3000 = vcmp.eq.s32.totalorder %v2155, %v2984
        %vm3001 = vcmp.eq.s32.totalorder %v2733, %v2984
        %vm3002 = vcmp.eq.s32.totalorder %v2155, %v2985
        %vm3003 = vcmp.eq.s32.totalorder %v2733, %v2985
        %vm3004 = vcmp.eq.s32.totalorder %v2155, %v2986
        %vm3005 = vcmp.eq.s32.totalorder %v2733, %v2986
        %vm3006 = vcmp.eq.s32.totalorder %v2155, %v2987
        %vm3007 = vcmp.eq.s32.totalorder %v2733, %v2987
        %vm3008 = vcmp.eq.s32.totalorder %v2155, %v2988
        %vm3009 = vcmp.eq.s32.totalorder %v2733, %v2988
        %vm3010 = vcmp.eq.s32.totalorder %v2155, %v2989
        %vm3011 = vcmp.eq.s32.totalorder %v2733, %v2989
        %vm3012 = vcmp.eq.s32.totalorder %v2155, %v2990
        %vm3013 = vcmp.eq.s32.totalorder %v2733, %v2990
        %vm3014 = vcmp.eq.s32.totalorder %v2155, %v2991
        %vm3015 = vcmp.eq.s32.totalorder %v2733, %v2991
        %v3016 = vsel %vm2992, 1, 0
        %v3017 = vsel %vm2993, 1, 0
        %v3018 = vsel %vm2994, 1, 0
        %v3019 = vsel %vm2995, 1, 0
        %v3020 = vsel %vm2996, 1, 0
        %v3021 = vsel %vm2997, 1, 0
        %v3022 = vsel %vm2998, 1, 0
        %v3023 = vsel %vm2999, 1, 0
        %v3024 = vsel %vm3000, 1, 0
        %v3025 = vsel %vm3001, 1, 0
        %v3026 = vsel %vm3002, 1, 0
        %v3027 = vsel %vm3003, 1, 0
        %v3028 = vsel %vm3004, 1, 0
        %v3029 = vsel %vm3005, 1, 0
        %v3030 = vsel %vm3006, 1, 0
        %v3031 = vsel %vm3007, 1, 0
        %v3032 = vsel %vm3008, 1, 0
        %v3033 = vsel %vm3009, 1, 0
        %v3034 = vsel %vm3010, 1, 0
        %v3035 = vsel %vm3011, 1, 0
        %v3036 = vsel %vm3012, 1, 0
        %v3037 = vsel %vm3013, 1, 0
        %v3038 = vsel %vm3014, 1, 0
        %v3039 = vsel %vm3015, 1, 0
        %v3040 = vcvt.s32.f32 %v3016
        %v3041 = vcvt.s32.f32 %v3017
        %v3042 = vcvt.s32.f32 %v3018
        %v3043 = vcvt.s32.f32 %v3019
        %v3044 = vcvt.s32.f32 %v3020
        %v3045 = vcvt.s32.f32 %v3021
        %v3046 = vcvt.s32.f32 %v3022
        %v3047 = vcvt.s32.f32 %v3023
        %v3048 = vcvt.s32.f32 %v3024
        %v3049 = vcvt.s32.f32 %v3025
        %v3050 = vcvt.s32.f32 %v3026
        %v3051 = vcvt.s32.f32 %v3027
        %v3052 = vcvt.s32.f32 %v3028
        %v3053 = vcvt.s32.f32 %v3029
        %v3054 = vcvt.s32.f32 %v3030
        %v3055 = vcvt.s32.f32 %v3031
        %v3056 = vcvt.s32.f32 %v3032
        %v3057 = vcvt.s32.f32 %v3033
        %v3058 = vcvt.s32.f32 %v3034
        %v3059 = vcvt.s32.f32 %v3035
        %v3060 = vcvt.s32.f32 %v3036
        %v3061 = vcvt.s32.f32 %v3037
        %v3062 = vcvt.s32.f32 %v3038
        %v3063 = vcvt.s32.f32 %v3039
        %v3065 = vsel %vm2818, %v3041, 0
        %v3068 = vsel %vm2818, %v3043, 0
        %v3071 = vsel %vm2818, %v3045, 0
        %v3074 = vsel %vm2818, %v3047, 0
        %v3077 = vsel %vm2818, %v3049, 0
        %v3080 = vsel %vm2818, %v3051, 0
        %v3083 = vsel %vm2818, %v3053, 0
        %v3086 = vsel %vm2818, %v3055, 0
        %v3089 = vsel %vm2818, %v3057, 0
        %v3092 = vsel %vm2818, %v3059, 0
        %v3095 = vsel %vm2818, %v3061, 0
        %v3098 = vsel %vm2818, %v3063, 0
        %3100 = vmatprep.subr.mxu0 0.0
        %3101 = vmatpush1.msra.mxu0 %v2724
        %3102 = vmatprep.subr.mxu0 0.0
        %3103 = vmatpush1.msra.mxu0 %v2723
        %3104 = vmatprep.subr.mxu0 0.0
        %3105 = vmatpush1.msra.mxu0 %v2722
        %3106 = vmatprep.subr.mxu0 0.0
        %3107 = vmatpush1.msra.mxu0 %v2721
        %3108 = vmatprep.subr.mxu0 0.0
        %3109 = vmatpush1.msra.mxu0 %v2720
        %3110 = vmatprep.subr.mxu0 0.0
        %3111 = vmatpush1.msra.mxu0 %v2719
        %3112 = vmatprep.subr.mxu0 0.0
        %3113 = vmatpush1.msra.mxu0 %v2718
        %3114 = vmatprep.subr.mxu0 0.0
        %3115 = vmatpush1.msra.mxu0 %v2717
        %3116 = vmatprep.subr.mxu0 0.0
        %3117 = vmatpush1.msra.mxu0 %v2716
        %3118 = vmatprep.subr.mxu0 0.0
        %3119 = vmatpush1.msra.mxu0 %v2715
        %3120 = vmatprep.subr.mxu0 0.0
        %3121 = vmatpush1.msra.mxu0 %v2714
        %3122 = vmatprep.subr.mxu0 0.0
        %3123 = vmatpush1.msra.mxu0 %v2713
        %3124 = vmatprep.subr.mxu0 0.0
        %3125 = vmatpush1.msra.mxu0 %v2712
        %3126 = vmatprep.subr.mxu0 0.0
        %3127 = vmatpush1.msra.mxu0 %v2711
        %3128 = vmatprep.subr.mxu0 0.0
        %3129 = vmatpush1.msra.mxu0 %v2710
        %3130 = vmatprep.subr.mxu0 0.0
        %3131 = vmatpush1.msra.mxu0 %v2709
        %3132 = vmatprep.subr.mxu0 0.0
        %3133 = vmatpush2.msra.mxu0 0.0
        %3134 = vmatprep.subr.mxu0 0.0
        %3135 = vmatpush2.msra.mxu0 0.0
        %3136 = vmatprep.subr.mxu0 0.0
        %3137 = vmatpush2.msra.mxu0 0.0
        %3138 = vmatprep.subr.mxu0 0.0
        %3139 = vmatpush2.msra.mxu0 0.0
        %3140 = vmatprep.subr.mxu0 0.0
        %3141 = vmatpush2.msra.mxu0 0.0
        %3142 = vmatprep.subr.mxu0 0.0
        %3143 = vmatpush2.msra.mxu0 0.0
        %3144 = vmatprep.subr.mxu0 0.0
        %3145 = vmatpush2.msra.mxu0 0.0
        %3146 = vmatprep.subr.mxu0 0.0
        %3147 = vmatpush2.msra.mxu0 0.0
        %3148 = vmatprep.subr.mxu0 0.0
        %3149 = vmatpush2.msra.mxu0 %v2732
        %3150 = vmatprep.subr.mxu0 0.0
        %3151 = vmatpush2.msra.mxu0 %v2731
        %3152 = vmatprep.subr.mxu0 0.0
        %3153 = vmatpush2.msra.mxu0 %v2730
        %3154 = vmatprep.subr.mxu0 0.0
        %3155 = vmatpush2.msra.mxu0 %v2729
        %3156 = vmatprep.subr.mxu0 0.0
        %3157 = vmatpush2.msra.mxu0 %v2728
        %3158 = vmatprep.subr.mxu0 0.0
        %3159 = vmatpush2.msra.mxu0 %v2727
        %3160 = vmatprep.subr.mxu0 0.0
        %3161 = vmatpush2.msra.mxu0 %v2726
        %3162 = vmatprep.subr.mxu0 0.0
        %3163 = vmatpush2.msra.mxu0 %v2725
        %3164 = vmatprep.mubr.f32.mxu0 %v3065
        %3165 = vmatmul.mubr.f32.gmra.mxu0 %v3040
        %v3166 = vpop.f32.mrf.mxu0
        %v3167 = vadd.f32 0.0, %v3166
        %v3168 = vpop.f32.mrf.mxu0
        %3169 = vmatprep.mubr.f32.mxu0 %v3068
        %3170 = vmatmul.mubr.f32.gmra.mxu0 %v3042
        %v3171 = vpop.f32.mrf.mxu0
        %v3172 = vadd.f32 0.0, %v3171
        %v3173 = vpop.f32.mrf.mxu0
        %3174 = vmatprep.mubr.f32.mxu0 %v3071
        %3175 = vmatmul.mubr.f32.gmra.mxu0 %v3044
        %v3176 = vpop.f32.mrf.mxu0
        %v3177 = vadd.f32 0.0, %v3176
        %v3178 = vpop.f32.mrf.mxu0
        %3179 = vmatprep.mubr.f32.mxu0 %v3074
        %3180 = vmatmul.mubr.f32.gmra.mxu0 %v3046
        %v3181 = vpop.f32.mrf.mxu0
        %v3182 = vadd.f32 0.0, %v3181
        %v3183 = vpop.f32.mrf.mxu0
        %3184 = vmatprep.mubr.f32.mxu0 %v3077
        %3185 = vmatmul.mubr.f32.gmra.mxu0 %v3048
        %v3186 = vpop.f32.mrf.mxu0
        %v3187 = vadd.f32 0.0, %v3186
        %v3188 = vpop.f32.mrf.mxu0
        %3189 = vmatprep.mubr.f32.mxu0 %v3080
        %3190 = vmatmul.mubr.f32.gmra.mxu0 %v3050
        %v3191 = vpop.f32.mrf.mxu0
        %v3192 = vadd.f32 0.0, %v3191
        %v3193 = vpop.f32.mrf.mxu0
        %3194 = vmatprep.mubr.f32.mxu0 %v3083
        %3195 = vmatmul.mubr.f32.gmra.mxu0 %v3052
        %v3196 = vpop.f32.mrf.mxu0
        %v3197 = vadd.f32 0.0, %v3196
        %v3198 = vpop.f32.mrf.mxu0
        %3199 = vmatprep.mubr.f32.mxu0 %v3086
        %3200 = vmatmul.mubr.f32.gmra.mxu0 %v3054
        %v3201 = vpop.f32.mrf.mxu0
        %v3202 = vadd.f32 0.0, %v3201
        %v3203 = vpop.f32.mrf.mxu0
        %3204 = vmatprep.mubr.f32.mxu0 %v3089
        %3205 = vmatmul.mubr.f32.gmra.mxu0 %v3056
        %v3206 = vpop.f32.mrf.mxu0
        %v3207 = vadd.f32 0.0, %v3206
        %v3208 = vpop.f32.mrf.mxu0
        %3209 = vmatprep.mubr.f32.mxu0 %v3092
        %3210 = vmatmul.mubr.f32.gmra.mxu0 %v3058
        %v3211 = vpop.f32.mrf.mxu0
        %v3212 = vadd.f32 0.0, %v3211
        %v3213 = vpop.f32.mrf.mxu0
        %3214 = vmatprep.mubr.f32.mxu0 %v3095
        %3215 = vmatmul.mubr.f32.gmra.mxu0 %v3060
        %v3216 = vpop.f32.mrf.mxu0
        %v3217 = vadd.f32 0.0, %v3216
        %v3218 = vpop.f32.mrf.mxu0
        %3219 = vmatprep.mubr.f32.mxu0 %v3098
        %3220 = vmatmul.mubr.f32.gmra.mxu0 %v3062
        %v3221 = vpop.f32.mrf.mxu0
        %v3222 = vadd.f32 0.0, %v3221
        %v3223 = vpop.f32.mrf.mxu0
        %3224 = vdwg.mxu0
        %v3225 = vmax.f32 %v2922, %v3167
        %v3226 = vmax.f32 %v2927, %v3172
        %v3227 = vmax.f32 %v2932, %v3177
        %v3228 = vmax.f32 %v2937, %v3182
        %v3229 = vmax.f32 %v2942, %v3187
        %v3230 = vmax.f32 %v2947, %v3192
        %v3231 = vmax.f32 %v2952, %v3197
        %v3232 = vmax.f32 %v2957, %v3202
        %v3233 = vmax.f32 %v2962, %v3207
        %v3234 = vmax.f32 %v2967, %v3212
        %v3235 = vmax.f32 %v2972, %v3217
        %v3236 = vmax.f32 %v2977, %v3222
        %v3237 = vld [vmem:[%s2] sm:$0x1]
        %v3239 = vlaneseq
        %v3240 = vshrl.u32 %v3239, 7
        %v3241 = vsub.s32 0, %v3240
        %v3242 = vrot.slane %v3237, %v3241
        %v3244 = vadd.f32 %v3225, %v3242
        %v3245 = vadd.f32 %v3226, %v3242
        %v3246 = vadd.f32 %v3227, %v3242
        %v3247 = vadd.f32 %v3228, %v3242
        %v3248 = vadd.f32 %v3229, %v3242
        %v3249 = vadd.f32 %v3230, %v3242
        %v3250 = vadd.f32 %v3231, %v3242
        %v3251 = vadd.f32 %v3232, %v3242
        %v3252 = vadd.f32 %v3233, %v3242
        %v3253 = vadd.f32 %v3234, %v3242
        %v3254 = vadd.f32 %v3235, %v3242
        %v3255 = vadd.f32 %v3236, %v3242
        %v3256 = vmax.f32 %v3244, 0.0
        %v3257 = vmax.f32 %v3245, 0.0
        %v3258 = vmax.f32 %v3246, 0.0
        %v3259 = vmax.f32 %v3247, 0.0
        %v3260 = vmax.f32 %v3248, 0.0
        %v3261 = vmax.f32 %v3249, 0.0
        %v3262 = vmax.f32 %v3250, 0.0
        %v3263 = vmax.f32 %v3251, 0.0
        %v3264 = vmax.f32 %v3252, 0.0
        %v3265 = vmax.f32 %v3253, 0.0
        %v3266 = vmax.f32 %v3254, 0.0
        %v3267 = vmax.f32 %v3255, 0.0
        %v3268 = vshra.s32 %v2136, 3
        %v3269 = vshra.s32 %v2137, 3
        %v3270 = vshra.s32 %v2138, 3
        %v3271 = vshra.s32 %v2139, 3
        %v3272 = vshra.s32 %v2140, 3
        %v3273 = vshra.s32 %v2141, 3
        %v3274 = vshra.s32 %v2142, 3
        %v3275 = vshra.s32 %v2143, 3
        %v3276 = vmul.u32 %v3268, 4
        %v3277 = vmul.u32 %v3269, 4
        %v3278 = vmul.u32 %v3270, 4
        %v3279 = vmul.u32 %v3271, 4
        %v3280 = vmul.u32 %v3272, 4
        %v3281 = vmul.u32 %v3273, 4
        %v3282 = vmul.u32 %v3274, 4
        %v3283 = vmul.u32 %v3275, 4
        %v3284 = vadd.s32 %v2136, %v3276
        %v3285 = vadd.s32 %v2137, %v3277
        %v3286 = vadd.s32 %v2138, %v3278
        %v3287 = vadd.s32 %v2139, %v3279
        %v3288 = vadd.s32 %v2140, %v3280
        %v3289 = vadd.s32 %v2141, %v3281
        %v3290 = vadd.s32 %v2142, %v3282
        %v3291 = vadd.s32 %v2143, %v3283
        %vm3292 = vcmp.eq.s32.totalorder %v2155, %v3284
        %vm3293 = vcmp.eq.s32.totalorder %v2155, %v3285
        %vm3294 = vcmp.eq.s32.totalorder %v2155, %v3286
        %vm3295 = vcmp.eq.s32.totalorder %v2155, %v3287
        %vm3296 = vcmp.eq.s32.totalorder %v2155, %v3288
        %vm3297 = vcmp.eq.s32.totalorder %v2155, %v3289
        %vm3298 = vcmp.eq.s32.totalorder %v2155, %v3290
        %vm3299 = vcmp.eq.s32.totalorder %v2155, %v3291
        %v3300 = vsel %vm3292, 1, 0
        %v3301 = vsel %vm3293, 1, 0
        %v3302 = vsel %vm3294, 1, 0
        %v3303 = vsel %vm3295, 1, 0
        %v3304 = vsel %vm3296, 1, 0
        %v3305 = vsel %vm3297, 1, 0
        %v3306 = vsel %vm3298, 1, 0
        %v3307 = vsel %vm3299, 1, 0
        %v3308 = vcvt.s32.f32 %v3300
        %v3309 = vcvt.s32.f32 %v3301
        %v3310 = vcvt.s32.f32 %v3302
        %v3311 = vcvt.s32.f32 %v3303
        %v3312 = vcvt.s32.f32 %v3304
        %v3313 = vcvt.s32.f32 %v3305
        %v3314 = vcvt.s32.f32 %v3306
        %v3315 = vcvt.s32.f32 %v3307
        %vm3316 = vcmask 785408
        %v3318 = vsel %vm3316, %v3308, 0
        %v3321 = vsel %vm3316, %v3309, 0
        %v3324 = vsel %vm3316, %v3310, 0
        %v3327 = vsel %vm3316, %v3311, 0
        %v3330 = vsel %vm3316, %v3312, 0
        %v3333 = vsel %vm3316, %v3313, 0
        %v3336 = vsel %vm3316, %v3314, 0
        %v3339 = vsel %vm3316, %v3315, 0
        %3341 = vmatprep.subr.mxu0 0.0
        %3342 = vmatpush1.msra.mxu0 0.0
        %3343 = vmatprep.subr.mxu0 0.0
        %3344 = vmatpush1.msra.mxu0 0.0
        %3345 = vmatprep.subr.mxu0 0.0
        %3346 = vmatpush1.msra.mxu0 0.0
        %3347 = vmatprep.subr.mxu0 0.0
        %3348 = vmatpush1.msra.mxu0 0.0
        %3349 = vmatprep.subr.mxu0 0.0
        %3350 = vmatpush1.msra.mxu0 %v3267
        %3351 = vmatprep.subr.mxu0 0.0
        %3352 = vmatpush1.msra.mxu0 %v3266
        %3353 = vmatprep.subr.mxu0 0.0
        %3354 = vmatpush1.msra.mxu0 %v3265
        %3355 = vmatprep.subr.mxu0 0.0
        %3356 = vmatpush1.msra.mxu0 %v3264
        %3357 = vmatprep.subr.mxu0 0.0
        %3358 = vmatpush1.msra.mxu0 %v3263
        %3359 = vmatprep.subr.mxu0 0.0
        %3360 = vmatpush1.msra.mxu0 %v3262
        %3361 = vmatprep.subr.mxu0 0.0
        %3362 = vmatpush1.msra.mxu0 %v3261
        %3363 = vmatprep.subr.mxu0 0.0
        %3364 = vmatpush1.msra.mxu0 %v3260
        %3365 = vmatprep.subr.mxu0 0.0
        %3366 = vmatpush1.msra.mxu0 %v3259
        %3367 = vmatprep.subr.mxu0 0.0
        %3368 = vmatpush1.msra.mxu0 %v3258
        %3369 = vmatprep.subr.mxu0 0.0
        %3370 = vmatpush1.msra.mxu0 %v3257
        %3371 = vmatprep.subr.mxu0 0.0
        %3372 = vmatpush1.msra.mxu0 %v3256
        %3373 = vmatprep.subr.mxu0 0.0
        %3374 = vmatpush2.msra.mxu0 0.0
        %3375 = vmatprep.subr.mxu0 0.0
        %3376 = vmatpush2.msra.mxu0 0.0
        %3377 = vmatprep.subr.mxu0 0.0
        %3378 = vmatpush2.msra.mxu0 0.0
        %3379 = vmatprep.subr.mxu0 0.0
        %3380 = vmatpush2.msra.mxu0 0.0
        %3381 = vmatprep.subr.mxu0 0.0
        %3382 = vmatpush2.msra.mxu0 0.0
        %3383 = vmatprep.subr.mxu0 0.0
        %3384 = vmatpush2.msra.mxu0 0.0
        %3385 = vmatprep.subr.mxu0 0.0
        %3386 = vmatpush2.msra.mxu0 0.0
        %3387 = vmatprep.subr.mxu0 0.0
        %3388 = vmatpush2.msra.mxu0 0.0
        %3389 = vmatprep.subr.mxu0 0.0
        %3390 = vmatpush2.msra.mxu0 0.0
        %3391 = vmatprep.subr.mxu0 0.0
        %3392 = vmatpush2.msra.mxu0 0.0
        %3393 = vmatprep.subr.mxu0 0.0
        %3394 = vmatpush2.msra.mxu0 0.0
        %3395 = vmatprep.subr.mxu0 0.0
        %3396 = vmatpush2.msra.mxu0 0.0
        %3397 = vmatprep.subr.mxu0 0.0
        %3398 = vmatpush2.msra.mxu0 0.0
        %3399 = vmatprep.subr.mxu0 0.0
        %3400 = vmatpush2.msra.mxu0 0.0
        %3401 = vmatprep.subr.mxu0 0.0
        %3402 = vmatpush2.msra.mxu0 0.0
        %3403 = vmatprep.subr.mxu0 0.0
        %3404 = vmatpush2.msra.mxu0 0.0
        %3405 = vmatprep.mubr.f32.mxu0 0.0
        %3406 = vmatmul.mubr.f32.gmra.mxu0 %v3318
        %v3407 = vpop.f32.mrf.mxu0
        %v3408 = vadd.f32 0.0, %v3407
        %v3409 = vpop.f32.mrf.mxu0
        %3410 = vmatprep.mubr.f32.mxu0 0.0
        %3411 = vmatmul.mubr.f32.gmra.mxu0 %v3321
        %v3412 = vpop.f32.mrf.mxu0
        %v3413 = vadd.f32 0.0, %v3412
        %v3414 = vpop.f32.mrf.mxu0
        %3415 = vmatprep.mubr.f32.mxu0 0.0
        %3416 = vmatmul.mubr.f32.gmra.mxu0 %v3324
        %v3417 = vpop.f32.mrf.mxu0
        %v3418 = vadd.f32 0.0, %v3417
        %v3419 = vpop.f32.mrf.mxu0
        %3420 = vmatprep.mubr.f32.mxu0 0.0
        %3421 = vmatmul.mubr.f32.gmra.mxu0 %v3327
        %v3422 = vpop.f32.mrf.mxu0
        %v3423 = vadd.f32 0.0, %v3422
        %v3424 = vpop.f32.mrf.mxu0
        %3425 = vmatprep.mubr.f32.mxu0 0.0
        %3426 = vmatmul.mubr.f32.gmra.mxu0 %v3330
        %v3427 = vpop.f32.mrf.mxu0
        %v3428 = vadd.f32 0.0, %v3427
        %v3429 = vpop.f32.mrf.mxu0
        %3430 = vmatprep.mubr.f32.mxu0 0.0
        %3431 = vmatmul.mubr.f32.gmra.mxu0 %v3333
        %v3432 = vpop.f32.mrf.mxu0
        %v3433 = vadd.f32 0.0, %v3432
        %v3434 = vpop.f32.mrf.mxu0
        %3435 = vmatprep.mubr.f32.mxu0 0.0
        %3436 = vmatmul.mubr.f32.gmra.mxu0 %v3336
        %v3437 = vpop.f32.mrf.mxu0
        %v3438 = vadd.f32 0.0, %v3437
        %v3439 = vpop.f32.mrf.mxu0
        %3440 = vmatprep.mubr.f32.mxu0 0.0
        %3441 = vmatmul.mubr.f32.gmra.mxu0 %v3339
        %v3442 = vpop.f32.mrf.mxu0
        %v3443 = vadd.f32 0.0, %v3442
        %v3444 = vpop.f32.mrf.mxu0
        %3445 = vdwg.mxu0
        %v3446 = vld [vmem:[%s3] sm:$0xff]
        %v3447 = vld [vmem:[%s3 + $0x8] sm:$0xff]
        %v3448 = vld [vmem:[%s3 + $0x10] sm:$0xff]
        %v3449 = vld [vmem:[%s3 + $0x18] sm:$0xff]
        %v3450 = vld [vmem:[%s3 + $0x20] sm:$0xff]
        %v3451 = vld [vmem:[%s3 + $0x28] sm:$0xff]
        %v3452 = vld [vmem:[%s3 + $0x30] sm:$0xff]
        %v3453 = vld [vmem:[%s3 + $0x38] sm:$0xff]
        %v3454 = vld [vmem:[%s3 + $0x40] sm:$0xff]
        %v3455 = vadd.s32 %v3284, 1
        %v3456 = vadd.s32 %v3285, 1
        %v3457 = vadd.s32 %v3286, 1
        %v3458 = vadd.s32 %v3287, 1
        %v3459 = vadd.s32 %v3288, 1
        %v3460 = vadd.s32 %v3289, 1
        %v3461 = vadd.s32 %v3290, 1
        %v3462 = vadd.s32 %v3291, 1
        %vm3463 = vcmp.eq.s32.totalorder %v2155, %v3455
        %vm3464 = vcmp.eq.s32.totalorder %v2155, %v3456
        %vm3465 = vcmp.eq.s32.totalorder %v2155, %v3457
        %vm3466 = vcmp.eq.s32.totalorder %v2155, %v3458
        %vm3467 = vcmp.eq.s32.totalorder %v2155, %v3459
        %vm3468 = vcmp.eq.s32.totalorder %v2155, %v3460
        %vm3469 = vcmp.eq.s32.totalorder %v2155, %v3461
        %vm3470 = vcmp.eq.s32.totalorder %v2155, %v3462
        %v3471 = vsel %vm3463, 1, 0
        %v3472 = vsel %vm3464, 1, 0
        %v3473 = vsel %vm3465, 1, 0
        %v3474 = vsel %vm3466, 1, 0
        %v3475 = vsel %vm3467, 1, 0
        %v3476 = vsel %vm3468, 1, 0
        %v3477 = vsel %vm3469, 1, 0
        %v3478 = vsel %vm3470, 1, 0
        %v3479 = vcvt.s32.f32 %v3471
        %v3480 = vcvt.s32.f32 %v3472
        %v3481 = vcvt.s32.f32 %v3473
        %v3482 = vcvt.s32.f32 %v3474
        %v3483 = vcvt.s32.f32 %v3475
        %v3484 = vcvt.s32.f32 %v3476
        %v3485 = vcvt.s32.f32 %v3477
        %v3486 = vcvt.s32.f32 %v3478
        %v3488 = vsel %vm3316, %v3479, 0
        %v3491 = vsel %vm3316, %v3480, 0
        %v3494 = vsel %vm3316, %v3481, 0
        %v3497 = vsel %vm3316, %v3482, 0
        %v3500 = vsel %vm3316, %v3483, 0
        %v3503 = vsel %vm3316, %v3484, 0
        %v3506 = vsel %vm3316, %v3485, 0
        %v3509 = vsel %vm3316, %v3486, 0
        %3511 = vmatprep.subr.mxu0 0.0
        %3512 = vmatpush1.msra.mxu0 0.0
        %3513 = vmatprep.subr.mxu0 0.0
        %3514 = vmatpush1.msra.mxu0 0.0
        %3515 = vmatprep.subr.mxu0 0.0
        %3516 = vmatpush1.msra.mxu0 0.0
        %3517 = vmatprep.subr.mxu0 0.0
        %3518 = vmatpush1.msra.mxu0 0.0
        %3519 = vmatprep.subr.mxu0 0.0
        %3520 = vmatpush1.msra.mxu0 %v3267
        %3521 = vmatprep.subr.mxu0 0.0
        %3522 = vmatpush1.msra.mxu0 %v3266
        %3523 = vmatprep.subr.mxu0 0.0
        %3524 = vmatpush1.msra.mxu0 %v3265
        %3525 = vmatprep.subr.mxu0 0.0
        %3526 = vmatpush1.msra.mxu0 %v3264
        %3527 = vmatprep.subr.mxu0 0.0
        %3528 = vmatpush1.msra.mxu0 %v3263
        %3529 = vmatprep.subr.mxu0 0.0
        %3530 = vmatpush1.msra.mxu0 %v3262
        %3531 = vmatprep.subr.mxu0 0.0
        %3532 = vmatpush1.msra.mxu0 %v3261
        %3533 = vmatprep.subr.mxu0 0.0
        %3534 = vmatpush1.msra.mxu0 %v3260
        %3535 = vmatprep.subr.mxu0 0.0
        %3536 = vmatpush1.msra.mxu0 %v3259
        %3537 = vmatprep.subr.mxu0 0.0
        %3538 = vmatpush1.msra.mxu0 %v3258
        %3539 = vmatprep.subr.mxu0 0.0
        %3540 = vmatpush1.msra.mxu0 %v3257
        %3541 = vmatprep.subr.mxu0 0.0
        %3542 = vmatpush1.msra.mxu0 %v3256
        %3543 = vmatprep.subr.mxu0 0.0
        %3544 = vmatpush2.msra.mxu0 0.0
        %3545 = vmatprep.subr.mxu0 0.0
        %3546 = vmatpush2.msra.mxu0 0.0
        %3547 = vmatprep.subr.mxu0 0.0
        %3548 = vmatpush2.msra.mxu0 0.0
        %3549 = vmatprep.subr.mxu0 0.0
        %3550 = vmatpush2.msra.mxu0 0.0
        %3551 = vmatprep.subr.mxu0 0.0
        %3552 = vmatpush2.msra.mxu0 0.0
        %3553 = vmatprep.subr.mxu0 0.0
        %3554 = vmatpush2.msra.mxu0 0.0
        %3555 = vmatprep.subr.mxu0 0.0
        %3556 = vmatpush2.msra.mxu0 0.0
        %3557 = vmatprep.subr.mxu0 0.0
        %3558 = vmatpush2.msra.mxu0 0.0
        %3559 = vmatprep.subr.mxu0 0.0
        %3560 = vmatpush2.msra.mxu0 0.0
        %3561 = vmatprep.subr.mxu0 0.0
        %3562 = vmatpush2.msra.mxu0 0.0
        %3563 = vmatprep.subr.mxu0 0.0
        %3564 = vmatpush2.msra.mxu0 0.0
        %3565 = vmatprep.subr.mxu0 0.0
        %3566 = vmatpush2.msra.mxu0 0.0
        %3567 = vmatprep.subr.mxu0 0.0
        %3568 = vmatpush2.msra.mxu0 0.0
        %3569 = vmatprep.subr.mxu0 0.0
        %3570 = vmatpush2.msra.mxu0 0.0
        %3571 = vmatprep.subr.mxu0 0.0
        %3572 = vmatpush2.msra.mxu0 0.0
        %3573 = vmatprep.subr.mxu0 0.0
        %3574 = vmatpush2.msra.mxu0 0.0
        %3575 = vmatprep.mubr.f32.mxu0 0.0
        %3576 = vmatmul.mubr.f32.gmra.mxu0 %v3488
        %v3577 = vpop.f32.mrf.mxu0
        %v3578 = vadd.f32 0.0, %v3577
        %v3579 = vpop.f32.mrf.mxu0
        %3580 = vmatprep.mubr.f32.mxu0 0.0
        %3581 = vmatmul.mubr.f32.gmra.mxu0 %v3491
        %v3582 = vpop.f32.mrf.mxu0
        %v3583 = vadd.f32 0.0, %v3582
        %v3584 = vpop.f32.mrf.mxu0
        %3585 = vmatprep.mubr.f32.mxu0 0.0
        %3586 = vmatmul.mubr.f32.gmra.mxu0 %v3494
        %v3587 = vpop.f32.mrf.mxu0
        %v3588 = vadd.f32 0.0, %v3587
        %v3589 = vpop.f32.mrf.mxu0
        %3590 = vmatprep.mubr.f32.mxu0 0.0
        %3591 = vmatmul.mubr.f32.gmra.mxu0 %v3497
        %v3592 = vpop.f32.mrf.mxu0
        %v3593 = vadd.f32 0.0, %v3592
        %v3594 = vpop.f32.mrf.mxu0
        %3595 = vmatprep.mubr.f32.mxu0 0.0
        %3596 = vmatmul.mubr.f32.gmra.mxu0 %v3500
        %v3597 = vpop.f32.mrf.mxu0
        %v3598 = vadd.f32 0.0, %v3597
        %v3599 = vpop.f32.mrf.mxu0
        %3600 = vmatprep.mubr.f32.mxu0 0.0
        %3601 = vmatmul.mubr.f32.gmra.mxu0 %v3503
        %v3602 = vpop.f32.mrf.mxu0
        %v3603 = vadd.f32 0.0, %v3602
        %v3604 = vpop.f32.mrf.mxu0
        %3605 = vmatprep.mubr.f32.mxu0 0.0
        %3606 = vmatmul.mubr.f32.gmra.mxu0 %v3506
        %v3607 = vpop.f32.mrf.mxu0
        %v3608 = vadd.f32 0.0, %v3607
        %v3609 = vpop.f32.mrf.mxu0
        %3610 = vmatprep.mubr.f32.mxu0 0.0
        %3611 = vmatmul.mubr.f32.gmra.mxu0 %v3509
        %v3612 = vpop.f32.mrf.mxu0
        %v3613 = vadd.f32 0.0, %v3612
        %v3614 = vpop.f32.mrf.mxu0
        %3615 = vdwg.mxu0
        %s3616 = scalar_lea.vmem %s3, 72
        %v3617 = vld [vmem:[%s3616] sm:$0xff]
        %v3618 = vld [vmem:[%s3616 + $0x8] sm:$0xff]
        %v3619 = vld [vmem:[%s3616 + $0x10] sm:$0xff]
        %v3620 = vld [vmem:[%s3616 + $0x18] sm:$0xff]
        %v3621 = vld [vmem:[%s3616 + $0x20] sm:$0xff]
        %v3622 = vld [vmem:[%s3616 + $0x28] sm:$0xff]
        %v3623 = vld [vmem:[%s3616 + $0x30] sm:$0xff]
        %v3624 = vld [vmem:[%s3616 + $0x38] sm:$0xff]
        %v3625 = vld [vmem:[%s3616 + $0x40] sm:$0xff]
        %vm3626 = vcmask 588800
        %v3628 = vsel %vm3626, %v3578, 0
        %v3631 = vsel %vm3626, %v3583, 0
        %v3634 = vsel %vm3626, %v3588, 0
        %v3637 = vsel %vm3626, %v3593, 0
        %v3640 = vsel %vm3626, %v3598, 0
        %v3643 = vsel %vm3626, %v3603, 0
        %v3646 = vsel %vm3626, %v3608, 0
        %v3649 = vsel %vm3626, %v3613, 0
        %3651 = vmatprep.subr.mxu0 0.0
        %3652 = vmatpush1.msra.mxu0 0.0
        %3653 = vmatprep.subr.mxu0 0.0
        %3654 = vmatpush1.msra.mxu0 0.0
        %3655 = vmatprep.subr.mxu0 0.0
        %3656 = vmatpush1.msra.mxu0 0.0
        %3657 = vmatprep.subr.mxu0 0.0
        %3658 = vmatpush1.msra.mxu0 0.0
        %3659 = vmatprep.subr.mxu0 0.0
        %3660 = vmatpush1.msra.mxu0 0.0
        %3661 = vmatprep.subr.mxu0 0.0
        %3662 = vmatpush1.msra.mxu0 0.0
        %3663 = vmatprep.subr.mxu0 0.0
        %3664 = vmatpush1.msra.mxu0 0.0
        %3665 = vmatprep.subr.mxu0 0.0
        %3666 = vmatpush1.msra.mxu0 %v3625
        %3667 = vmatprep.subr.mxu0 0.0
        %3668 = vmatpush1.msra.mxu0 %v3624
        %3669 = vmatprep.subr.mxu0 0.0
        %3670 = vmatpush1.msra.mxu0 %v3623
        %3671 = vmatprep.subr.mxu0 0.0
        %3672 = vmatpush1.msra.mxu0 %v3622
        %3673 = vmatprep.subr.mxu0 0.0
        %3674 = vmatpush1.msra.mxu0 %v3621
        %3675 = vmatprep.subr.mxu0 0.0
        %3676 = vmatpush1.msra.mxu0 %v3620
        %3677 = vmatprep.subr.mxu0 0.0
        %3678 = vmatpush1.msra.mxu0 %v3619
        %3679 = vmatprep.subr.mxu0 0.0
        %3680 = vmatpush1.msra.mxu0 %v3618
        %3681 = vmatprep.subr.mxu0 0.0
        %3682 = vmatpush1.msra.mxu0 %v3617
        %3683 = vmatprep.subr.mxu0 0.0
        %3684 = vmatpush2.msra.mxu0 0.0
        %3685 = vmatprep.subr.mxu0 0.0
        %3686 = vmatpush2.msra.mxu0 0.0
        %3687 = vmatprep.subr.mxu0 0.0
        %3688 = vmatpush2.msra.mxu0 0.0
        %3689 = vmatprep.subr.mxu0 0.0
        %3690 = vmatpush2.msra.mxu0 0.0
        %3691 = vmatprep.subr.mxu0 0.0
        %3692 = vmatpush2.msra.mxu0 0.0
        %3693 = vmatprep.subr.mxu0 0.0
        %3694 = vmatpush2.msra.mxu0 0.0
        %3695 = vmatprep.subr.mxu0 0.0
        %3696 = vmatpush2.msra.mxu0 0.0
        %3697 = vmatprep.subr.mxu0 0.0
        %3698 = vmatpush2.msra.mxu0 0.0
        %3699 = vmatprep.subr.mxu0 0.0
        %3700 = vmatpush2.msra.mxu0 0.0
        %3701 = vmatprep.subr.mxu0 0.0
        %3702 = vmatpush2.msra.mxu0 0.0
        %3703 = vmatprep.subr.mxu0 0.0
        %3704 = vmatpush2.msra.mxu0 0.0
        %3705 = vmatprep.subr.mxu0 0.0
        %3706 = vmatpush2.msra.mxu0 0.0
        %3707 = vmatprep.subr.mxu0 0.0
        %3708 = vmatpush2.msra.mxu0 0.0
        %3709 = vmatprep.subr.mxu0 0.0
        %3710 = vmatpush2.msra.mxu0 0.0
        %3711 = vmatprep.subr.mxu0 0.0
        %3712 = vmatpush2.msra.mxu0 0.0
        %3713 = vmatprep.subr.mxu0 0.0
        %3714 = vmatpush2.msra.mxu0 0.0
        %3715 = vmatprep.mubr.f32.mxu0 0.0
        %3716 = vmatmul.mubr.f32.gmra.mxu0 %v3628
        %v3717 = vpop.f32.mrf.mxu0
        %v3718 = vadd.f32 0.0, %v3717
        %v3719 = vpop.f32.mrf.mxu0
        %3720 = vmatprep.mubr.f32.mxu0 0.0
        %3721 = vmatmul.mubr.f32.gmra.mxu0 %v3631
        %v3722 = vpop.f32.mrf.mxu0
        %v3723 = vadd.f32 0.0, %v3722
        %v3724 = vpop.f32.mrf.mxu0
        %3725 = vmatprep.mubr.f32.mxu0 0.0
        %3726 = vmatmul.mubr.f32.gmra.mxu0 %v3634
        %v3727 = vpop.f32.mrf.mxu0
        %v3728 = vadd.f32 0.0, %v3727
        %v3729 = vpop.f32.mrf.mxu0
        %3730 = vmatprep.mubr.f32.mxu0 0.0
        %3731 = vmatmul.mubr.f32.gmra.mxu0 %v3637
        %v3732 = vpop.f32.mrf.mxu0
        %v3733 = vadd.f32 0.0, %v3732
        %v3734 = vpop.f32.mrf.mxu0
        %3735 = vmatprep.mubr.f32.mxu0 0.0
        %3736 = vmatmul.mubr.f32.gmra.mxu0 %v3640
        %v3737 = vpop.f32.mrf.mxu0
        %v3738 = vadd.f32 0.0, %v3737
        %v3739 = vpop.f32.mrf.mxu0
        %3740 = vmatprep.mubr.f32.mxu0 0.0
        %3741 = vmatmul.mubr.f32.gmra.mxu0 %v3643
        %v3742 = vpop.f32.mrf.mxu0
        %v3743 = vadd.f32 0.0, %v3742
        %v3744 = vpop.f32.mrf.mxu0
        %3745 = vmatprep.mubr.f32.mxu0 0.0
        %3746 = vmatmul.mubr.f32.gmra.mxu0 %v3646
        %v3747 = vpop.f32.mrf.mxu0
        %v3748 = vadd.f32 0.0, %v3747
        %v3749 = vpop.f32.mrf.mxu0
        %3750 = vmatprep.mubr.f32.mxu0 0.0
        %3751 = vmatmul.mubr.f32.gmra.mxu0 %v3649
        %v3752 = vpop.f32.mrf.mxu0
        %v3753 = vadd.f32 0.0, %v3752
        %v3754 = vpop.f32.mrf.mxu0
        %3755 = vdwg.mxu0
        %v3757 = vsel %vm3626, %v3408, 0
        %v3760 = vsel %vm3626, %v3413, 0
        %v3763 = vsel %vm3626, %v3418, 0
        %v3766 = vsel %vm3626, %v3423, 0
        %v3769 = vsel %vm3626, %v3428, 0
        %v3772 = vsel %vm3626, %v3433, 0
        %v3775 = vsel %vm3626, %v3438, 0
        %v3778 = vsel %vm3626, %v3443, 0
        %3780 = vmatprep.subr.mxu0 0.0
        %3781 = vmatpush1.msra.mxu0 0.0
        %3782 = vmatprep.subr.mxu0 0.0
        %3783 = vmatpush1.msra.mxu0 0.0
        %3784 = vmatprep.subr.mxu0 0.0
        %3785 = vmatpush1.msra.mxu0 0.0
        %3786 = vmatprep.subr.mxu0 0.0
        %3787 = vmatpush1.msra.mxu0 0.0
        %3788 = vmatprep.subr.mxu0 0.0
        %3789 = vmatpush1.msra.mxu0 0.0
        %3790 = vmatprep.subr.mxu0 0.0
        %3791 = vmatpush1.msra.mxu0 0.0
        %3792 = vmatprep.subr.mxu0 0.0
        %3793 = vmatpush1.msra.mxu0 0.0
        %3794 = vmatprep.subr.mxu0 0.0
        %3795 = vmatpush1.msra.mxu0 %v3454
        %3796 = vmatprep.subr.mxu0 0.0
        %3797 = vmatpush1.msra.mxu0 %v3453
        %3798 = vmatprep.subr.mxu0 0.0
        %3799 = vmatpush1.msra.mxu0 %v3452
        %3800 = vmatprep.subr.mxu0 0.0
        %3801 = vmatpush1.msra.mxu0 %v3451
        %3802 = vmatprep.subr.mxu0 0.0
        %3803 = vmatpush1.msra.mxu0 %v3450
        %3804 = vmatprep.subr.mxu0 0.0
        %3805 = vmatpush1.msra.mxu0 %v3449
        %3806 = vmatprep.subr.mxu0 0.0
        %3807 = vmatpush1.msra.mxu0 %v3448
        %3808 = vmatprep.subr.mxu0 0.0
        %3809 = vmatpush1.msra.mxu0 %v3447
        %3810 = vmatprep.subr.mxu0 0.0
        %3811 = vmatpush1.msra.mxu0 %v3446
        %3812 = vmatprep.subr.mxu0 0.0
        %3813 = vmatpush2.msra.mxu0 0.0
        %3814 = vmatprep.subr.mxu0 0.0
        %3815 = vmatpush2.msra.mxu0 0.0
        %3816 = vmatprep.subr.mxu0 0.0
        %3817 = vmatpush2.msra.mxu0 0.0
        %3818 = vmatprep.subr.mxu0 0.0
        %3819 = vmatpush2.msra.mxu0 0.0
        %3820 = vmatprep.subr.mxu0 0.0
        %3821 = vmatpush2.msra.mxu0 0.0
        %3822 = vmatprep.subr.mxu0 0.0
        %3823 = vmatpush2.msra.mxu0 0.0
        %3824 = vmatprep.subr.mxu0 0.0
        %3825 = vmatpush2.msra.mxu0 0.0
        %3826 = vmatprep.subr.mxu0 0.0
        %3827 = vmatpush2.msra.mxu0 0.0
        %3828 = vmatprep.subr.mxu0 0.0
        %3829 = vmatpush2.msra.mxu0 0.0
        %3830 = vmatprep.subr.mxu0 0.0
        %3831 = vmatpush2.msra.mxu0 0.0
        %3832 = vmatprep.subr.mxu0 0.0
        %3833 = vmatpush2.msra.mxu0 0.0
        %3834 = vmatprep.subr.mxu0 0.0
        %3835 = vmatpush2.msra.mxu0 0.0
        %3836 = vmatprep.subr.mxu0 0.0
        %3837 = vmatpush2.msra.mxu0 0.0
        %3838 = vmatprep.subr.mxu0 0.0
        %3839 = vmatpush2.msra.mxu0 0.0
        %3840 = vmatprep.subr.mxu0 0.0
        %3841 = vmatpush2.msra.mxu0 0.0
        %3842 = vmatprep.subr.mxu0 0.0
        %3843 = vmatpush2.msra.mxu0 0.0
        %3844 = vmatprep.mubr.f32.mxu0 0.0
        %3845 = vmatmul.mubr.f32.gmra.mxu0 %v3757
        %v3846 = vpop.f32.mrf.mxu0
        %v3847 = vadd.f32 %v3718, %v3846
        %v3848 = vpop.f32.mrf.mxu0
        %3849 = vmatprep.mubr.f32.mxu0 0.0
        %3850 = vmatmul.mubr.f32.gmra.mxu0 %v3760
        %v3851 = vpop.f32.mrf.mxu0
        %v3852 = vadd.f32 %v3723, %v3851
        %v3853 = vpop.f32.mrf.mxu0
        %3854 = vmatprep.mubr.f32.mxu0 0.0
        %3855 = vmatmul.mubr.f32.gmra.mxu0 %v3763
        %v3856 = vpop.f32.mrf.mxu0
        %v3857 = vadd.f32 %v3728, %v3856
        %v3858 = vpop.f32.mrf.mxu0
        %3859 = vmatprep.mubr.f32.mxu0 0.0
        %3860 = vmatmul.mubr.f32.gmra.mxu0 %v3766
        %v3861 = vpop.f32.mrf.mxu0
        %v3862 = vadd.f32 %v3733, %v3861
        %v3863 = vpop.f32.mrf.mxu0
        %3864 = vmatprep.mubr.f32.mxu0 0.0
        %3865 = vmatmul.mubr.f32.gmra.mxu0 %v3769
        %v3866 = vpop.f32.mrf.mxu0
        %v3867 = vadd.f32 %v3738, %v3866
        %v3868 = vpop.f32.mrf.mxu0
        %3869 = vmatprep.mubr.f32.mxu0 0.0
        %3870 = vmatmul.mubr.f32.gmra.mxu0 %v3772
        %v3871 = vpop.f32.mrf.mxu0
        %v3872 = vadd.f32 %v3743, %v3871
        %v3873 = vpop.f32.mrf.mxu0
        %3874 = vmatprep.mubr.f32.mxu0 0.0
        %3875 = vmatmul.mubr.f32.gmra.mxu0 %v3775
        %v3876 = vpop.f32.mrf.mxu0
        %v3877 = vadd.f32 %v3748, %v3876
        %v3878 = vpop.f32.mrf.mxu0
        %3879 = vmatprep.mubr.f32.mxu0 0.0
        %3880 = vmatmul.mubr.f32.gmra.mxu0 %v3778
        %v3881 = vpop.f32.mrf.mxu0
        %v3882 = vadd.f32 %v3753, %v3881
        %v3883 = vpop.f32.mrf.mxu0
        %3884 = vdwg.mxu0
        %v3885 = vadd.s32 %v3284, 2
        %v3886 = vadd.s32 %v3285, 2
        %v3887 = vadd.s32 %v3286, 2
        %v3888 = vadd.s32 %v3287, 2
        %v3889 = vadd.s32 %v3288, 2
        %v3890 = vadd.s32 %v3289, 2
        %v3891 = vadd.s32 %v3290, 2
        %v3892 = vadd.s32 %v3291, 2
        %vm3893 = vcmp.eq.s32.totalorder %v2155, %v3885
        %vm3894 = vcmp.eq.s32.totalorder %v2155, %v3886
        %vm3895 = vcmp.eq.s32.totalorder %v2155, %v3887
        %vm3896 = vcmp.eq.s32.totalorder %v2155, %v3888
        %vm3897 = vcmp.eq.s32.totalorder %v2155, %v3889
        %vm3898 = vcmp.eq.s32.totalorder %v2155, %v3890
        %vm3899 = vcmp.eq.s32.totalorder %v2155, %v3891
        %vm3900 = vcmp.eq.s32.totalorder %v2155, %v3892
        %v3901 = vsel %vm3893, 1, 0
        %v3902 = vsel %vm3894, 1, 0
        %v3903 = vsel %vm3895, 1, 0
        %v3904 = vsel %vm3896, 1, 0
        %v3905 = vsel %vm3897, 1, 0
        %v3906 = vsel %vm3898, 1, 0
        %v3907 = vsel %vm3899, 1, 0
        %v3908 = vsel %vm3900, 1, 0
        %v3909 = vcvt.s32.f32 %v3901
        %v3910 = vcvt.s32.f32 %v3902
        %v3911 = vcvt.s32.f32 %v3903
        %v3912 = vcvt.s32.f32 %v3904
        %v3913 = vcvt.s32.f32 %v3905
        %v3914 = vcvt.s32.f32 %v3906
        %v3915 = vcvt.s32.f32 %v3907
        %v3916 = vcvt.s32.f32 %v3908
        %v3918 = vsel %vm3316, %v3909, 0
        %v3921 = vsel %vm3316, %v3910, 0
        %v3924 = vsel %vm3316, %v3911, 0
        %v3927 = vsel %vm3316, %v3912, 0
        %v3930 = vsel %vm3316, %v3913, 0
        %v3933 = vsel %vm3316, %v3914, 0
        %v3936 = vsel %vm3316, %v3915, 0
        %v3939 = vsel %vm3316, %v3916, 0
        %3941 = vmatprep.subr.mxu0 0.0
        %3942 = vmatpush1.msra.mxu0 0.0
        %3943 = vmatprep.subr.mxu0 0.0
        %3944 = vmatpush1.msra.mxu0 0.0
        %3945 = vmatprep.subr.mxu0 0.0
        %3946 = vmatpush1.msra.mxu0 0.0
        %3947 = vmatprep.subr.mxu0 0.0
        %3948 = vmatpush1.msra.mxu0 0.0
        %3949 = vmatprep.subr.mxu0 0.0
        %3950 = vmatpush1.msra.mxu0 %v3267
        %3951 = vmatprep.subr.mxu0 0.0
        %3952 = vmatpush1.msra.mxu0 %v3266
        %3953 = vmatprep.subr.mxu0 0.0
        %3954 = vmatpush1.msra.mxu0 %v3265
        %3955 = vmatprep.subr.mxu0 0.0
        %3956 = vmatpush1.msra.mxu0 %v3264
        %3957 = vmatprep.subr.mxu0 0.0
        %3958 = vmatpush1.msra.mxu0 %v3263
        %3959 = vmatprep.subr.mxu0 0.0
        %3960 = vmatpush1.msra.mxu0 %v3262
        %3961 = vmatprep.subr.mxu0 0.0
        %3962 = vmatpush1.msra.mxu0 %v3261
        %3963 = vmatprep.subr.mxu0 0.0
        %3964 = vmatpush1.msra.mxu0 %v3260
        %3965 = vmatprep.subr.mxu0 0.0
        %3966 = vmatpush1.msra.mxu0 %v3259
        %3967 = vmatprep.subr.mxu0 0.0
        %3968 = vmatpush1.msra.mxu0 %v3258
        %3969 = vmatprep.subr.mxu0 0.0
        %3970 = vmatpush1.msra.mxu0 %v3257
        %3971 = vmatprep.subr.mxu0 0.0
        %3972 = vmatpush1.msra.mxu0 %v3256
        %3973 = vmatprep.subr.mxu0 0.0
        %3974 = vmatpush2.msra.mxu0 0.0
        %3975 = vmatprep.subr.mxu0 0.0
        %3976 = vmatpush2.msra.mxu0 0.0
        %3977 = vmatprep.subr.mxu0 0.0
        %3978 = vmatpush2.msra.mxu0 0.0
        %3979 = vmatprep.subr.mxu0 0.0
        %3980 = vmatpush2.msra.mxu0 0.0
        %3981 = vmatprep.subr.mxu0 0.0
        %3982 = vmatpush2.msra.mxu0 0.0
        %3983 = vmatprep.subr.mxu0 0.0
        %3984 = vmatpush2.msra.mxu0 0.0
        %3985 = vmatprep.subr.mxu0 0.0
        %3986 = vmatpush2.msra.mxu0 0.0
        %3987 = vmatprep.subr.mxu0 0.0
        %3988 = vmatpush2.msra.mxu0 0.0
        %3989 = vmatprep.subr.mxu0 0.0
        %3990 = vmatpush2.msra.mxu0 0.0
        %3991 = vmatprep.subr.mxu0 0.0
        %3992 = vmatpush2.msra.mxu0 0.0
        %3993 = vmatprep.subr.mxu0 0.0
        %3994 = vmatpush2.msra.mxu0 0.0
        %3995 = vmatprep.subr.mxu0 0.0
        %3996 = vmatpush2.msra.mxu0 0.0
        %3997 = vmatprep.subr.mxu0 0.0
        %3998 = vmatpush2.msra.mxu0 0.0
        %3999 = vmatprep.subr.mxu0 0.0
        %4000 = vmatpush2.msra.mxu0 0.0
        %4001 = vmatprep.subr.mxu0 0.0
        %4002 = vmatpush2.msra.mxu0 0.0
        %4003 = vmatprep.subr.mxu0 0.0
        %4004 = vmatpush2.msra.mxu0 0.0
        %4005 = vmatprep.mubr.f32.mxu0 0.0
        %4006 = vmatmul.mubr.f32.gmra.mxu0 %v3918
        %v4007 = vpop.f32.mrf.mxu0
        %v4008 = vadd.f32 0.0, %v4007
        %v4009 = vpop.f32.mrf.mxu0
        %4010 = vmatprep.mubr.f32.mxu0 0.0
        %4011 = vmatmul.mubr.f32.gmra.mxu0 %v3921
        %v4012 = vpop.f32.mrf.mxu0
        %v4013 = vadd.f32 0.0, %v4012
        %v4014 = vpop.f32.mrf.mxu0
        %4015 = vmatprep.mubr.f32.mxu0 0.0
        %4016 = vmatmul.mubr.f32.gmra.mxu0 %v3924
        %v4017 = vpop.f32.mrf.mxu0
        %v4018 = vadd.f32 0.0, %v4017
        %v4019 = vpop.f32.mrf.mxu0
        %4020 = vmatprep.mubr.f32.mxu0 0.0
        %4021 = vmatmul.mubr.f32.gmra.mxu0 %v3927
        %v4022 = vpop.f32.mrf.mxu0
        %v4023 = vadd.f32 0.0, %v4022
        %v4024 = vpop.f32.mrf.mxu0
        %4025 = vmatprep.mubr.f32.mxu0 0.0
        %4026 = vmatmul.mubr.f32.gmra.mxu0 %v3930
        %v4027 = vpop.f32.mrf.mxu0
        %v4028 = vadd.f32 0.0, %v4027
        %v4029 = vpop.f32.mrf.mxu0
        %4030 = vmatprep.mubr.f32.mxu0 0.0
        %4031 = vmatmul.mubr.f32.gmra.mxu0 %v3933
        %v4032 = vpop.f32.mrf.mxu0
        %v4033 = vadd.f32 0.0, %v4032
        %v4034 = vpop.f32.mrf.mxu0
        %4035 = vmatprep.mubr.f32.mxu0 0.0
        %4036 = vmatmul.mubr.f32.gmra.mxu0 %v3936
        %v4037 = vpop.f32.mrf.mxu0
        %v4038 = vadd.f32 0.0, %v4037
        %v4039 = vpop.f32.mrf.mxu0
        %4040 = vmatprep.mubr.f32.mxu0 0.0
        %4041 = vmatmul.mubr.f32.gmra.mxu0 %v3939
        %v4042 = vpop.f32.mrf.mxu0
        %v4043 = vadd.f32 0.0, %v4042
        %v4044 = vpop.f32.mrf.mxu0
        %4045 = vdwg.mxu0
        %s4046 = scalar_lea.vmem %s3, 144
        %v4047 = vld [vmem:[%s4046] sm:$0xff]
        %v4048 = vld [vmem:[%s4046 + $0x8] sm:$0xff]
        %v4049 = vld [vmem:[%s4046 + $0x10] sm:$0xff]
        %v4050 = vld [vmem:[%s4046 + $0x18] sm:$0xff]
        %v4051 = vld [vmem:[%s4046 + $0x20] sm:$0xff]
        %v4052 = vld [vmem:[%s4046 + $0x28] sm:$0xff]
        %v4053 = vld [vmem:[%s4046 + $0x30] sm:$0xff]
        %v4054 = vld [vmem:[%s4046 + $0x38] sm:$0xff]
        %v4055 = vld [vmem:[%s4046 + $0x40] sm:$0xff]
        %v4057 = vsel %vm3626, %v4008, 0
        %v4060 = vsel %vm3626, %v4013, 0
        %v4063 = vsel %vm3626, %v4018, 0
        %v4066 = vsel %vm3626, %v4023, 0
        %v4069 = vsel %vm3626, %v4028, 0
        %v4072 = vsel %vm3626, %v4033, 0
        %v4075 = vsel %vm3626, %v4038, 0
        %v4078 = vsel %vm3626, %v4043, 0
        %4080 = vmatprep.subr.mxu0 0.0
        %4081 = vmatpush1.msra.mxu0 0.0
        %4082 = vmatprep.subr.mxu0 0.0
        %4083 = vmatpush1.msra.mxu0 0.0
        %4084 = vmatprep.subr.mxu0 0.0
        %4085 = vmatpush1.msra.mxu0 0.0
        %4086 = vmatprep.subr.mxu0 0.0
        %4087 = vmatpush1.msra.mxu0 0.0
        %4088 = vmatprep.subr.mxu0 0.0
        %4089 = vmatpush1.msra.mxu0 0.0
        %4090 = vmatprep.subr.mxu0 0.0
        %4091 = vmatpush1.msra.mxu0 0.0
        %4092 = vmatprep.subr.mxu0 0.0
        %4093 = vmatpush1.msra.mxu0 0.0
        %4094 = vmatprep.subr.mxu0 0.0
        %4095 = vmatpush1.msra.mxu0 %v4055
        %4096 = vmatprep.subr.mxu0 0.0
        %4097 = vmatpush1.msra.mxu0 %v4054
        %4098 = vmatprep.subr.mxu0 0.0
        %4099 = vmatpush1.msra.mxu0 %v4053
        %4100 = vmatprep.subr.mxu0 0.0
        %4101 = vmatpush1.msra.mxu0 %v4052
        %4102 = vmatprep.subr.mxu0 0.0
        %4103 = vmatpush1.msra.mxu0 %v4051
        %4104 = vmatprep.subr.mxu0 0.0
        %4105 = vmatpush1.msra.mxu0 %v4050
        %4106 = vmatprep.subr.mxu0 0.0
        %4107 = vmatpush1.msra.mxu0 %v4049
        %4108 = vmatprep.subr.mxu0 0.0
        %4109 = vmatpush1.msra.mxu0 %v4048
        %4110 = vmatprep.subr.mxu0 0.0
        %4111 = vmatpush1.msra.mxu0 %v4047
        %4112 = vmatprep.subr.mxu0 0.0
        %4113 = vmatpush2.msra.mxu0 0.0
        %4114 = vmatprep.subr.mxu0 0.0
        %4115 = vmatpush2.msra.mxu0 0.0
        %4116 = vmatprep.subr.mxu0 0.0
        %4117 = vmatpush2.msra.mxu0 0.0
        %4118 = vmatprep.subr.mxu0 0.0
        %4119 = vmatpush2.msra.mxu0 0.0
        %4120 = vmatprep.subr.mxu0 0.0
        %4121 = vmatpush2.msra.mxu0 0.0
        %4122 = vmatprep.subr.mxu0 0.0
        %4123 = vmatpush2.msra.mxu0 0.0
        %4124 = vmatprep.subr.mxu0 0.0
        %4125 = vmatpush2.msra.mxu0 0.0
        %4126 = vmatprep.subr.mxu0 0.0
        %4127 = vmatpush2.msra.mxu0 0.0
        %4128 = vmatprep.subr.mxu0 0.0
        %4129 = vmatpush2.msra.mxu0 0.0
        %4130 = vmatprep.subr.mxu0 0.0
        %4131 = vmatpush2.msra.mxu0 0.0
        %4132 = vmatprep.subr.mxu0 0.0
        %4133 = vmatpush2.msra.mxu0 0.0
        %4134 = vmatprep.subr.mxu0 0.0
        %4135 = vmatpush2.msra.mxu0 0.0
        %4136 = vmatprep.subr.mxu0 0.0
        %4137 = vmatpush2.msra.mxu0 0.0
        %4138 = vmatprep.subr.mxu0 0.0
        %4139 = vmatpush2.msra.mxu0 0.0
        %4140 = vmatprep.subr.mxu0 0.0
        %4141 = vmatpush2.msra.mxu0 0.0
        %4142 = vmatprep.subr.mxu0 0.0
        %4143 = vmatpush2.msra.mxu0 0.0
        %4144 = vmatprep.mubr.f32.mxu0 0.0
        %4145 = vmatmul.mubr.f32.gmra.mxu0 %v4057
        %v4146 = vpop.f32.mrf.mxu0
        %v4147 = vadd.f32 0.0, %v4146
        %v4148 = vpop.f32.mrf.mxu0
        %4149 = vmatprep.mubr.f32.mxu0 0.0
        %4150 = vmatmul.mubr.f32.gmra.mxu0 %v4060
        %v4151 = vpop.f32.mrf.mxu0
        %v4152 = vadd.f32 0.0, %v4151
        %v4153 = vpop.f32.mrf.mxu0
        %4154 = vmatprep.mubr.f32.mxu0 0.0
        %4155 = vmatmul.mubr.f32.gmra.mxu0 %v4063
        %v4156 = vpop.f32.mrf.mxu0
        %v4157 = vadd.f32 0.0, %v4156
        %v4158 = vpop.f32.mrf.mxu0
        %4159 = vmatprep.mubr.f32.mxu0 0.0
        %4160 = vmatmul.mubr.f32.gmra.mxu0 %v4066
        %v4161 = vpop.f32.mrf.mxu0
        %v4162 = vadd.f32 0.0, %v4161
        %v4163 = vpop.f32.mrf.mxu0
        %4164 = vmatprep.mubr.f32.mxu0 0.0
        %4165 = vmatmul.mubr.f32.gmra.mxu0 %v4069
        %v4166 = vpop.f32.mrf.mxu0
        %v4167 = vadd.f32 0.0, %v4166
        %v4168 = vpop.f32.mrf.mxu0
        %4169 = vmatprep.mubr.f32.mxu0 0.0
        %4170 = vmatmul.mubr.f32.gmra.mxu0 %v4072
        %v4171 = vpop.f32.mrf.mxu0
        %v4172 = vadd.f32 0.0, %v4171
        %v4173 = vpop.f32.mrf.mxu0
        %4174 = vmatprep.mubr.f32.mxu0 0.0
        %4175 = vmatmul.mubr.f32.gmra.mxu0 %v4075
        %v4176 = vpop.f32.mrf.mxu0
        %v4177 = vadd.f32 0.0, %v4176
        %v4178 = vpop.f32.mrf.mxu0
        %4179 = vmatprep.mubr.f32.mxu0 0.0
        %4180 = vmatmul.mubr.f32.gmra.mxu0 %v4078
        %v4181 = vpop.f32.mrf.mxu0
        %v4182 = vadd.f32 0.0, %v4181
        %v4183 = vpop.f32.mrf.mxu0
        %4184 = vdwg.mxu0
        %v4185 = vadd.f32 %v3847, %v4147
        %v4186 = vadd.f32 %v3852, %v4152
        %v4187 = vadd.f32 %v3857, %v4157
        %v4188 = vadd.f32 %v3862, %v4162
        %v4189 = vadd.f32 %v3867, %v4167
        %v4190 = vadd.f32 %v3872, %v4172
        %v4191 = vadd.f32 %v3877, %v4177
        %v4192 = vadd.f32 %v3882, %v4182
        %v4193 = vadd.s32 %v3284, 3
        %v4194 = vadd.s32 %v3285, 3
        %v4195 = vadd.s32 %v3286, 3
        %v4196 = vadd.s32 %v3287, 3
        %v4197 = vadd.s32 %v3288, 3
        %v4198 = vadd.s32 %v3289, 3
        %v4199 = vadd.s32 %v3290, 3
        %v4200 = vadd.s32 %v3291, 3
        %vm4201 = vcmp.eq.s32.totalorder %v2155, %v4193
        %vm4202 = vcmp.eq.s32.totalorder %v2155, %v4194
        %vm4203 = vcmp.eq.s32.totalorder %v2155, %v4195
        %vm4204 = vcmp.eq.s32.totalorder %v2155, %v4196
        %vm4205 = vcmp.eq.s32.totalorder %v2155, %v4197
        %vm4206 = vcmp.eq.s32.totalorder %v2155, %v4198
        %vm4207 = vcmp.eq.s32.totalorder %v2155, %v4199
        %vm4208 = vcmp.eq.s32.totalorder %v2155, %v4200
        %v4209 = vsel %vm4201, 1, 0
        %v4210 = vsel %vm4202, 1, 0
        %v4211 = vsel %vm4203, 1, 0
        %v4212 = vsel %vm4204, 1, 0
        %v4213 = vsel %vm4205, 1, 0
        %v4214 = vsel %vm4206, 1, 0
        %v4215 = vsel %vm4207, 1, 0
        %v4216 = vsel %vm4208, 1, 0
        %v4217 = vcvt.s32.f32 %v4209
        %v4218 = vcvt.s32.f32 %v4210
        %v4219 = vcvt.s32.f32 %v4211
        %v4220 = vcvt.s32.f32 %v4212
        %v4221 = vcvt.s32.f32 %v4213
        %v4222 = vcvt.s32.f32 %v4214
        %v4223 = vcvt.s32.f32 %v4215
        %v4224 = vcvt.s32.f32 %v4216
        %v4226 = vsel %vm3316, %v4217, 0
        %v4229 = vsel %vm3316, %v4218, 0
        %v4232 = vsel %vm3316, %v4219, 0
        %v4235 = vsel %vm3316, %v4220, 0
        %v4238 = vsel %vm3316, %v4221, 0
        %v4241 = vsel %vm3316, %v4222, 0
        %v4244 = vsel %vm3316, %v4223, 0
        %v4247 = vsel %vm3316, %v4224, 0
        %4249 = vmatprep.subr.mxu0 0.0
        %4250 = vmatpush1.msra.mxu0 0.0
        %4251 = vmatprep.subr.mxu0 0.0
        %4252 = vmatpush1.msra.mxu0 0.0
        %4253 = vmatprep.subr.mxu0 0.0
        %4254 = vmatpush1.msra.mxu0 0.0
        %4255 = vmatprep.subr.mxu0 0.0
        %4256 = vmatpush1.msra.mxu0 0.0
        %4257 = vmatprep.subr.mxu0 0.0
        %4258 = vmatpush1.msra.mxu0 %v3267
        %4259 = vmatprep.subr.mxu0 0.0
        %4260 = vmatpush1.msra.mxu0 %v3266
        %4261 = vmatprep.subr.mxu0 0.0
        %4262 = vmatpush1.msra.mxu0 %v3265
        %4263 = vmatprep.subr.mxu0 0.0
        %4264 = vmatpush1.msra.mxu0 %v3264
        %4265 = vmatprep.subr.mxu0 0.0
        %4266 = vmatpush1.msra.mxu0 %v3263
        %4267 = vmatprep.subr.mxu0 0.0
        %4268 = vmatpush1.msra.mxu0 %v3262
        %4269 = vmatprep.subr.mxu0 0.0
        %4270 = vmatpush1.msra.mxu0 %v3261
        %4271 = vmatprep.subr.mxu0 0.0
        %4272 = vmatpush1.msra.mxu0 %v3260
        %4273 = vmatprep.subr.mxu0 0.0
        %4274 = vmatpush1.msra.mxu0 %v3259
        %4275 = vmatprep.subr.mxu0 0.0
        %4276 = vmatpush1.msra.mxu0 %v3258
        %4277 = vmatprep.subr.mxu0 0.0
        %4278 = vmatpush1.msra.mxu0 %v3257
        %4279 = vmatprep.subr.mxu0 0.0
        %4280 = vmatpush1.msra.mxu0 %v3256
        %4281 = vmatprep.subr.mxu0 0.0
        %4282 = vmatpush2.msra.mxu0 0.0
        %4283 = vmatprep.subr.mxu0 0.0
        %4284 = vmatpush2.msra.mxu0 0.0
        %4285 = vmatprep.subr.mxu0 0.0
        %4286 = vmatpush2.msra.mxu0 0.0
        %4287 = vmatprep.subr.mxu0 0.0
        %4288 = vmatpush2.msra.mxu0 0.0
        %4289 = vmatprep.subr.mxu0 0.0
        %4290 = vmatpush2.msra.mxu0 0.0
        %4291 = vmatprep.subr.mxu0 0.0
        %4292 = vmatpush2.msra.mxu0 0.0
        %4293 = vmatprep.subr.mxu0 0.0
        %4294 = vmatpush2.msra.mxu0 0.0
        %4295 = vmatprep.subr.mxu0 0.0
        %4296 = vmatpush2.msra.mxu0 0.0
        %4297 = vmatprep.subr.mxu0 0.0
        %4298 = vmatpush2.msra.mxu0 0.0
        %4299 = vmatprep.subr.mxu0 0.0
        %4300 = vmatpush2.msra.mxu0 0.0
        %4301 = vmatprep.subr.mxu0 0.0
        %4302 = vmatpush2.msra.mxu0 0.0
        %4303 = vmatprep.subr.mxu0 0.0
        %4304 = vmatpush2.msra.mxu0 0.0
        %4305 = vmatprep.subr.mxu0 0.0
        %4306 = vmatpush2.msra.mxu0 0.0
        %4307 = vmatprep.subr.mxu0 0.0
        %4308 = vmatpush2.msra.mxu0 0.0
        %4309 = vmatprep.subr.mxu0 0.0
        %4310 = vmatpush2.msra.mxu0 0.0
        %4311 = vmatprep.subr.mxu0 0.0
        %4312 = vmatpush2.msra.mxu0 0.0
        %4313 = vmatprep.mubr.f32.mxu0 0.0
        %4314 = vmatmul.mubr.f32.gmra.mxu0 %v4226
        %v4315 = vpop.f32.mrf.mxu0
        %v4316 = vadd.f32 0.0, %v4315
        %v4317 = vpop.f32.mrf.mxu0
        %4318 = vmatprep.mubr.f32.mxu0 0.0
        %4319 = vmatmul.mubr.f32.gmra.mxu0 %v4229
        %v4320 = vpop.f32.mrf.mxu0
        %v4321 = vadd.f32 0.0, %v4320
        %v4322 = vpop.f32.mrf.mxu0
        %4323 = vmatprep.mubr.f32.mxu0 0.0
        %4324 = vmatmul.mubr.f32.gmra.mxu0 %v4232
        %v4325 = vpop.f32.mrf.mxu0
        %v4326 = vadd.f32 0.0, %v4325
        %v4327 = vpop.f32.mrf.mxu0
        %4328 = vmatprep.mubr.f32.mxu0 0.0
        %4329 = vmatmul.mubr.f32.gmra.mxu0 %v4235
        %v4330 = vpop.f32.mrf.mxu0
        %v4331 = vadd.f32 0.0, %v4330
        %v4332 = vpop.f32.mrf.mxu0
        %4333 = vmatprep.mubr.f32.mxu0 0.0
        %4334 = vmatmul.mubr.f32.gmra.mxu0 %v4238
        %v4335 = vpop.f32.mrf.mxu0
        %v4336 = vadd.f32 0.0, %v4335
        %v4337 = vpop.f32.mrf.mxu0
        %4338 = vmatprep.mubr.f32.mxu0 0.0
        %4339 = vmatmul.mubr.f32.gmra.mxu0 %v4241
        %v4340 = vpop.f32.mrf.mxu0
        %v4341 = vadd.f32 0.0, %v4340
        %v4342 = vpop.f32.mrf.mxu0
        %4343 = vmatprep.mubr.f32.mxu0 0.0
        %4344 = vmatmul.mubr.f32.gmra.mxu0 %v4244
        %v4345 = vpop.f32.mrf.mxu0
        %v4346 = vadd.f32 0.0, %v4345
        %v4347 = vpop.f32.mrf.mxu0
        %4348 = vmatprep.mubr.f32.mxu0 0.0
        %4349 = vmatmul.mubr.f32.gmra.mxu0 %v4247
        %v4350 = vpop.f32.mrf.mxu0
        %v4351 = vadd.f32 0.0, %v4350
        %v4352 = vpop.f32.mrf.mxu0
        %4353 = vdwg.mxu0
        %s4354 = scalar_lea.vmem %s3, 216
        %v4355 = vld [vmem:[%s4354] sm:$0xff]
        %v4356 = vld [vmem:[%s4354 + $0x8] sm:$0xff]
        %v4357 = vld [vmem:[%s4354 + $0x10] sm:$0xff]
        %v4358 = vld [vmem:[%s4354 + $0x18] sm:$0xff]
        %v4359 = vld [vmem:[%s4354 + $0x20] sm:$0xff]
        %v4360 = vld [vmem:[%s4354 + $0x28] sm:$0xff]
        %v4361 = vld [vmem:[%s4354 + $0x30] sm:$0xff]
        %v4362 = vld [vmem:[%s4354 + $0x38] sm:$0xff]
        %v4363 = vld [vmem:[%s4354 + $0x40] sm:$0xff]
        %v4365 = vsel %vm3626, %v4316, 0
        %v4368 = vsel %vm3626, %v4321, 0
        %v4371 = vsel %vm3626, %v4326, 0
        %v4374 = vsel %vm3626, %v4331, 0
        %v4377 = vsel %vm3626, %v4336, 0
        %v4380 = vsel %vm3626, %v4341, 0
        %v4383 = vsel %vm3626, %v4346, 0
        %v4386 = vsel %vm3626, %v4351, 0
        %4388 = vmatprep.subr.mxu0 0.0
        %4389 = vmatpush1.msra.mxu0 0.0
        %4390 = vmatprep.subr.mxu0 0.0
        %4391 = vmatpush1.msra.mxu0 0.0
        %4392 = vmatprep.subr.mxu0 0.0
        %4393 = vmatpush1.msra.mxu0 0.0
        %4394 = vmatprep.subr.mxu0 0.0
        %4395 = vmatpush1.msra.mxu0 0.0
        %4396 = vmatprep.subr.mxu0 0.0
        %4397 = vmatpush1.msra.mxu0 0.0
        %4398 = vmatprep.subr.mxu0 0.0
        %4399 = vmatpush1.msra.mxu0 0.0
        %4400 = vmatprep.subr.mxu0 0.0
        %4401 = vmatpush1.msra.mxu0 0.0
        %4402 = vmatprep.subr.mxu0 0.0
        %4403 = vmatpush1.msra.mxu0 %v4363
        %4404 = vmatprep.subr.mxu0 0.0
        %4405 = vmatpush1.msra.mxu0 %v4362
        %4406 = vmatprep.subr.mxu0 0.0
        %4407 = vmatpush1.msra.mxu0 %v4361
        %4408 = vmatprep.subr.mxu0 0.0
        %4409 = vmatpush1.msra.mxu0 %v4360
        %4410 = vmatprep.subr.mxu0 0.0
        %4411 = vmatpush1.msra.mxu0 %v4359
        %4412 = vmatprep.subr.mxu0 0.0
        %4413 = vmatpush1.msra.mxu0 %v4358
        %4414 = vmatprep.subr.mxu0 0.0
        %4415 = vmatpush1.msra.mxu0 %v4357
        %4416 = vmatprep.subr.mxu0 0.0
        %4417 = vmatpush1.msra.mxu0 %v4356
        %4418 = vmatprep.subr.mxu0 0.0
        %4419 = vmatpush1.msra.mxu0 %v4355
        %4420 = vmatprep.subr.mxu0 0.0
        %4421 = vmatpush2.msra.mxu0 0.0
        %4422 = vmatprep.subr.mxu0 0.0
        %4423 = vmatpush2.msra.mxu0 0.0
        %4424 = vmatprep.subr.mxu0 0.0
        %4425 = vmatpush2.msra.mxu0 0.0
        %4426 = vmatprep.subr.mxu0 0.0
        %4427 = vmatpush2.msra.mxu0 0.0
        %4428 = vmatprep.subr.mxu0 0.0
        %4429 = vmatpush2.msra.mxu0 0.0
        %4430 = vmatprep.subr.mxu0 0.0
        %4431 = vmatpush2.msra.mxu0 0.0
        %4432 = vmatprep.subr.mxu0 0.0
        %4433 = vmatpush2.msra.mxu0 0.0
        %4434 = vmatprep.subr.mxu0 0.0
        %4435 = vmatpush2.msra.mxu0 0.0
        %4436 = vmatprep.subr.mxu0 0.0
        %4437 = vmatpush2.msra.mxu0 0.0
        %4438 = vmatprep.subr.mxu0 0.0
        %4439 = vmatpush2.msra.mxu0 0.0
        %4440 = vmatprep.subr.mxu0 0.0
        %4441 = vmatpush2.msra.mxu0 0.0
        %4442 = vmatprep.subr.mxu0 0.0
        %4443 = vmatpush2.msra.mxu0 0.0
        %4444 = vmatprep.subr.mxu0 0.0
        %4445 = vmatpush2.msra.mxu0 0.0
        %4446 = vmatprep.subr.mxu0 0.0
        %4447 = vmatpush2.msra.mxu0 0.0
        %4448 = vmatprep.subr.mxu0 0.0
        %4449 = vmatpush2.msra.mxu0 0.0
        %4450 = vmatprep.subr.mxu0 0.0
        %4451 = vmatpush2.msra.mxu0 0.0
        %4452 = vmatprep.mubr.f32.mxu0 0.0
        %4453 = vmatmul.mubr.f32.gmra.mxu0 %v4365
        %v4454 = vpop.f32.mrf.mxu0
        %v4455 = vadd.f32 0.0, %v4454
        %v4456 = vpop.f32.mrf.mxu0
        %4457 = vmatprep.mubr.f32.mxu0 0.0
        %4458 = vmatmul.mubr.f32.gmra.mxu0 %v4368
        %v4459 = vpop.f32.mrf.mxu0
        %v4460 = vadd.f32 0.0, %v4459
        %v4461 = vpop.f32.mrf.mxu0
        %4462 = vmatprep.mubr.f32.mxu0 0.0
        %4463 = vmatmul.mubr.f32.gmra.mxu0 %v4371
        %v4464 = vpop.f32.mrf.mxu0
        %v4465 = vadd.f32 0.0, %v4464
        %v4466 = vpop.f32.mrf.mxu0
        %4467 = vmatprep.mubr.f32.mxu0 0.0
        %4468 = vmatmul.mubr.f32.gmra.mxu0 %v4374
        %v4469 = vpop.f32.mrf.mxu0
        %v4470 = vadd.f32 0.0, %v4469
        %v4471 = vpop.f32.mrf.mxu0
        %4472 = vmatprep.mubr.f32.mxu0 0.0
        %4473 = vmatmul.mubr.f32.gmra.mxu0 %v4377
        %v4474 = vpop.f32.mrf.mxu0
        %v4475 = vadd.f32 0.0, %v4474
        %v4476 = vpop.f32.mrf.mxu0
        %4477 = vmatprep.mubr.f32.mxu0 0.0
        %4478 = vmatmul.mubr.f32.gmra.mxu0 %v4380
        %v4479 = vpop.f32.mrf.mxu0
        %v4480 = vadd.f32 0.0, %v4479
        %v4481 = vpop.f32.mrf.mxu0
        %4482 = vmatprep.mubr.f32.mxu0 0.0
        %4483 = vmatmul.mubr.f32.gmra.mxu0 %v4383
        %v4484 = vpop.f32.mrf.mxu0
        %v4485 = vadd.f32 0.0, %v4484
        %v4486 = vpop.f32.mrf.mxu0
        %4487 = vmatprep.mubr.f32.mxu0 0.0
        %4488 = vmatmul.mubr.f32.gmra.mxu0 %v4386
        %v4489 = vpop.f32.mrf.mxu0
        %v4490 = vadd.f32 0.0, %v4489
        %v4491 = vpop.f32.mrf.mxu0
        %4492 = vdwg.mxu0
        %v4493 = vadd.f32 %v4185, %v4455
        %v4494 = vadd.f32 %v4186, %v4460
        %v4495 = vadd.f32 %v4187, %v4465
        %v4496 = vadd.f32 %v4188, %v4470
        %v4497 = vadd.f32 %v4189, %v4475
        %v4498 = vadd.f32 %v4190, %v4480
        %v4499 = vadd.f32 %v4191, %v4485
        %v4500 = vadd.f32 %v4192, %v4490
        %v4501 = vadd.s32 %v3284, 4
        %v4502 = vadd.s32 %v3285, 4
        %v4503 = vadd.s32 %v3286, 4
        %v4504 = vadd.s32 %v3287, 4
        %v4505 = vadd.s32 %v3288, 4
        %v4506 = vadd.s32 %v3289, 4
        %v4507 = vadd.s32 %v3290, 4
        %v4508 = vadd.s32 %v3291, 4
        %vm4509 = vcmp.eq.s32.totalorder %v2155, %v4501
        %vm4510 = vcmp.eq.s32.totalorder %v2155, %v4502
        %vm4511 = vcmp.eq.s32.totalorder %v2155, %v4503
        %vm4512 = vcmp.eq.s32.totalorder %v2155, %v4504
        %vm4513 = vcmp.eq.s32.totalorder %v2155, %v4505
        %vm4514 = vcmp.eq.s32.totalorder %v2155, %v4506
        %vm4515 = vcmp.eq.s32.totalorder %v2155, %v4507
        %vm4516 = vcmp.eq.s32.totalorder %v2155, %v4508
        %v4517 = vsel %vm4509, 1, 0
        %v4518 = vsel %vm4510, 1, 0
        %v4519 = vsel %vm4511, 1, 0
        %v4520 = vsel %vm4512, 1, 0
        %v4521 = vsel %vm4513, 1, 0
        %v4522 = vsel %vm4514, 1, 0
        %v4523 = vsel %vm4515, 1, 0
        %v4524 = vsel %vm4516, 1, 0
        %v4525 = vcvt.s32.f32 %v4517
        %v4526 = vcvt.s32.f32 %v4518
        %v4527 = vcvt.s32.f32 %v4519
        %v4528 = vcvt.s32.f32 %v4520
        %v4529 = vcvt.s32.f32 %v4521
        %v4530 = vcvt.s32.f32 %v4522
        %v4531 = vcvt.s32.f32 %v4523
        %v4532 = vcvt.s32.f32 %v4524
        %v4534 = vsel %vm3316, %v4525, 0
        %v4537 = vsel %vm3316, %v4526, 0
        %v4540 = vsel %vm3316, %v4527, 0
        %v4543 = vsel %vm3316, %v4528, 0
        %v4546 = vsel %vm3316, %v4529, 0
        %v4549 = vsel %vm3316, %v4530, 0
        %v4552 = vsel %vm3316, %v4531, 0
        %v4555 = vsel %vm3316, %v4532, 0
        %4557 = vmatprep.subr.mxu0 0.0
        %4558 = vmatpush1.msra.mxu0 0.0
        %4559 = vmatprep.subr.mxu0 0.0
        %4560 = vmatpush1.msra.mxu0 0.0
        %4561 = vmatprep.subr.mxu0 0.0
        %4562 = vmatpush1.msra.mxu0 0.0
        %4563 = vmatprep.subr.mxu0 0.0
        %4564 = vmatpush1.msra.mxu0 0.0
        %4565 = vmatprep.subr.mxu0 0.0
        %4566 = vmatpush1.msra.mxu0 %v3267
        %4567 = vmatprep.subr.mxu0 0.0
        %4568 = vmatpush1.msra.mxu0 %v3266
        %4569 = vmatprep.subr.mxu0 0.0
        %4570 = vmatpush1.msra.mxu0 %v3265
        %4571 = vmatprep.subr.mxu0 0.0
        %4572 = vmatpush1.msra.mxu0 %v3264
        %4573 = vmatprep.subr.mxu0 0.0
        %4574 = vmatpush1.msra.mxu0 %v3263
        %4575 = vmatprep.subr.mxu0 0.0
        %4576 = vmatpush1.msra.mxu0 %v3262
        %4577 = vmatprep.subr.mxu0 0.0
        %4578 = vmatpush1.msra.mxu0 %v3261
        %4579 = vmatprep.subr.mxu0 0.0
        %4580 = vmatpush1.msra.mxu0 %v3260
        %4581 = vmatprep.subr.mxu0 0.0
        %4582 = vmatpush1.msra.mxu0 %v3259
        %4583 = vmatprep.subr.mxu0 0.0
        %4584 = vmatpush1.msra.mxu0 %v3258
        %4585 = vmatprep.subr.mxu0 0.0
        %4586 = vmatpush1.msra.mxu0 %v3257
        %4587 = vmatprep.subr.mxu0 0.0
        %4588 = vmatpush1.msra.mxu0 %v3256
        %4589 = vmatprep.subr.mxu0 0.0
        %4590 = vmatpush2.msra.mxu0 0.0
        %4591 = vmatprep.subr.mxu0 0.0
        %4592 = vmatpush2.msra.mxu0 0.0
        %4593 = vmatprep.subr.mxu0 0.0
        %4594 = vmatpush2.msra.mxu0 0.0
        %4595 = vmatprep.subr.mxu0 0.0
        %4596 = vmatpush2.msra.mxu0 0.0
        %4597 = vmatprep.subr.mxu0 0.0
        %4598 = vmatpush2.msra.mxu0 0.0
        %4599 = vmatprep.subr.mxu0 0.0
        %4600 = vmatpush2.msra.mxu0 0.0
        %4601 = vmatprep.subr.mxu0 0.0
        %4602 = vmatpush2.msra.mxu0 0.0
        %4603 = vmatprep.subr.mxu0 0.0
        %4604 = vmatpush2.msra.mxu0 0.0
        %4605 = vmatprep.subr.mxu0 0.0
        %4606 = vmatpush2.msra.mxu0 0.0
        %4607 = vmatprep.subr.mxu0 0.0
        %4608 = vmatpush2.msra.mxu0 0.0
        %4609 = vmatprep.subr.mxu0 0.0
        %4610 = vmatpush2.msra.mxu0 0.0
        %4611 = vmatprep.subr.mxu0 0.0
        %4612 = vmatpush2.msra.mxu0 0.0
        %4613 = vmatprep.subr.mxu0 0.0
        %4614 = vmatpush2.msra.mxu0 0.0
        %4615 = vmatprep.subr.mxu0 0.0
        %4616 = vmatpush2.msra.mxu0 0.0
        %4617 = vmatprep.subr.mxu0 0.0
        %4618 = vmatpush2.msra.mxu0 0.0
        %4619 = vmatprep.subr.mxu0 0.0
        %4620 = vmatpush2.msra.mxu0 0.0
        %4621 = vmatprep.mubr.f32.mxu0 0.0
        %4622 = vmatmul.mubr.f32.gmra.mxu0 %v4534
        %v4623 = vpop.f32.mrf.mxu0
        %v4624 = vadd.f32 0.0, %v4623
        %v4625 = vpop.f32.mrf.mxu0
        %4626 = vmatprep.mubr.f32.mxu0 0.0
        %4627 = vmatmul.mubr.f32.gmra.mxu0 %v4537
        %v4628 = vpop.f32.mrf.mxu0
        %v4629 = vadd.f32 0.0, %v4628
        %v4630 = vpop.f32.mrf.mxu0
        %4631 = vmatprep.mubr.f32.mxu0 0.0
        %4632 = vmatmul.mubr.f32.gmra.mxu0 %v4540
        %v4633 = vpop.f32.mrf.mxu0
        %v4634 = vadd.f32 0.0, %v4633
        %v4635 = vpop.f32.mrf.mxu0
        %4636 = vmatprep.mubr.f32.mxu0 0.0
        %4637 = vmatmul.mubr.f32.gmra.mxu0 %v4543
        %v4638 = vpop.f32.mrf.mxu0
        %v4639 = vadd.f32 0.0, %v4638
        %v4640 = vpop.f32.mrf.mxu0
        %4641 = vmatprep.mubr.f32.mxu0 0.0
        %4642 = vmatmul.mubr.f32.gmra.mxu0 %v4546
        %v4643 = vpop.f32.mrf.mxu0
        %v4644 = vadd.f32 0.0, %v4643
        %v4645 = vpop.f32.mrf.mxu0
        %4646 = vmatprep.mubr.f32.mxu0 0.0
        %4647 = vmatmul.mubr.f32.gmra.mxu0 %v4549
        %v4648 = vpop.f32.mrf.mxu0
        %v4649 = vadd.f32 0.0, %v4648
        %v4650 = vpop.f32.mrf.mxu0
        %4651 = vmatprep.mubr.f32.mxu0 0.0
        %4652 = vmatmul.mubr.f32.gmra.mxu0 %v4552
        %v4653 = vpop.f32.mrf.mxu0
        %v4654 = vadd.f32 0.0, %v4653
        %v4655 = vpop.f32.mrf.mxu0
        %4656 = vmatprep.mubr.f32.mxu0 0.0
        %4657 = vmatmul.mubr.f32.gmra.mxu0 %v4555
        %v4658 = vpop.f32.mrf.mxu0
        %v4659 = vadd.f32 0.0, %v4658
        %v4660 = vpop.f32.mrf.mxu0
        %4661 = vdwg.mxu0
        %s4662 = scalar_lea.vmem %s3, 288
        %v4663 = vld [vmem:[%s4662] sm:$0xff]
        %v4664 = vld [vmem:[%s4662 + $0x8] sm:$0xff]
        %v4665 = vld [vmem:[%s4662 + $0x10] sm:$0xff]
        %v4666 = vld [vmem:[%s4662 + $0x18] sm:$0xff]
        %v4667 = vld [vmem:[%s4662 + $0x20] sm:$0xff]
        %v4668 = vld [vmem:[%s4662 + $0x28] sm:$0xff]
        %v4669 = vld [vmem:[%s4662 + $0x30] sm:$0xff]
        %v4670 = vld [vmem:[%s4662 + $0x38] sm:$0xff]
        %v4671 = vld [vmem:[%s4662 + $0x40] sm:$0xff]
        %v4673 = vsel %vm3626, %v4624, 0
        %v4676 = vsel %vm3626, %v4629, 0
        %v4679 = vsel %vm3626, %v4634, 0
        %v4682 = vsel %vm3626, %v4639, 0
        %v4685 = vsel %vm3626, %v4644, 0
        %v4688 = vsel %vm3626, %v4649, 0
        %v4691 = vsel %vm3626, %v4654, 0
        %v4694 = vsel %vm3626, %v4659, 0
        %4696 = vmatprep.subr.mxu0 0.0
        %4697 = vmatpush1.msra.mxu0 0.0
        %4698 = vmatprep.subr.mxu0 0.0
        %4699 = vmatpush1.msra.mxu0 0.0
        %4700 = vmatprep.subr.mxu0 0.0
        %4701 = vmatpush1.msra.mxu0 0.0
        %4702 = vmatprep.subr.mxu0 0.0
        %4703 = vmatpush1.msra.mxu0 0.0
        %4704 = vmatprep.subr.mxu0 0.0
        %4705 = vmatpush1.msra.mxu0 0.0
        %4706 = vmatprep.subr.mxu0 0.0
        %4707 = vmatpush1.msra.mxu0 0.0
        %4708 = vmatprep.subr.mxu0 0.0
        %4709 = vmatpush1.msra.mxu0 0.0
        %4710 = vmatprep.subr.mxu0 0.0
        %4711 = vmatpush1.msra.mxu0 %v4671
        %4712 = vmatprep.subr.mxu0 0.0
        %4713 = vmatpush1.msra.mxu0 %v4670
        %4714 = vmatprep.subr.mxu0 0.0
        %4715 = vmatpush1.msra.mxu0 %v4669
        %4716 = vmatprep.subr.mxu0 0.0
        %4717 = vmatpush1.msra.mxu0 %v4668
        %4718 = vmatprep.subr.mxu0 0.0
        %4719 = vmatpush1.msra.mxu0 %v4667
        %4720 = vmatprep.subr.mxu0 0.0
        %4721 = vmatpush1.msra.mxu0 %v4666
        %4722 = vmatprep.subr.mxu0 0.0
        %4723 = vmatpush1.msra.mxu0 %v4665
        %4724 = vmatprep.subr.mxu0 0.0
        %4725 = vmatpush1.msra.mxu0 %v4664
        %4726 = vmatprep.subr.mxu0 0.0
        %4727 = vmatpush1.msra.mxu0 %v4663
        %4728 = vmatprep.subr.mxu0 0.0
        %4729 = vmatpush2.msra.mxu0 0.0
        %4730 = vmatprep.subr.mxu0 0.0
        %4731 = vmatpush2.msra.mxu0 0.0
        %4732 = vmatprep.subr.mxu0 0.0
        %4733 = vmatpush2.msra.mxu0 0.0
        %4734 = vmatprep.subr.mxu0 0.0
        %4735 = vmatpush2.msra.mxu0 0.0
        %4736 = vmatprep.subr.mxu0 0.0
        %4737 = vmatpush2.msra.mxu0 0.0
        %4738 = vmatprep.subr.mxu0 0.0
        %4739 = vmatpush2.msra.mxu0 0.0
        %4740 = vmatprep.subr.mxu0 0.0
        %4741 = vmatpush2.msra.mxu0 0.0
        %4742 = vmatprep.subr.mxu0 0.0
        %4743 = vmatpush2.msra.mxu0 0.0
        %4744 = vmatprep.subr.mxu0 0.0
        %4745 = vmatpush2.msra.mxu0 0.0
        %4746 = vmatprep.subr.mxu0 0.0
        %4747 = vmatpush2.msra.mxu0 0.0
        %4748 = vmatprep.subr.mxu0 0.0
        %4749 = vmatpush2.msra.mxu0 0.0
        %4750 = vmatprep.subr.mxu0 0.0
        %4751 = vmatpush2.msra.mxu0 0.0
        %4752 = vmatprep.subr.mxu0 0.0
        %4753 = vmatpush2.msra.mxu0 0.0
        %4754 = vmatprep.subr.mxu0 0.0
        %4755 = vmatpush2.msra.mxu0 0.0
        %4756 = vmatprep.subr.mxu0 0.0
        %4757 = vmatpush2.msra.mxu0 0.0
        %4758 = vmatprep.subr.mxu0 0.0
        %4759 = vmatpush2.msra.mxu0 0.0
        %4760 = vmatprep.mubr.f32.mxu0 0.0
        %4761 = vmatmul.mubr.f32.gmra.mxu0 %v4673
        %v4762 = vpop.f32.mrf.mxu0
        %v4763 = vadd.f32 0.0, %v4762
        %v4764 = vpop.f32.mrf.mxu0
        %4765 = vmatprep.mubr.f32.mxu0 0.0
        %4766 = vmatmul.mubr.f32.gmra.mxu0 %v4676
        %v4767 = vpop.f32.mrf.mxu0
        %v4768 = vadd.f32 0.0, %v4767
        %v4769 = vpop.f32.mrf.mxu0
        %4770 = vmatprep.mubr.f32.mxu0 0.0
        %4771 = vmatmul.mubr.f32.gmra.mxu0 %v4679
        %v4772 = vpop.f32.mrf.mxu0
        %v4773 = vadd.f32 0.0, %v4772
        %v4774 = vpop.f32.mrf.mxu0
        %4775 = vmatprep.mubr.f32.mxu0 0.0
        %4776 = vmatmul.mubr.f32.gmra.mxu0 %v4682
        %v4777 = vpop.f32.mrf.mxu0
        %v4778 = vadd.f32 0.0, %v4777
        %v4779 = vpop.f32.mrf.mxu0
        %4780 = vmatprep.mubr.f32.mxu0 0.0
        %4781 = vmatmul.mubr.f32.gmra.mxu0 %v4685
        %v4782 = vpop.f32.mrf.mxu0
        %v4783 = vadd.f32 0.0, %v4782
        %v4784 = vpop.f32.mrf.mxu0
        %4785 = vmatprep.mubr.f32.mxu0 0.0
        %4786 = vmatmul.mubr.f32.gmra.mxu0 %v4688
        %v4787 = vpop.f32.mrf.mxu0
        %v4788 = vadd.f32 0.0, %v4787
        %v4789 = vpop.f32.mrf.mxu0
        %4790 = vmatprep.mubr.f32.mxu0 0.0
        %4791 = vmatmul.mubr.f32.gmra.mxu0 %v4691
        %v4792 = vpop.f32.mrf.mxu0
        %v4793 = vadd.f32 0.0, %v4792
        %v4794 = vpop.f32.mrf.mxu0
        %4795 = vmatprep.mubr.f32.mxu0 0.0
        %4796 = vmatmul.mubr.f32.gmra.mxu0 %v4694
        %v4797 = vpop.f32.mrf.mxu0
        %v4798 = vadd.f32 0.0, %v4797
        %v4799 = vpop.f32.mrf.mxu0
        %4800 = vdwg.mxu0
        %v4801 = vadd.f32 %v4493, %v4763
        %v4802 = vadd.f32 %v4494, %v4768
        %v4803 = vadd.f32 %v4495, %v4773
        %v4804 = vadd.f32 %v4496, %v4778
        %v4805 = vadd.f32 %v4497, %v4783
        %v4806 = vadd.f32 %v4498, %v4788
        %v4807 = vadd.f32 %v4499, %v4793
        %v4808 = vadd.f32 %v4500, %v4798
        %4809 = vmatprep.subr.mxu0 0.0
        %4810 = vmatpush1.msra.mxu0 %v2208
        %4811 = vmatprep.subr.mxu0 0.0
        %4812 = vmatpush1.msra.mxu0 %v2207
        %4813 = vmatprep.subr.mxu0 0.0
        %4814 = vmatpush1.msra.mxu0 %v2206
        %4815 = vmatprep.subr.mxu0 0.0
        %4816 = vmatpush1.msra.mxu0 %v2205
        %4817 = vmatprep.subr.mxu0 0.0
        %4818 = vmatpush1.msra.mxu0 %v2204
        %4819 = vmatprep.subr.mxu0 0.0
        %4820 = vmatpush1.msra.mxu0 %v2203
        %4821 = vmatprep.subr.mxu0 0.0
        %4822 = vmatpush1.msra.mxu0 %v2202
        %4823 = vmatprep.subr.mxu0 0.0
        %4824 = vmatpush1.msra.mxu0 %v2201
        %4825 = vmatprep.subr.mxu0 0.0
        %4826 = vmatpush1.msra.mxu0 %v2200
        %4827 = vmatprep.subr.mxu0 0.0
        %4828 = vmatpush1.msra.mxu0 %v2199
        %4829 = vmatprep.subr.mxu0 0.0
        %4830 = vmatpush1.msra.mxu0 %v2198
        %4831 = vmatprep.subr.mxu0 0.0
        %4832 = vmatpush1.msra.mxu0 %v2197
        %4833 = vmatprep.subr.mxu0 0.0
        %4834 = vmatpush1.msra.mxu0 %v2196
        %4835 = vmatprep.subr.mxu0 0.0
        %4836 = vmatpush1.msra.mxu0 %v2195
        %4837 = vmatprep.subr.mxu0 0.0
        %4838 = vmatpush1.msra.mxu0 %v2194
        %4839 = vmatprep.subr.mxu0 0.0
        %4840 = vmatpush1.msra.mxu0 %v2193
        %4841 = vmatprep.subr.mxu0 0.0
        %4842 = vmatpush2.msra.mxu0 0.0
        %4843 = vmatprep.subr.mxu0 0.0
        %4844 = vmatpush2.msra.mxu0 0.0
        %4845 = vmatprep.subr.mxu0 0.0
        %4846 = vmatpush2.msra.mxu0 0.0
        %4847 = vmatprep.subr.mxu0 0.0
        %4848 = vmatpush2.msra.mxu0 0.0
        %4849 = vmatprep.subr.mxu0 0.0
        %4850 = vmatpush2.msra.mxu0 0.0
        %4851 = vmatprep.subr.mxu0 0.0
        %4852 = vmatpush2.msra.mxu0 0.0
        %4853 = vmatprep.subr.mxu0 0.0
        %4854 = vmatpush2.msra.mxu0 0.0
        %4855 = vmatprep.subr.mxu0 0.0
        %4856 = vmatpush2.msra.mxu0 0.0
        %4857 = vmatprep.subr.mxu0 0.0
        %4858 = vmatpush2.msra.mxu0 0.0
        %4859 = vmatprep.subr.mxu0 0.0
        %4860 = vmatpush2.msra.mxu0 0.0
        %4861 = vmatprep.subr.mxu0 0.0
        %4862 = vmatpush2.msra.mxu0 0.0
        %4863 = vmatprep.subr.mxu0 0.0
        %4864 = vmatpush2.msra.mxu0 0.0
        %4865 = vmatprep.subr.mxu0 0.0
        %4866 = vmatpush2.msra.mxu0 0.0
        %4867 = vmatprep.subr.mxu0 0.0
        %4868 = vmatpush2.msra.mxu0 0.0
        %4869 = vmatprep.subr.mxu0 0.0
        %4870 = vmatpush2.msra.mxu0 0.0
        %4871 = vmatprep.subr.mxu0 0.0
        %4872 = vmatpush2.msra.mxu0 0.0
        %4873 = vmatprep.mubr.f32.mxu0 0.0
        %4874 = vmatmul.mubr.f32.gmra.mxu0 %v4801
        %v4875 = vpop.f32.mrf.mxu0
        %v4876 = vadd.f32 0.0, %v4875
        %v4877 = vpop.f32.mrf.mxu0
        %4878 = vmatprep.mubr.f32.mxu0 0.0
        %4879 = vmatmul.mubr.f32.gmra.mxu0 %v4802
        %v4880 = vpop.f32.mrf.mxu0
        %v4881 = vadd.f32 0.0, %v4880
        %v4882 = vpop.f32.mrf.mxu0
        %4883 = vmatprep.mubr.f32.mxu0 0.0
        %4884 = vmatmul.mubr.f32.gmra.mxu0 %v4803
        %v4885 = vpop.f32.mrf.mxu0
        %v4886 = vadd.f32 0.0, %v4885
        %v4887 = vpop.f32.mrf.mxu0
        %4888 = vmatprep.mubr.f32.mxu0 0.0
        %4889 = vmatmul.mubr.f32.gmra.mxu0 %v4804
        %v4890 = vpop.f32.mrf.mxu0
        %v4891 = vadd.f32 0.0, %v4890
        %v4892 = vpop.f32.mrf.mxu0
        %4893 = vmatprep.mubr.f32.mxu0 0.0
        %4894 = vmatmul.mubr.f32.gmra.mxu0 %v4805
        %v4895 = vpop.f32.mrf.mxu0
        %v4896 = vadd.f32 0.0, %v4895
        %v4897 = vpop.f32.mrf.mxu0
        %4898 = vmatprep.mubr.f32.mxu0 0.0
        %4899 = vmatmul.mubr.f32.gmra.mxu0 %v4806
        %v4900 = vpop.f32.mrf.mxu0
        %v4901 = vadd.f32 0.0, %v4900
        %v4902 = vpop.f32.mrf.mxu0
        %4903 = vmatprep.mubr.f32.mxu0 0.0
        %4904 = vmatmul.mubr.f32.gmra.mxu0 %v4807
        %v4905 = vpop.f32.mrf.mxu0
        %v4906 = vadd.f32 0.0, %v4905
        %v4907 = vpop.f32.mrf.mxu0
        %4908 = vmatprep.mubr.f32.mxu0 0.0
        %4909 = vmatmul.mubr.f32.gmra.mxu0 %v4808
        %v4910 = vpop.f32.mrf.mxu0
        %v4911 = vadd.f32 0.0, %v4910
        %v4912 = vpop.f32.mrf.mxu0
        %4913 = vdwg.mxu0
        %4914 = vmatprep.subr.mxu0 0.0
        %4915 = vmatpush1.msra.mxu0 %v2521
        %4916 = vmatprep.subr.mxu0 0.0
        %4917 = vmatpush1.msra.mxu0 %v2520
        %4918 = vmatprep.subr.mxu0 0.0
        %4919 = vmatpush1.msra.mxu0 %v2519
        %4920 = vmatprep.subr.mxu0 0.0
        %4921 = vmatpush1.msra.mxu0 %v2518
        %4922 = vmatprep.subr.mxu0 0.0
        %4923 = vmatpush1.msra.mxu0 %v2517
        %4924 = vmatprep.subr.mxu0 0.0
        %4925 = vmatpush1.msra.mxu0 %v2516
        %4926 = vmatprep.subr.mxu0 0.0
        %4927 = vmatpush1.msra.mxu0 %v2515
        %4928 = vmatprep.subr.mxu0 0.0
        %4929 = vmatpush1.msra.mxu0 %v2514
        %4930 = vmatprep.subr.mxu0 0.0
        %4931 = vmatpush1.msra.mxu0 %v2513
        %4932 = vmatprep.subr.mxu0 0.0
        %4933 = vmatpush1.msra.mxu0 %v2512
        %4934 = vmatprep.subr.mxu0 0.0
        %4935 = vmatpush1.msra.mxu0 %v2511
        %4936 = vmatprep.subr.mxu0 0.0
        %4937 = vmatpush1.msra.mxu0 %v2510
        %4938 = vmatprep.subr.mxu0 0.0
        %4939 = vmatpush1.msra.mxu0 %v2509
        %4940 = vmatprep.subr.mxu0 0.0
        %4941 = vmatpush1.msra.mxu0 %v2508
        %4942 = vmatprep.subr.mxu0 0.0
        %4943 = vmatpush1.msra.mxu0 %v2507
        %4944 = vmatprep.subr.mxu0 0.0
        %4945 = vmatpush1.msra.mxu0 %v2506
        %4946 = vmatprep.subr.mxu0 0.0
        %4947 = vmatpush2.msra.mxu0 0.0
        %4948 = vmatprep.subr.mxu0 0.0
        %4949 = vmatpush2.msra.mxu0 0.0
        %4950 = vmatprep.subr.mxu0 0.0
        %4951 = vmatpush2.msra.mxu0 0.0
        %4952 = vmatprep.subr.mxu0 0.0
        %4953 = vmatpush2.msra.mxu0 0.0
        %4954 = vmatprep.subr.mxu0 0.0
        %4955 = vmatpush2.msra.mxu0 0.0
        %4956 = vmatprep.subr.mxu0 0.0
        %4957 = vmatpush2.msra.mxu0 0.0
        %4958 = vmatprep.subr.mxu0 0.0
        %4959 = vmatpush2.msra.mxu0 0.0
        %4960 = vmatprep.subr.mxu0 0.0
        %4961 = vmatpush2.msra.mxu0 0.0
        %4962 = vmatprep.subr.mxu0 0.0
        %4963 = vmatpush2.msra.mxu0 0.0
        %4964 = vmatprep.subr.mxu0 0.0
        %4965 = vmatpush2.msra.mxu0 0.0
        %4966 = vmatprep.subr.mxu0 0.0
        %4967 = vmatpush2.msra.mxu0 0.0
        %4968 = vmatprep.subr.mxu0 0.0
        %4969 = vmatpush2.msra.mxu0 0.0
        %4970 = vmatprep.subr.mxu0 0.0
        %4971 = vmatpush2.msra.mxu0 0.0
        %4972 = vmatprep.subr.mxu0 0.0
        %4973 = vmatpush2.msra.mxu0 0.0
        %4974 = vmatprep.subr.mxu0 0.0
        %4975 = vmatpush2.msra.mxu0 0.0
        %4976 = vmatprep.subr.mxu0 0.0
        %4977 = vmatpush2.msra.mxu0 0.0
        %4978 = vmatprep.mubr.f32.mxu0 0.0
        %4979 = vmatmul.mubr.f32.gmra.mxu0 %v4801
        %v4980 = vpop.f32.mrf.mxu0
        %v4981 = vadd.f32 0.0, %v4980
        %v4982 = vpop.f32.mrf.mxu0
        %4983 = vmatprep.mubr.f32.mxu0 0.0
        %4984 = vmatmul.mubr.f32.gmra.mxu0 %v4802
        %v4985 = vpop.f32.mrf.mxu0
        %v4986 = vadd.f32 0.0, %v4985
        %v4987 = vpop.f32.mrf.mxu0
        %4988 = vmatprep.mubr.f32.mxu0 0.0
        %4989 = vmatmul.mubr.f32.gmra.mxu0 %v4803
        %v4990 = vpop.f32.mrf.mxu0
        %v4991 = vadd.f32 0.0, %v4990
        %v4992 = vpop.f32.mrf.mxu0
        %4993 = vmatprep.mubr.f32.mxu0 0.0
        %4994 = vmatmul.mubr.f32.gmra.mxu0 %v4804
        %v4995 = vpop.f32.mrf.mxu0
        %v4996 = vadd.f32 0.0, %v4995
        %v4997 = vpop.f32.mrf.mxu0
        %4998 = vmatprep.mubr.f32.mxu0 0.0
        %4999 = vmatmul.mubr.f32.gmra.mxu0 %v4805
        %v5000 = vpop.f32.mrf.mxu0
        %v5001 = vadd.f32 0.0, %v5000
        %v5002 = vpop.f32.mrf.mxu0
        %5003 = vmatprep.mubr.f32.mxu0 0.0
        %5004 = vmatmul.mubr.f32.gmra.mxu0 %v4806
        %v5005 = vpop.f32.mrf.mxu0
        %v5006 = vadd.f32 0.0, %v5005
        %v5007 = vpop.f32.mrf.mxu0
        %5008 = vmatprep.mubr.f32.mxu0 0.0
        %5009 = vmatmul.mubr.f32.gmra.mxu0 %v4807
        %v5010 = vpop.f32.mrf.mxu0
        %v5011 = vadd.f32 0.0, %v5010
        %v5012 = vpop.f32.mrf.mxu0
        %5013 = vmatprep.mubr.f32.mxu0 0.0
        %5014 = vmatmul.mubr.f32.gmra.mxu0 %v4808
        %v5015 = vpop.f32.mrf.mxu0
        %v5016 = vadd.f32 0.0, %v5015
        %v5017 = vpop.f32.mrf.mxu0
        %5018 = vdwg.mxu0
        %v5019 = vmax.f32 %v4876, %v4981
        %v5020 = vmax.f32 %v4881, %v4986
        %v5021 = vmax.f32 %v4886, %v4991
        %v5022 = vmax.f32 %v4891, %v4996
        %v5023 = vmax.f32 %v4896, %v5001
        %v5024 = vmax.f32 %v4901, %v5006
        %v5025 = vmax.f32 %v4906, %v5011
        %v5026 = vmax.f32 %v4911, %v5016
        %v5028 = vsel %vm2818, %v2794, 0
        %v5031 = vsel %vm2818, %v2796, 0
        %v5034 = vsel %vm2818, %v2798, 0
        %v5037 = vsel %vm2818, %v2800, 0
        %5039 = vmatprep.subr.mxu0 0.0
        %5040 = vmatpush1.msra.mxu0 0.0
        %5041 = vmatprep.subr.mxu0 0.0
        %5042 = vmatpush1.msra.mxu0 0.0
        %5043 = vmatprep.subr.mxu0 0.0
        %5044 = vmatpush1.msra.mxu0 0.0
        %5045 = vmatprep.subr.mxu0 0.0
        %5046 = vmatpush1.msra.mxu0 0.0
        %5047 = vmatprep.subr.mxu0 0.0
        %5048 = vmatpush1.msra.mxu0 0.0
        %5049 = vmatprep.subr.mxu0 0.0
        %5050 = vmatpush1.msra.mxu0 0.0
        %5051 = vmatprep.subr.mxu0 0.0
        %5052 = vmatpush1.msra.mxu0 0.0
        %5053 = vmatprep.subr.mxu0 0.0
        %5054 = vmatpush1.msra.mxu0 0.0
        %5055 = vmatprep.subr.mxu0 0.0
        %5056 = vmatpush1.msra.mxu0 %v5026
        %5057 = vmatprep.subr.mxu0 0.0
        %5058 = vmatpush1.msra.mxu0 %v5025
        %5059 = vmatprep.subr.mxu0 0.0
        %5060 = vmatpush1.msra.mxu0 %v5024
        %5061 = vmatprep.subr.mxu0 0.0
        %5062 = vmatpush1.msra.mxu0 %v5023
        %5063 = vmatprep.subr.mxu0 0.0
        %5064 = vmatpush1.msra.mxu0 %v5022
        %5065 = vmatprep.subr.mxu0 0.0
        %5066 = vmatpush1.msra.mxu0 %v5021
        %5067 = vmatprep.subr.mxu0 0.0
        %5068 = vmatpush1.msra.mxu0 %v5020
        %5069 = vmatprep.subr.mxu0 0.0
        %5070 = vmatpush1.msra.mxu0 %v5019
        %5071 = vmatprep.subr.mxu0 0.0
        %5072 = vmatpush2.msra.mxu0 0.0
        %5073 = vmatprep.subr.mxu0 0.0
        %5074 = vmatpush2.msra.mxu0 0.0
        %5075 = vmatprep.subr.mxu0 0.0
        %5076 = vmatpush2.msra.mxu0 0.0
        %5077 = vmatprep.subr.mxu0 0.0
        %5078 = vmatpush2.msra.mxu0 0.0
        %5079 = vmatprep.subr.mxu0 0.0
        %5080 = vmatpush2.msra.mxu0 0.0
        %5081 = vmatprep.subr.mxu0 0.0
        %5082 = vmatpush2.msra.mxu0 0.0
        %5083 = vmatprep.subr.mxu0 0.0
        %5084 = vmatpush2.msra.mxu0 0.0
        %5085 = vmatprep.subr.mxu0 0.0
        %5086 = vmatpush2.msra.mxu0 0.0
        %5087 = vmatprep.subr.mxu0 0.0
        %5088 = vmatpush2.msra.mxu0 0.0
        %5089 = vmatprep.subr.mxu0 0.0
        %5090 = vmatpush2.msra.mxu0 0.0
        %5091 = vmatprep.subr.mxu0 0.0
        %5092 = vmatpush2.msra.mxu0 0.0
        %5093 = vmatprep.subr.mxu0 0.0
        %5094 = vmatpush2.msra.mxu0 0.0
        %5095 = vmatprep.subr.mxu0 0.0
        %5096 = vmatpush2.msra.mxu0 0.0
        %5097 = vmatprep.subr.mxu0 0.0
        %5098 = vmatpush2.msra.mxu0 0.0
        %5099 = vmatprep.subr.mxu0 0.0
        %5100 = vmatpush2.msra.mxu0 0.0
        %5101 = vmatprep.subr.mxu0 0.0
        %5102 = vmatpush2.msra.mxu0 0.0
        %5103 = vmatprep.mubr.f32.mxu0 0.0
        %5104 = vmatmul.mubr.f32.gmra.mxu0 %v5028
        %v5105 = vpop.f32.mrf.mxu0
        %v5106 = vadd.f32 0.0, %v5105
        %v5107 = vpop.f32.mrf.mxu0
        %5108 = vmatprep.mubr.f32.mxu0 0.0
        %5109 = vmatmul.mubr.f32.gmra.mxu0 %v5031
        %v5110 = vpop.f32.mrf.mxu0
        %v5111 = vadd.f32 0.0, %v5110
        %v5112 = vpop.f32.mrf.mxu0
        %5113 = vmatprep.mubr.f32.mxu0 0.0
        %5114 = vmatmul.mubr.f32.gmra.mxu0 %v5034
        %v5115 = vpop.f32.mrf.mxu0
        %v5116 = vadd.f32 0.0, %v5115
        %v5117 = vpop.f32.mrf.mxu0
        %5118 = vmatprep.mubr.f32.mxu0 0.0
        %5119 = vmatmul.mubr.f32.gmra.mxu0 %v5037
        %v5120 = vpop.f32.mrf.mxu0
        %v5121 = vadd.f32 0.0, %v5120
        %v5122 = vpop.f32.mrf.mxu0
        %5123 = vdwg.mxu0
        %v5125 = vsel %vm2818, %v3040, 0
        %v5128 = vsel %vm2818, %v3042, 0
        %v5131 = vsel %vm2818, %v3044, 0
        %v5134 = vsel %vm2818, %v3046, 0
        %5136 = vmatprep.subr.mxu0 0.0
        %5137 = vmatpush1.msra.mxu0 0.0
        %5138 = vmatprep.subr.mxu0 0.0
        %5139 = vmatpush1.msra.mxu0 0.0
        %5140 = vmatprep.subr.mxu0 0.0
        %5141 = vmatpush1.msra.mxu0 0.0
        %5142 = vmatprep.subr.mxu0 0.0
        %5143 = vmatpush1.msra.mxu0 0.0
        %5144 = vmatprep.subr.mxu0 0.0
        %5145 = vmatpush1.msra.mxu0 0.0
        %5146 = vmatprep.subr.mxu0 0.0
        %5147 = vmatpush1.msra.mxu0 0.0
        %5148 = vmatprep.subr.mxu0 0.0
        %5149 = vmatpush1.msra.mxu0 0.0
        %5150 = vmatprep.subr.mxu0 0.0
        %5151 = vmatpush1.msra.mxu0 0.0
        %5152 = vmatprep.subr.mxu0 0.0
        %5153 = vmatpush1.msra.mxu0 %v5026
        %5154 = vmatprep.subr.mxu0 0.0
        %5155 = vmatpush1.msra.mxu0 %v5025
        %5156 = vmatprep.subr.mxu0 0.0
        %5157 = vmatpush1.msra.mxu0 %v5024
        %5158 = vmatprep.subr.mxu0 0.0
        %5159 = vmatpush1.msra.mxu0 %v5023
        %5160 = vmatprep.subr.mxu0 0.0
        %5161 = vmatpush1.msra.mxu0 %v5022
        %5162 = vmatprep.subr.mxu0 0.0
        %5163 = vmatpush1.msra.mxu0 %v5021
        %5164 = vmatprep.subr.mxu0 0.0
        %5165 = vmatpush1.msra.mxu0 %v5020
        %5166 = vmatprep.subr.mxu0 0.0
        %5167 = vmatpush1.msra.mxu0 %v5019
        %5168 = vmatprep.subr.mxu0 0.0
        %5169 = vmatpush2.msra.mxu0 0.0
        %5170 = vmatprep.subr.mxu0 0.0
        %5171 = vmatpush2.msra.mxu0 0.0
        %5172 = vmatprep.subr.mxu0 0.0
        %5173 = vmatpush2.msra.mxu0 0.0
        %5174 = vmatprep.subr.mxu0 0.0
        %5175 = vmatpush2.msra.mxu0 0.0
        %5176 = vmatprep.subr.mxu0 0.0
        %5177 = vmatpush2.msra.mxu0 0.0
        %5178 = vmatprep.subr.mxu0 0.0
        %5179 = vmatpush2.msra.mxu0 0.0
        %5180 = vmatprep.subr.mxu0 0.0
        %5181 = vmatpush2.msra.mxu0 0.0
        %5182 = vmatprep.subr.mxu0 0.0
        %5183 = vmatpush2.msra.mxu0 0.0
        %5184 = vmatprep.subr.mxu0 0.0
        %5185 = vmatpush2.msra.mxu0 0.0
        %5186 = vmatprep.subr.mxu0 0.0
        %5187 = vmatpush2.msra.mxu0 0.0
        %5188 = vmatprep.subr.mxu0 0.0
        %5189 = vmatpush2.msra.mxu0 0.0
        %5190 = vmatprep.subr.mxu0 0.0
        %5191 = vmatpush2.msra.mxu0 0.0
        %5192 = vmatprep.subr.mxu0 0.0
        %5193 = vmatpush2.msra.mxu0 0.0
        %5194 = vmatprep.subr.mxu0 0.0
        %5195 = vmatpush2.msra.mxu0 0.0
        %5196 = vmatprep.subr.mxu0 0.0
        %5197 = vmatpush2.msra.mxu0 0.0
        %5198 = vmatprep.subr.mxu0 0.0
        %5199 = vmatpush2.msra.mxu0 0.0
        %5200 = vmatprep.mubr.f32.mxu0 0.0
        %5201 = vmatmul.mubr.f32.gmra.mxu0 %v5125
        %v5202 = vpop.f32.mrf.mxu0
        %v5203 = vadd.f32 0.0, %v5202
        %v5204 = vpop.f32.mrf.mxu0
        %5205 = vmatprep.mubr.f32.mxu0 0.0
        %5206 = vmatmul.mubr.f32.gmra.mxu0 %v5128
        %v5207 = vpop.f32.mrf.mxu0
        %v5208 = vadd.f32 0.0, %v5207
        %v5209 = vpop.f32.mrf.mxu0
        %5210 = vmatprep.mubr.f32.mxu0 0.0
        %5211 = vmatmul.mubr.f32.gmra.mxu0 %v5131
        %v5212 = vpop.f32.mrf.mxu0
        %v5213 = vadd.f32 0.0, %v5212
        %v5214 = vpop.f32.mrf.mxu0
        %5215 = vmatprep.mubr.f32.mxu0 0.0
        %5216 = vmatmul.mubr.f32.gmra.mxu0 %v5134
        %v5217 = vpop.f32.mrf.mxu0
        %v5218 = vadd.f32 0.0, %v5217
        %v5219 = vpop.f32.mrf.mxu0
        %5220 = vdwg.mxu0
        %v5221 = vmax.f32 %v5106, %v5203
        %v5222 = vmax.f32 %v5111, %v5208
        %v5223 = vmax.f32 %v5116, %v5213
        %v5224 = vmax.f32 %v5121, %v5218
        %v5225 = vld [vmem:[%s4] sm:$0x1]
        %v5227 = vlaneseq
        %v5228 = vshrl.u32 %v5227, 7
        %v5229 = vsub.s32 0, %v5228
        %v5230 = vrot.slane %v5225, %v5229
        %v5232 = vadd.f32 %v5221, %v5230
        %v5233 = vadd.f32 %v5222, %v5230
        %v5234 = vadd.f32 %v5223, %v5230
        %v5235 = vadd.f32 %v5224, %v5230
        %v5236 = vmax.f32 %v5232, 0.0
        %v5237 = vmax.f32 %v5233, 0.0
        %v5238 = vmax.f32 %v5234, 0.0
        %v5239 = vmax.f32 %v5235, 0.0
        %v5240 = vmul.u32 %v2136, 4
        %vm5241 = vcmp.eq.s32.totalorder %v2155, %v5240
        %v5242 = vsel %vm5241, 1, 0
        %v5243 = vcvt.s32.f32 %v5242
        %vm5244 = vcmask 261120
        %v5246 = vsel %vm5244, %v5243, 0
        %5248 = vmatprep.subr.mxu0 0.0
        %5249 = vmatpush1.msra.mxu0 0.0
        %5250 = vmatprep.subr.mxu0 0.0
        %5251 = vmatpush1.msra.mxu0 0.0
        %5252 = vmatprep.subr.mxu0 0.0
        %5253 = vmatpush1.msra.mxu0 0.0
        %5254 = vmatprep.subr.mxu0 0.0
        %5255 = vmatpush1.msra.mxu0 0.0
        %5256 = vmatprep.subr.mxu0 0.0
        %5257 = vmatpush1.msra.mxu0 0.0
        %5258 = vmatprep.subr.mxu0 0.0
        %5259 = vmatpush1.msra.mxu0 0.0
        %5260 = vmatprep.subr.mxu0 0.0
        %5261 = vmatpush1.msra.mxu0 0.0
        %5262 = vmatprep.subr.mxu0 0.0
        %5263 = vmatpush1.msra.mxu0 0.0
        %5264 = vmatprep.subr.mxu0 0.0
        %5265 = vmatpush1.msra.mxu0 0.0
        %5266 = vmatprep.subr.mxu0 0.0
        %5267 = vmatpush1.msra.mxu0 0.0
        %5268 = vmatprep.subr.mxu0 0.0
        %5269 = vmatpush1.msra.mxu0 0.0
        %5270 = vmatprep.subr.mxu0 0.0
        %5271 = vmatpush1.msra.mxu0 0.0
        %5272 = vmatprep.subr.mxu0 0.0
        %5273 = vmatpush1.msra.mxu0 %v5239
        %5274 = vmatprep.subr.mxu0 0.0
        %5275 = vmatpush1.msra.mxu0 %v5238
        %5276 = vmatprep.subr.mxu0 0.0
        %5277 = vmatpush1.msra.mxu0 %v5237
        %5278 = vmatprep.subr.mxu0 0.0
        %5279 = vmatpush1.msra.mxu0 %v5236
        %5280 = vmatprep.subr.mxu0 0.0
        %5281 = vmatpush2.msra.mxu0 0.0
        %5282 = vmatprep.subr.mxu0 0.0
        %5283 = vmatpush2.msra.mxu0 0.0
        %5284 = vmatprep.subr.mxu0 0.0
        %5285 = vmatpush2.msra.mxu0 0.0
        %5286 = vmatprep.subr.mxu0 0.0
        %5287 = vmatpush2.msra.mxu0 0.0
        %5288 = vmatprep.subr.mxu0 0.0
        %5289 = vmatpush2.msra.mxu0 0.0
        %5290 = vmatprep.subr.mxu0 0.0
        %5291 = vmatpush2.msra.mxu0 0.0
        %5292 = vmatprep.subr.mxu0 0.0
        %5293 = vmatpush2.msra.mxu0 0.0
        %5294 = vmatprep.subr.mxu0 0.0
        %5295 = vmatpush2.msra.mxu0 0.0
        %5296 = vmatprep.subr.mxu0 0.0
        %5297 = vmatpush2.msra.mxu0 0.0
        %5298 = vmatprep.subr.mxu0 0.0
        %5299 = vmatpush2.msra.mxu0 0.0
        %5300 = vmatprep.subr.mxu0 0.0
        %5301 = vmatpush2.msra.mxu0 0.0
        %5302 = vmatprep.subr.mxu0 0.0
        %5303 = vmatpush2.msra.mxu0 0.0
        %5304 = vmatprep.subr.mxu0 0.0
        %5305 = vmatpush2.msra.mxu0 0.0
        %5306 = vmatprep.subr.mxu0 0.0
        %5307 = vmatpush2.msra.mxu0 0.0
        %5308 = vmatprep.subr.mxu0 0.0
        %5309 = vmatpush2.msra.mxu0 0.0
        %5310 = vmatprep.subr.mxu0 0.0
        %5311 = vmatpush2.msra.mxu0 0.0
        %5312 = vmatprep.mubr.f32.mxu0 0.0
        %5313 = vmatmul.mubr.f32.gmra.mxu0 %v5246
        %v5314 = vpop.f32.mrf.mxu0
        %v5315 = vadd.f32 0.0, %v5314
        %v5316 = vpop.f32.mrf.mxu0
        %5317 = vdwg.mxu0
        %v5318 = vadd.s32 %v5240, 1
        %vm5319 = vcmp.eq.s32.totalorder %v2155, %v5318
        %v5320 = vsel %vm5319, 1, 0
        %v5321 = vcvt.s32.f32 %v5320
        %v5323 = vsel %vm5244, %v5321, 0
        %5325 = vmatprep.subr.mxu0 0.0
        %5326 = vmatpush1.msra.mxu0 0.0
        %5327 = vmatprep.subr.mxu0 0.0
        %5328 = vmatpush1.msra.mxu0 0.0
        %5329 = vmatprep.subr.mxu0 0.0
        %5330 = vmatpush1.msra.mxu0 0.0
        %5331 = vmatprep.subr.mxu0 0.0
        %5332 = vmatpush1.msra.mxu0 0.0
        %5333 = vmatprep.subr.mxu0 0.0
        %5334 = vmatpush1.msra.mxu0 0.0
        %5335 = vmatprep.subr.mxu0 0.0
        %5336 = vmatpush1.msra.mxu0 0.0
        %5337 = vmatprep.subr.mxu0 0.0
        %5338 = vmatpush1.msra.mxu0 0.0
        %5339 = vmatprep.subr.mxu0 0.0
        %5340 = vmatpush1.msra.mxu0 0.0
        %5341 = vmatprep.subr.mxu0 0.0
        %5342 = vmatpush1.msra.mxu0 0.0
        %5343 = vmatprep.subr.mxu0 0.0
        %5344 = vmatpush1.msra.mxu0 0.0
        %5345 = vmatprep.subr.mxu0 0.0
        %5346 = vmatpush1.msra.mxu0 0.0
        %5347 = vmatprep.subr.mxu0 0.0
        %5348 = vmatpush1.msra.mxu0 0.0
        %5349 = vmatprep.subr.mxu0 0.0
        %5350 = vmatpush1.msra.mxu0 %v5239
        %5351 = vmatprep.subr.mxu0 0.0
        %5352 = vmatpush1.msra.mxu0 %v5238
        %5353 = vmatprep.subr.mxu0 0.0
        %5354 = vmatpush1.msra.mxu0 %v5237
        %5355 = vmatprep.subr.mxu0 0.0
        %5356 = vmatpush1.msra.mxu0 %v5236
        %5357 = vmatprep.subr.mxu0 0.0
        %5358 = vmatpush2.msra.mxu0 0.0
        %5359 = vmatprep.subr.mxu0 0.0
        %5360 = vmatpush2.msra.mxu0 0.0
        %5361 = vmatprep.subr.mxu0 0.0
        %5362 = vmatpush2.msra.mxu0 0.0
        %5363 = vmatprep.subr.mxu0 0.0
        %5364 = vmatpush2.msra.mxu0 0.0
        %5365 = vmatprep.subr.mxu0 0.0
        %5366 = vmatpush2.msra.mxu0 0.0
        %5367 = vmatprep.subr.mxu0 0.0
        %5368 = vmatpush2.msra.mxu0 0.0
        %5369 = vmatprep.subr.mxu0 0.0
        %5370 = vmatpush2.msra.mxu0 0.0
        %5371 = vmatprep.subr.mxu0 0.0
        %5372 = vmatpush2.msra.mxu0 0.0
        %5373 = vmatprep.subr.mxu0 0.0
        %5374 = vmatpush2.msra.mxu0 0.0
        %5375 = vmatprep.subr.mxu0 0.0
        %5376 = vmatpush2.msra.mxu0 0.0
        %5377 = vmatprep.subr.mxu0 0.0
        %5378 = vmatpush2.msra.mxu0 0.0
        %5379 = vmatprep.subr.mxu0 0.0
        %5380 = vmatpush2.msra.mxu0 0.0
        %5381 = vmatprep.subr.mxu0 0.0
        %5382 = vmatpush2.msra.mxu0 0.0
        %5383 = vmatprep.subr.mxu0 0.0
        %5384 = vmatpush2.msra.mxu0 0.0
        %5385 = vmatprep.subr.mxu0 0.0
        %5386 = vmatpush2.msra.mxu0 0.0
        %5387 = vmatprep.subr.mxu0 0.0
        %5388 = vmatpush2.msra.mxu0 0.0
        %5389 = vmatprep.mubr.f32.mxu0 0.0
        %5390 = vmatmul.mubr.f32.gmra.mxu0 %v5323
        %v5391 = vpop.f32.mrf.mxu0
        %v5392 = vadd.f32 0.0, %v5391
        %v5393 = vpop.f32.mrf.mxu0
        %5394 = vdwg.mxu0
        %v5395 = vadd.s32 %v5240, 2
        %vm5396 = vcmp.eq.s32.totalorder %v2155, %v5395
        %v5397 = vsel %vm5396, 1, 0
        %v5398 = vcvt.s32.f32 %v5397
        %v5400 = vsel %vm5244, %v5398, 0
        %5402 = vmatprep.subr.mxu0 0.0
        %5403 = vmatpush1.msra.mxu0 0.0
        %5404 = vmatprep.subr.mxu0 0.0
        %5405 = vmatpush1.msra.mxu0 0.0
        %5406 = vmatprep.subr.mxu0 0.0
        %5407 = vmatpush1.msra.mxu0 0.0
        %5408 = vmatprep.subr.mxu0 0.0
        %5409 = vmatpush1.msra.mxu0 0.0
        %5410 = vmatprep.subr.mxu0 0.0
        %5411 = vmatpush1.msra.mxu0 0.0
        %5412 = vmatprep.subr.mxu0 0.0
        %5413 = vmatpush1.msra.mxu0 0.0
        %5414 = vmatprep.subr.mxu0 0.0
        %5415 = vmatpush1.msra.mxu0 0.0
        %5416 = vmatprep.subr.mxu0 0.0
        %5417 = vmatpush1.msra.mxu0 0.0
        %5418 = vmatprep.subr.mxu0 0.0
        %5419 = vmatpush1.msra.mxu0 0.0
        %5420 = vmatprep.subr.mxu0 0.0
        %5421 = vmatpush1.msra.mxu0 0.0
        %5422 = vmatprep.subr.mxu0 0.0
        %5423 = vmatpush1.msra.mxu0 0.0
        %5424 = vmatprep.subr.mxu0 0.0
        %5425 = vmatpush1.msra.mxu0 0.0
        %5426 = vmatprep.subr.mxu0 0.0
        %5427 = vmatpush1.msra.mxu0 %v5239
        %5428 = vmatprep.subr.mxu0 0.0
        %5429 = vmatpush1.msra.mxu0 %v5238
        %5430 = vmatprep.subr.mxu0 0.0
        %5431 = vmatpush1.msra.mxu0 %v5237
        %5432 = vmatprep.subr.mxu0 0.0
        %5433 = vmatpush1.msra.mxu0 %v5236
        %5434 = vmatprep.subr.mxu0 0.0
        %5435 = vmatpush2.msra.mxu0 0.0
        %5436 = vmatprep.subr.mxu0 0.0
        %5437 = vmatpush2.msra.mxu0 0.0
        %5438 = vmatprep.subr.mxu0 0.0
        %5439 = vmatpush2.msra.mxu0 0.0
        %5440 = vmatprep.subr.mxu0 0.0
        %5441 = vmatpush2.msra.mxu0 0.0
        %5442 = vmatprep.subr.mxu0 0.0
        %5443 = vmatpush2.msra.mxu0 0.0
        %5444 = vmatprep.subr.mxu0 0.0
        %5445 = vmatpush2.msra.mxu0 0.0
        %5446 = vmatprep.subr.mxu0 0.0
        %5447 = vmatpush2.msra.mxu0 0.0
        %5448 = vmatprep.subr.mxu0 0.0
        %5449 = vmatpush2.msra.mxu0 0.0
        %5450 = vmatprep.subr.mxu0 0.0
        %5451 = vmatpush2.msra.mxu0 0.0
        %5452 = vmatprep.subr.mxu0 0.0
        %5453 = vmatpush2.msra.mxu0 0.0
        %5454 = vmatprep.subr.mxu0 0.0
        %5455 = vmatpush2.msra.mxu0 0.0
        %5456 = vmatprep.subr.mxu0 0.0
        %5457 = vmatpush2.msra.mxu0 0.0
        %5458 = vmatprep.subr.mxu0 0.0
        %5459 = vmatpush2.msra.mxu0 0.0
        %5460 = vmatprep.subr.mxu0 0.0
        %5461 = vmatpush2.msra.mxu0 0.0
        %5462 = vmatprep.subr.mxu0 0.0
        %5463 = vmatpush2.msra.mxu0 0.0
        %5464 = vmatprep.subr.mxu0 0.0
        %5465 = vmatpush2.msra.mxu0 0.0
        %5466 = vmatprep.mubr.f32.mxu0 0.0
        %5467 = vmatmul.mubr.f32.gmra.mxu0 %v5400
        %v5468 = vpop.f32.mrf.mxu0
        %v5469 = vadd.f32 0.0, %v5468
        %v5470 = vpop.f32.mrf.mxu0
        %5471 = vdwg.mxu0
        %v5472 = vadd.s32 %v5240, 3
        %vm5473 = vcmp.eq.s32.totalorder %v2155, %v5472
        %v5474 = vsel %vm5473, 1, 0
        %v5475 = vcvt.s32.f32 %v5474
        %v5477 = vsel %vm5244, %v5475, 0
        %5479 = vmatprep.subr.mxu0 0.0
        %5480 = vmatpush1.msra.mxu0 0.0
        %5481 = vmatprep.subr.mxu0 0.0
        %5482 = vmatpush1.msra.mxu0 0.0
        %5483 = vmatprep.subr.mxu0 0.0
        %5484 = vmatpush1.msra.mxu0 0.0
        %5485 = vmatprep.subr.mxu0 0.0
        %5486 = vmatpush1.msra.mxu0 0.0
        %5487 = vmatprep.subr.mxu0 0.0
        %5488 = vmatpush1.msra.mxu0 0.0
        %5489 = vmatprep.subr.mxu0 0.0
        %5490 = vmatpush1.msra.mxu0 0.0
        %5491 = vmatprep.subr.mxu0 0.0
        %5492 = vmatpush1.msra.mxu0 0.0
        %5493 = vmatprep.subr.mxu0 0.0
        %5494 = vmatpush1.msra.mxu0 0.0
        %5495 = vmatprep.subr.mxu0 0.0
        %5496 = vmatpush1.msra.mxu0 0.0
        %5497 = vmatprep.subr.mxu0 0.0
        %5498 = vmatpush1.msra.mxu0 0.0
        %5499 = vmatprep.subr.mxu0 0.0
        %5500 = vmatpush1.msra.mxu0 0.0
        %5501 = vmatprep.subr.mxu0 0.0
        %5502 = vmatpush1.msra.mxu0 0.0
        %5503 = vmatprep.subr.mxu0 0.0
        %5504 = vmatpush1.msra.mxu0 %v5239
        %5505 = vmatprep.subr.mxu0 0.0
        %5506 = vmatpush1.msra.mxu0 %v5238
        %5507 = vmatprep.subr.mxu0 0.0
        %5508 = vmatpush1.msra.mxu0 %v5237
        %5509 = vmatprep.subr.mxu0 0.0
        %5510 = vmatpush1.msra.mxu0 %v5236
        %5511 = vmatprep.subr.mxu0 0.0
        %5512 = vmatpush2.msra.mxu0 0.0
        %5513 = vmatprep.subr.mxu0 0.0
        %5514 = vmatpush2.msra.mxu0 0.0
        %5515 = vmatprep.subr.mxu0 0.0
        %5516 = vmatpush2.msra.mxu0 0.0
        %5517 = vmatprep.subr.mxu0 0.0
        %5518 = vmatpush2.msra.mxu0 0.0
        %5519 = vmatprep.subr.mxu0 0.0
        %5520 = vmatpush2.msra.mxu0 0.0
        %5521 = vmatprep.subr.mxu0 0.0
        %5522 = vmatpush2.msra.mxu0 0.0
        %5523 = vmatprep.subr.mxu0 0.0
        %5524 = vmatpush2.msra.mxu0 0.0
        %5525 = vmatprep.subr.mxu0 0.0
        %5526 = vmatpush2.msra.mxu0 0.0
        %5527 = vmatprep.subr.mxu0 0.0
        %5528 = vmatpush2.msra.mxu0 0.0
        %5529 = vmatprep.subr.mxu0 0.0
        %5530 = vmatpush2.msra.mxu0 0.0
        %5531 = vmatprep.subr.mxu0 0.0
        %5532 = vmatpush2.msra.mxu0 0.0
        %5533 = vmatprep.subr.mxu0 0.0
        %5534 = vmatpush2.msra.mxu0 0.0
        %5535 = vmatprep.subr.mxu0 0.0
        %5536 = vmatpush2.msra.mxu0 0.0
        %5537 = vmatprep.subr.mxu0 0.0
        %5538 = vmatpush2.msra.mxu0 0.0
        %5539 = vmatprep.subr.mxu0 0.0
        %5540 = vmatpush2.msra.mxu0 0.0
        %5541 = vmatprep.subr.mxu0 0.0
        %5542 = vmatpush2.msra.mxu0 0.0
        %5543 = vmatprep.mubr.f32.mxu0 0.0
        %5544 = vmatmul.mubr.f32.gmra.mxu0 %v5477
        %v5545 = vpop.f32.mrf.mxu0
        %v5546 = vadd.f32 0.0, %v5545
        %v5547 = vpop.f32.mrf.mxu0
        %5548 = vdwg.mxu0
        %5550 = vrot.lane.b32.xlu0 %v5392, 64
        %v5551 = vpop.permute.xlu0 %5550
        %5554 = vrot.lane.b32.xlu0 %v5546, 64
        %v5555 = vpop.permute.xlu0 %5554
        %v5557 = vsel %vm2818, %v5315, %v5551
        %v5558 = vsel %vm2818, %v5469, %v5555
        %v5559 = vld [vmem:[%s5] sm:$0xff]
        %v5560 = vld [vmem:[%s5 + $0x8] sm:$0xff]
        %v5561 = vld [vmem:[%s5 + $0x10] sm:$0xff]
        %v5562 = vld [vmem:[%s5 + $0x18] sm:$0xff]
        %v5563 = vld [vmem:[%s5 + $0x20] sm:$0xff]
        %v5564 = vld [vmem:[%s5 + $0x28] sm:$0xff]
        %v5565 = vld [vmem:[%s5 + $0x30] sm:$0xff]
        %v5566 = vld [vmem:[%s5 + $0x38] sm:$0xff]
        %v5567 = vld [vmem:[%s5 + $0x40] sm:$0xff]
        %v5568 = vld [vmem:[%s5 + $0x48] sm:$0xff]
        %v5569 = vld [vmem:[%s5 + $0x50] sm:$0xff]
        %v5570 = vld [vmem:[%s5 + $0x58] sm:$0xff]
        %v5571 = vld [vmem:[%s5 + $0x60] sm:$0xff]
        %v5572 = vld [vmem:[%s5 + $0x68] sm:$0xff]
        %v5573 = vld [vmem:[%s5 + $0x70] sm:$0xff]
        %v5574 = vld [vmem:[%s5 + $0x78] sm:$0xff]
        %v5575 = vld [vmem:[%s5 + $0x80] sm:$0xff]
        %v5576 = vld [vmem:[%s5 + $0x88] sm:$0xff]
        %v5577 = vld [vmem:[%s5 + $0x90] sm:$0xff]
        %v5578 = vld [vmem:[%s5 + $0x98] sm:$0xff]
        %v5579 = vld [vmem:[%s5 + $0xa0] sm:$0xff]
        %v5580 = vld [vmem:[%s5 + $0xa8] sm:$0xff]
        %v5581 = vld [vmem:[%s5 + $0xb0] sm:$0xff]
        %v5582 = vld [vmem:[%s5 + $0xb8] sm:$0xff]
        %v5583 = vld [vmem:[%s5 + $0xc0] sm:$0xff]
        %v5584 = vld [vmem:[%s5 + $0xc8] sm:$0xff]
        %v5585 = vld [vmem:[%s5 + $0xd0] sm:$0xff]
        %v5586 = vld [vmem:[%s5 + $0xd8] sm:$0xff]
        %v5587 = vld [vmem:[%s5 + $0xe0] sm:$0xff]
        %v5588 = vld [vmem:[%s5 + $0xe8] sm:$0xff]
        %v5589 = vld [vmem:[%s5 + $0xf0] sm:$0xff]
        %v5590 = vld [vmem:[%s5 + $0xf8] sm:$0xff]
        %v5591 = vld [vmem:[%s6] sm:$0x1]
        %v5593 = vlaneseq
        %v5594 = vshrl.u32 %v5593, 7
        %v5595 = vsub.s32 0, %v5594
        %v5596 = vrot.slane %v5591, %v5595
        %5598 = vmatprep.subr.mxu0 0.0
        %5599 = vmatpush1.msra.mxu0 %v5574
        %5600 = vmatprep.subr.mxu0 0.0
        %5601 = vmatpush1.msra.mxu0 %v5573
        %5602 = vmatprep.subr.mxu0 0.0
        %5603 = vmatpush1.msra.mxu0 %v5572
        %5604 = vmatprep.subr.mxu0 0.0
        %5605 = vmatpush1.msra.mxu0 %v5571
        %5606 = vmatprep.subr.mxu0 0.0
        %5607 = vmatpush1.msra.mxu0 %v5570
        %5608 = vmatprep.subr.mxu0 0.0
        %5609 = vmatpush1.msra.mxu0 %v5569
        %5610 = vmatprep.subr.mxu0 0.0
        %5611 = vmatpush1.msra.mxu0 %v5568
        %5612 = vmatprep.subr.mxu0 0.0
        %5613 = vmatpush1.msra.mxu0 %v5567
        %5614 = vmatprep.subr.mxu0 0.0
        %5615 = vmatpush1.msra.mxu0 %v5566
        %5616 = vmatprep.subr.mxu0 0.0
        %5617 = vmatpush1.msra.mxu0 %v5565
        %5618 = vmatprep.subr.mxu0 0.0
        %5619 = vmatpush1.msra.mxu0 %v5564
        %5620 = vmatprep.subr.mxu0 0.0
        %5621 = vmatpush1.msra.mxu0 %v5563
        %5622 = vmatprep.subr.mxu0 0.0
        %5623 = vmatpush1.msra.mxu0 %v5562
        %5624 = vmatprep.subr.mxu0 0.0
        %5625 = vmatpush1.msra.mxu0 %v5561
        %5626 = vmatprep.subr.mxu0 0.0
        %5627 = vmatpush1.msra.mxu0 %v5560
        %5628 = vmatprep.subr.mxu0 0.0
        %5629 = vmatpush1.msra.mxu0 %v5559
        %5630 = vmatprep.subr.mxu0 0.0
        %5631 = vmatpush2.msra.mxu0 %v5590
        %5632 = vmatprep.subr.mxu0 0.0
        %5633 = vmatpush2.msra.mxu0 %v5589
        %5634 = vmatprep.subr.mxu0 0.0
        %5635 = vmatpush2.msra.mxu0 %v5588
        %5636 = vmatprep.subr.mxu0 0.0
        %5637 = vmatpush2.msra.mxu0 %v5587
        %5638 = vmatprep.subr.mxu0 0.0
        %5639 = vmatpush2.msra.mxu0 %v5586
        %5640 = vmatprep.subr.mxu0 0.0
        %5641 = vmatpush2.msra.mxu0 %v5585
        %5642 = vmatprep.subr.mxu0 0.0
        %5643 = vmatpush2.msra.mxu0 %v5584
        %5644 = vmatprep.subr.mxu0 0.0
        %5645 = vmatpush2.msra.mxu0 %v5583
        %5646 = vmatprep.subr.mxu0 0.0
        %5647 = vmatpush2.msra.mxu0 %v5582
        %5648 = vmatprep.subr.mxu0 0.0
        %5649 = vmatpush2.msra.mxu0 %v5581
        %5650 = vmatprep.subr.mxu0 0.0
        %5651 = vmatpush2.msra.mxu0 %v5580
        %5652 = vmatprep.subr.mxu0 0.0
        %5653 = vmatpush2.msra.mxu0 %v5579
        %5654 = vmatprep.subr.mxu0 0.0
        %5655 = vmatpush2.msra.mxu0 %v5578
        %5656 = vmatprep.subr.mxu0 0.0
        %5657 = vmatpush2.msra.mxu0 %v5577
        %5658 = vmatprep.subr.mxu0 0.0
        %5659 = vmatpush2.msra.mxu0 %v5576
        %5660 = vmatprep.subr.mxu0 0.0
        %5661 = vmatpush2.msra.mxu0 %v5575
        %5662 = vmatprep.mubr.f32.mxu0 %v5558
        %5663 = vmatmul.mubr.f32.gmra.mxu0 %v5557
        %v5664 = vpop.f32.mrf.mxu0
        %v5665 = vadd.f32 %v5596, %v5664
        %v5666 = vpop.f32.mrf.mxu0
        %5667 = vdwg.mxu0
        %v5668 = vmax.f32 %v5665, 0.0
        %v5669 = vld [vmem:[%s7] sm:$0xff]
        %v5670 = vld [vmem:[%s7 + $0x8] sm:$0xff]
        %v5671 = vld [vmem:[%s7 + $0x10] sm:$0xff]
        %v5672 = vld [vmem:[%s7 + $0x18] sm:$0xff]
        %v5673 = vld [vmem:[%s7 + $0x20] sm:$0xff]
        %v5674 = vld [vmem:[%s7 + $0x28] sm:$0xff]
        %v5675 = vld [vmem:[%s7 + $0x30] sm:$0xff]
        %v5676 = vld [vmem:[%s7 + $0x38] sm:$0xff]
        %v5677 = vld [vmem:[%s7 + $0x40] sm:$0xff]
        %v5678 = vld [vmem:[%s7 + $0x48] sm:$0xff]
        %v5679 = vld [vmem:[%s7 + $0x50] sm:$0xff]
        %v5680 = vld [vmem:[%s7 + $0x58] sm:$0xff]
        %v5681 = vld [vmem:[%s7 + $0x60] sm:$0xff]
        %v5682 = vld [vmem:[%s7 + $0x68] sm:$0xff]
        %v5683 = vld [vmem:[%s7 + $0x70] sm:$0xff]
        %v5684 = vld [vmem:[%s8] sm:$0x1]
        %v5686 = vlaneseq
        %v5687 = vshrl.u32 %v5686, 7
        %v5688 = vsub.s32 0, %v5687
        %v5689 = vrot.slane %v5684, %v5688
        %vm5691 = vcmask 982016
        %v5693 = vsel %vm5691, %v5668, 0
        %5695 = vmatprep.subr.mxu0 0.0
        %5696 = vmatpush1.msra.mxu0 0.0
        %5697 = vmatprep.subr.mxu0 0.0
        %5698 = vmatpush1.msra.mxu0 %v5683
        %5699 = vmatprep.subr.mxu0 0.0
        %5700 = vmatpush1.msra.mxu0 %v5682
        %5701 = vmatprep.subr.mxu0 0.0
        %5702 = vmatpush1.msra.mxu0 %v5681
        %5703 = vmatprep.subr.mxu0 0.0
        %5704 = vmatpush1.msra.mxu0 %v5680
        %5705 = vmatprep.subr.mxu0 0.0
        %5706 = vmatpush1.msra.mxu0 %v5679
        %5707 = vmatprep.subr.mxu0 0.0
        %5708 = vmatpush1.msra.mxu0 %v5678
        %5709 = vmatprep.subr.mxu0 0.0
        %5710 = vmatpush1.msra.mxu0 %v5677
        %5711 = vmatprep.subr.mxu0 0.0
        %5712 = vmatpush1.msra.mxu0 %v5676
        %5713 = vmatprep.subr.mxu0 0.0
        %5714 = vmatpush1.msra.mxu0 %v5675
        %5715 = vmatprep.subr.mxu0 0.0
        %5716 = vmatpush1.msra.mxu0 %v5674
        %5717 = vmatprep.subr.mxu0 0.0
        %5718 = vmatpush1.msra.mxu0 %v5673
        %5719 = vmatprep.subr.mxu0 0.0
        %5720 = vmatpush1.msra.mxu0 %v5672
        %5721 = vmatprep.subr.mxu0 0.0
        %5722 = vmatpush1.msra.mxu0 %v5671
        %5723 = vmatprep.subr.mxu0 0.0
        %5724 = vmatpush1.msra.mxu0 %v5670
        %5725 = vmatprep.subr.mxu0 0.0
        %5726 = vmatpush1.msra.mxu0 %v5669
        %5727 = vmatprep.subr.mxu0 0.0
        %5728 = vmatpush2.msra.mxu0 0.0
        %5729 = vmatprep.subr.mxu0 0.0
        %5730 = vmatpush2.msra.mxu0 0.0
        %5731 = vmatprep.subr.mxu0 0.0
        %5732 = vmatpush2.msra.mxu0 0.0
        %5733 = vmatprep.subr.mxu0 0.0
        %5734 = vmatpush2.msra.mxu0 0.0
        %5735 = vmatprep.subr.mxu0 0.0
        %5736 = vmatpush2.msra.mxu0 0.0
        %5737 = vmatprep.subr.mxu0 0.0
        %5738 = vmatpush2.msra.mxu0 0.0
        %5739 = vmatprep.subr.mxu0 0.0
        %5740 = vmatpush2.msra.mxu0 0.0
        %5741 = vmatprep.subr.mxu0 0.0
        %5742 = vmatpush2.msra.mxu0 0.0
        %5743 = vmatprep.subr.mxu0 0.0
        %5744 = vmatpush2.msra.mxu0 0.0
        %5745 = vmatprep.subr.mxu0 0.0
        %5746 = vmatpush2.msra.mxu0 0.0
        %5747 = vmatprep.subr.mxu0 0.0
        %5748 = vmatpush2.msra.mxu0 0.0
        %5749 = vmatprep.subr.mxu0 0.0
        %5750 = vmatpush2.msra.mxu0 0.0
        %5751 = vmatprep.subr.mxu0 0.0
        %5752 = vmatpush2.msra.mxu0 0.0
        %5753 = vmatprep.subr.mxu0 0.0
        %5754 = vmatpush2.msra.mxu0 0.0
        %5755 = vmatprep.subr.mxu0 0.0
        %5756 = vmatpush2.msra.mxu0 0.0
        %5757 = vmatprep.subr.mxu0 0.0
        %5758 = vmatpush2.msra.mxu0 0.0
        %5759 = vmatprep.mubr.f32.mxu0 0.0
        %5760 = vmatmul.mubr.f32.gmra.mxu0 %v5693
        %v5761 = vpop.f32.mrf.mxu0
        %v5762 = vadd.f32 %v5689, %v5761
        %v5763 = vpop.f32.mrf.mxu0
        %5764 = vdwg.mxu0
        %v5765 = vmax.f32 %v5762, 0.0
        %v5766 = vld [vmem:[%s9] sm:$0xff]
        %v5767 = vld [vmem:[%s9 + $0x8] sm:$0xff]
        %v5768 = vld [vmem:[%s9 + $0x10] sm:$0xff]
        %v5769 = vld [vmem:[%s9 + $0x18] sm:$0xff]
        %v5770 = vld [vmem:[%s9 + $0x20] sm:$0xff]
        %v5771 = vld [vmem:[%s9 + $0x28] sm:$0xff]
        %v5772 = vld [vmem:[%s9 + $0x30] sm:$0xff]
        %v5773 = vld [vmem:[%s9 + $0x38] sm:$0xff]
        %v5774 = vld [vmem:[%s9 + $0x40] sm:$0xff]
        %v5775 = vld [vmem:[%s9 + $0x48] sm:$0xff]
        %v5776 = vld [vmem:[%s9 + $0x50] sm:$0xf]
        %v5777 = vld [vmem:[%s10] sm:$0x1]
        %v5779 = vlaneseq
        %v5780 = vshrl.u32 %v5779, 7
        %v5781 = vsub.s32 0, %v5780
        %v5782 = vrot.slane %v5777, %v5781
        %vm5784 = vcmask 687104
        %v5786 = vsel %vm5784, %v5765, 0
        %v5789 = vsel %vm528, %v5776, 0
        %5791 = vmatprep.subr.mxu0 0.0
        %5792 = vmatpush1.msra.mxu0 0.0
        %5793 = vmatprep.subr.mxu0 0.0
        %5794 = vmatpush1.msra.mxu0 0.0
        %5795 = vmatprep.subr.mxu0 0.0
        %5796 = vmatpush1.msra.mxu0 0.0
        %5797 = vmatprep.subr.mxu0 0.0
        %5798 = vmatpush1.msra.mxu0 0.0
        %5799 = vmatprep.subr.mxu0 0.0
        %5800 = vmatpush1.msra.mxu0 0.0
        %5801 = vmatprep.subr.mxu0 0.0
        %5802 = vmatpush1.msra.mxu0 %v5789
        %5803 = vmatprep.subr.mxu0 0.0
        %5804 = vmatpush1.msra.mxu0 %v5775
        %5805 = vmatprep.subr.mxu0 0.0
        %5806 = vmatpush1.msra.mxu0 %v5774
        %5807 = vmatprep.subr.mxu0 0.0
        %5808 = vmatpush1.msra.mxu0 %v5773
        %5809 = vmatprep.subr.mxu0 0.0
        %5810 = vmatpush1.msra.mxu0 %v5772
        %5811 = vmatprep.subr.mxu0 0.0
        %5812 = vmatpush1.msra.mxu0 %v5771
        %5813 = vmatprep.subr.mxu0 0.0
        %5814 = vmatpush1.msra.mxu0 %v5770
        %5815 = vmatprep.subr.mxu0 0.0
        %5816 = vmatpush1.msra.mxu0 %v5769
        %5817 = vmatprep.subr.mxu0 0.0
        %5818 = vmatpush1.msra.mxu0 %v5768
        %5819 = vmatprep.subr.mxu0 0.0
        %5820 = vmatpush1.msra.mxu0 %v5767
        %5821 = vmatprep.subr.mxu0 0.0
        %5822 = vmatpush1.msra.mxu0 %v5766
        %5823 = vmatprep.subr.mxu0 0.0
        %5824 = vmatpush2.msra.mxu0 0.0
        %5825 = vmatprep.subr.mxu0 0.0
        %5826 = vmatpush2.msra.mxu0 0.0
        %5827 = vmatprep.subr.mxu0 0.0
        %5828 = vmatpush2.msra.mxu0 0.0
        %5829 = vmatprep.subr.mxu0 0.0
        %5830 = vmatpush2.msra.mxu0 0.0
        %5831 = vmatprep.subr.mxu0 0.0
        %5832 = vmatpush2.msra.mxu0 0.0
        %5833 = vmatprep.subr.mxu0 0.0
        %5834 = vmatpush2.msra.mxu0 0.0
        %5835 = vmatprep.subr.mxu0 0.0
        %5836 = vmatpush2.msra.mxu0 0.0
        %5837 = vmatprep.subr.mxu0 0.0
        %5838 = vmatpush2.msra.mxu0 0.0
        %5839 = vmatprep.subr.mxu0 0.0
        %5840 = vmatpush2.msra.mxu0 0.0
        %5841 = vmatprep.subr.mxu0 0.0
        %5842 = vmatpush2.msra.mxu0 0.0
        %5843 = vmatprep.subr.mxu0 0.0
        %5844 = vmatpush2.msra.mxu0 0.0
        %5845 = vmatprep.subr.mxu0 0.0
        %5846 = vmatpush2.msra.mxu0 0.0
        %5847 = vmatprep.subr.mxu0 0.0
        %5848 = vmatpush2.msra.mxu0 0.0
        %5849 = vmatprep.subr.mxu0 0.0
        %5850 = vmatpush2.msra.mxu0 0.0
        %5851 = vmatprep.subr.mxu0 0.0
        %5852 = vmatpush2.msra.mxu0 0.0
        %5853 = vmatprep.subr.mxu0 0.0
        %5854 = vmatpush2.msra.mxu0 0.0
        %5855 = vmatprep.mubr.f32.mxu0 0.0
        %5856 = vmatmul.mubr.f32.gmra.mxu0 %v5786
        %v5857 = vpop.f32.mrf.mxu0
        %v5858 = vadd.f32 %v5782, %v5857
        %v5859 = vpop.f32.mrf.mxu0
        %5860 = vdwg.mxu0
        %vm5861 = vcmask 80896
        %v5862 = vsel %vm5861, %v5858, -inf
        %5863 = vmax.xlane.f32.xlu0 %v5862
        %v5864 = vpop.xlane.xlu0 %5863
        %v5865 = vsub.f32 %v5858, %v5864
        %v5866 = vmul.f32 %v5865, 1.442695
        %v5867 = vpow.pop %v5866
        %v5868 = vsel %vm5861, %v5867, 0.0
        %5869 = vadd.xlane.f32.xlu0 %v5868
        %v5870 = vpop.xlane.xlu0 %5869
        %v5871 = vrcp.pop %v5870
        %v5872 = vmul.f32 %v5867, %v5871
        %5873 = vst.msk [vmem:[%s382] sm:$0xff] %vm5861, %v5872
        %s5874 = sand.u32 %s269, 1
        %s5875 = scalar_lea.sflag [#allocation3], %s5874
        %s5876 = sand.u32 %s269, 1
        %s5877 = smul.addr %s5876, 8
        %s5878 = scalar_lea.vmem [#allocation2], %s5877
        // Predicated region
        $region65: #{mnist_forward.1} parent=63 // pred_check
          %p5879 = pneg %p279
        $region66: #{mnist_forward.1} parent=63 // pred_check_branch
          %5881 = sbr.rel (%p5879) target = $region68
        $region67: #{mnist_forward.1} parent=63 // pred_region
          %s5883 = ssub.s32 128, 128
          %5884 = vsyncadd %s5875, %s5883
          %s5885 = smul.addr %s25, 128
          %s5886 = scalar_lea.hbm %s11, %s5885
          %s5888 = sshll.u32 %s5878, 4
          %s5889 = int_to_ptr.vmem [resolvable:$true] %s5888
          %5891 = dma.vmem_to_hbm [thread:$0]  %s5889, 128, %s5886, %s5875
        $region68: #{mnist_forward.1} parent=63 // pred_fallthru
          _
      $region64: #{mnist_forward.1} parent=5 // pred_fallthru
        _
      %p5892 = scmp.le.s32.totalorder 2, %s20
      // Predicated region
      $region69: #{mnist_forward.1} parent=5 // pred_check
        %p5893 = pneg %p5892
      $region70: #{mnist_forward.1} parent=5 // pred_check_branch
        %5895 = sbr.rel (%p5893) target = $region72
      $region71: #{mnist_forward.1} parent=5 // pred_region
        %s5896 = ssub.s32 %s20, 2
        // Predicated region
        $region73: #{mnist_forward.1} parent=71 // pred_check
          %p5897 = pneg %p285
        $region74: #{mnist_forward.1} parent=71 // pred_check_branch
          %5899 = sbr.rel (%p5897) target = $region76
        $region75: #{mnist_forward.1} parent=71 // pred_region
          %s5900 = sand.u32 %s270, 1
          %s5901 = scalar_lea.sflag [#allocation3], %s5900
          %s5902 = sand.u32 %s270, 1
          %s5903 = smul.addr %s5902, 8
          %s5904 = scalar_lea.vmem [#allocation2], %s5903
          %5905 = dma.done %s5901, 128
        $region76: #{mnist_forward.1} parent=71 // pred_fallthru
          _
      $region72: #{mnist_forward.1} parent=5 // pred_fallthru
        _
    $region6: #{mnist_forward.1} parent=1 // loop_footer
      %s24 = sadd.s32 1, %s20
    $region7: #{mnist_forward.1} parent=1 // loop_footer_branch
      %19 = sbr.rel target = $region3
    $region8: #{mnist_forward.1} parent=1 // loop_exit
      _
    %5906 = vsyncpa [#allocation3], 1
    %s5907 = scalar_lea.sflag [#allocation3], 1
    %5908 = vsyncpa %s5907, 1

</llo_original>
